<compile_context>
chip_gen: v7x
topology: tpu7x:2x2x1
jax: 0.10.0
libtpu: 0.0.40
codegen_flags: <defaults>
</compile_context>

<pallas_src>
import functools

import jax
import jax.numpy as jnp
from jax.experimental import pallas as pl
from jax.experimental.pallas import tpu as pltpu


def _round_up(n, m):
    return ((n + m - 1) // m) * m


_TK_LARGE = 2048   # K tile used only for genuinely large contractions (fc1)
_TM_TARGET = 256   # M tile target for non-BN layers


# ---------------------------------------------------------------------------
# Fused (matmul + bias [+ ReLU] [+ training BatchNorm] [+ pre-dropout]) kernel.
# bf16 operands on the MXU, f32 accumulation directly into the output block.
# Grid = (nm, nk); output block index is constant across k (VMEM-resident acc).
# ---------------------------------------------------------------------------
def _mm_kernel(*refs, relu, bn, dropout):
    idx = 0
    x_ref = refs[idx]; idx += 1
    if dropout:
        m_ref = refs[idx]; idx += 1
    w_ref = refs[idx]; idx += 1
    b_ref = refs[idx]; idx += 1
    if bn:
        g_ref = refs[idx]; idx += 1
        bt_ref = refs[idx]; idx += 1
    o_ref = refs[idx]

    k = pl.program_id(1)

    @pl.when(k == 0)
    def _():
        o_ref[...] = jnp.zeros_like(o_ref)

    xv = x_ref[...]
    if dropout:
        xv = xv * m_ref[...]          # dropout-before-matmul, exact in bf16
    o_ref[...] += jnp.dot(xv, w_ref[...], preferred_element_type=jnp.float32)

    @pl.when(k == pl.num_programs(1) - 1)
    def _():
        y = o_ref[...] + b_ref[...]   # f32 epilogue (v5e has no bf16 VPU/EUP)
        if relu:
            y = jnp.maximum(y, 0.0)
        if bn:
            # BatchNorm2d training mode: biased batch stats over the (N*H*W)
            # rows, per output channel (channels live on the lane dim).
            mean = jnp.mean(y, axis=0, keepdims=True)
            var = jnp.mean(jnp.square(y - mean), axis=0, keepdims=True)
            y = (y - mean) * jax.lax.rsqrt(var + 1e-5) * g_ref[...] + bt_ref[...]
        o_ref[...] = y


def matmul_fused(x, w, b, gamma=None, beta=None, *, relu=False, bn=False,
                 drop_mask=None):
    M, K = x.shape
    N = w.shape[1]
    dropout = drop_mask is not None

    x = x.astype(jnp.bfloat16)
    w = w.astype(jnp.bfloat16)
    if dropout:
        drop_mask = drop_mask.astype(jnp.bfloat16)

    # --- K tiling (reduction axis, innermost, "arbitrary") -----------------
    if K > 2304:                       # only fc1 hits this
        tk = _TK_LARGE
        Kp = _round_up(K, tk)
    else:                              # single K block == full dim, no pad
        tk = K
        Kp = K

    # --- M tiling ("parallel": pipelining + megacore sharding on v7x) ------
    # BN needs batch statistics over ALL rows -> single M block when bn=True.
    # TODO(synk): a two-pass mean/var reduction would allow M tiling for the
    # BatchNorm layers as well (matters only at large batch).
    if bn or M <= _TM_TARGET:
        tm, Mp = M, M
    else:
        tm = _TM_TARGET
        Mp = _round_up(M, tm)

    pad_m, pad_k = Mp - M, Kp - K
    if pad_m or pad_k:
        x = jnp.pad(x, ((0, pad_m), (0, pad_k)))
        if dropout:
            drop_mask = jnp.pad(drop_mask, ((0, pad_m), (0, pad_k)))
    if w.shape[0] != Kp:               # fc1_w is already statically padded
        w = jnp.pad(w, ((0, Kp - w.shape[0]), (0, 0)))

    nm, nk = Mp // tm, Kp // tk

    in_specs = [pl.BlockSpec((tm, tk), lambda i, k: (i, k))]
    ins = [x]
    if dropout:
        in_specs.append(pl.BlockSpec((tm, tk), lambda i, k: (i, k)))
        ins.append(drop_mask)
    in_specs.append(pl.BlockSpec((tk, N), lambda i, k: (k, 0)))
    ins.append(w)
    in_specs.append(pl.BlockSpec((1, N), lambda i, k: (0, 0)))
    ins.append(b.reshape(1, N).astype(jnp.float32))
    if bn:
        in_specs += [pl.BlockSpec((1, N), lambda i, k: (0, 0)),
                     pl.BlockSpec((1, N), lambda i, k: (0, 0))]
        ins += [gamma.reshape(1, N).astype(jnp.float32),
                beta.reshape(1, N).astype(jnp.float32)]

    kernel = functools.partial(_mm_kernel, relu=relu, bn=bn, dropout=dropout)
    out = pl.pallas_call(
        kernel,
        out_shape=jax.ShapeDtypeStruct((Mp, N), jnp.float32),
        grid=(nm, nk),
        in_specs=in_specs,
        out_specs=pl.BlockSpec((tm, N), lambda i, k: (i, 0)),
        compiler_params=pltpu.CompilerParams(
            dimension_semantics=("parallel", "arbitrary"),
            vmem_limit_bytes=32 * 1024 * 1024),
    )(*ins)
    if Mp != M:
        out = out[:M]
    return out


# ---------------------------------------------------------------------------
# im2col glue (strided slicing / reshape only); conv compute is the Pallas
# matmul above.  Activations are cast to bf16 before patch extraction.
# TODO(synk): a tap-wise accumulation grid (9 shifted DMA views) would avoid
# the kh*kw x HBM duplication of im2col for the 3x3 layers at large batch.
# ---------------------------------------------------------------------------
def _im2col(x, kh, kw, stride, pad):
    x = x.astype(jnp.bfloat16)
    if pad:
        x = jnp.pad(x, ((0, 0), (pad, pad), (pad, pad), (0, 0)))
    B, H, W, C = x.shape
    oh = (H - kh) // stride + 1
    ow = (W - kw) // stride + 1
    cols = []
    for i in range(kh):
        for j in range(kw):
            cols.append(jax.lax.slice(
                x, (0, i, j, 0),
                (B, i + (oh - 1) * stride + 1, j + (ow - 1) * stride + 1, C),
                (1, stride, stride, 1)))
    patches = jnp.concatenate(cols, axis=-1)          # (B, oh, ow, kh*kw*C)
    return patches.reshape(B * oh * ow, kh * kw * C), oh, ow


def conv2d_fused(x, w_mat, b, kh, kw, stride, pad,
                 gamma=None, beta=None, *, relu=False, bn=False):
    B = x.shape[0]
    oc = w_mat.shape[1]
    patches, oh, ow = _im2col(x, kh, kw, stride, pad)
    y = matmul_fused(patches, w_mat, b, gamma, beta, relu=relu, bn=bn)
    return y.reshape(B, oh, ow, oc)


# ---------------------------------------------------------------------------
# MaxPool2d(kernel_size=3, stride=2): the 9 shifted/strided window views are
# extracted as glue and passed as 9 separate inputs to a single elementwise
# max kernel (no stacked (9, M, C) intermediate in HBM).
# ---------------------------------------------------------------------------
def _max9_kernel(*refs):
    o_ref = refs[-1]
    m = refs[0][...]
    for r in refs[1:9]:
        m = jnp.maximum(m, r[...])
    o_ref[...] = m


def maxpool_3x3_s2(x):
    B, H, W, C = x.shape
    oh = (H - 3) // 2 + 1
    ow = (W - 3) // 2 + 1
    wins = []
    for i in range(3):
        for j in range(3):
            w = jax.lax.slice(
                x, (0, i, j, 0),
                (B, i + (oh - 1) * 2 + 1, j + (ow - 1) * 2 + 1, C),
                (1, 2, 2, 1))
            wins.append(w.reshape(B * oh * ow, C))
    out = pl.pallas_call(
        _max9_kernel,
        out_shape=jax.ShapeDtypeStruct((B * oh * ow, C), x.dtype),
        in_specs=[pl.BlockSpec(memory_space=pltpu.MemorySpace.VMEM)] * 9,
        out_specs=pl.BlockSpec(memory_space=pltpu.MemorySpace.VMEM),
    )(*wins)
    return out.reshape(B, oh, ow, C)


# ---------------------------------------------------------------------------
# Parameters (deterministic synthetic init).  Conv weights are stored in the
# (kh*kw*ic, oc) im2col layout (a PyTorch (oc,ic,kh,kw) weight maps via
# transpose(2,3,1,0)), bf16.  fc1 rows are in NHWC flatten order and K-padded
# once; fc3 is padded to 128 output lanes.
# ---------------------------------------------------------------------------
def init_params(key, history_length=1, n_classes=5):
    def conv_w(k, kh, kw, ic, oc):
        scale = (kh * kw * ic) ** -0.5
        return (jax.random.normal(k, (kh, kw, ic, oc), jnp.float32)
                .reshape(kh * kw * ic, oc) * scale).astype(jnp.bfloat16)

    def vec(k, n, scale=0.01):
        return jax.random.normal(k, (n,), jnp.float32) * scale

    ks = jax.random.split(key, 18)
    p = {}
    p["c1_w"] = conv_w(ks[0], 7, 7, history_length, 32); p["c1_b"] = vec(ks[1], 32)
    p["c2_w"] = conv_w(ks[2], 5, 5, 32, 64);             p["c2_b"] = vec(ks[3], 64)
    p["c3_w"] = conv_w(ks[4], 3, 3, 64, 128);            p["c3_b"] = vec(ks[5], 128)
    p["c4_w"] = conv_w(ks[6], 3, 3, 128, 256);           p["c4_b"] = vec(ks[7], 256)
    p["c5_w"] = conv_w(ks[8], 3, 3, 256, 128);           p["c5_b"] = vec(ks[9], 128)
    p["c6_w"] = conv_w(ks[10], 3, 3, 128, 64);           p["c6_b"] = vec(ks[11], 64)
    p["bn1_g"] = jnp.ones((32,), jnp.float32); p["bn1_b"] = jnp.zeros((32,), jnp.float32)
    p["bn2_g"] = jnp.ones((64,), jnp.float32); p["bn2_b"] = jnp.zeros((64,), jnp.float32)
    p["bn3_g"] = jnp.ones((64,), jnp.float32); p["bn3_b"] = jnp.zeros((64,), jnp.float32)

    nf = 64 * 11 * 11
    # fc1 rows stored in NHWC flatten order (h, w, c): a PyTorch fc1.weight
    # (512, nf) would map via w.T.reshape(64,11,11,512).transpose(1,2,0,3).reshape(nf,512).
    # K statically zero-padded to the fc1 K tile so no per-forward weight pad.
    nf_pad = _round_up(nf, _TK_LARGE)
    fc1 = jax.random.normal(ks[12], (nf, 512), jnp.float32) * nf ** -0.5
    p["fc1_w"] = jnp.pad(fc1, ((0, nf_pad - nf), (0, 0))).astype(jnp.bfloat16)
    p["fc1_b"] = vec(ks[13], 512)
    p["fc2_w"] = (jax.random.normal(ks[14], (512, 512), jnp.float32)
                  * 512 ** -0.5).astype(jnp.bfloat16)
    p["fc2_b"] = vec(ks[15], 512)
    # fc3 padded to 128 output lanes (lane-dense stores); slice [:, :n_classes] outside.
    fc3 = jax.random.normal(ks[16], (512, n_classes), jnp.float32) * 512 ** -0.5
    p["fc3_w"] = jnp.pad(fc3, ((0, 0), (0, 128 - n_classes))).astype(jnp.bfloat16)
    p["fc3_b"] = jnp.pad(vec(ks[17], n_classes), (0, 128 - n_classes))
    return p


def cnn_forward(x_nchw, p, dropout_rng=None, n_classes=5):
    B = x_nchw.shape[0]
    if dropout_rng is None:
        dropout_rng = jax.random.PRNGKey(0)
    # TODO(synk): the dropout random stream necessarily differs from torch's RNG.
    k1, k2 = jax.random.split(dropout_rng)
    mask1 = jax.random.bernoulli(k1, 0.5, (B, 64 * 11 * 11)).astype(jnp.bfloat16) * 2.0
    mask2 = jax.random.bernoulli(k2, 0.5, (B, 512)).astype(jnp.bfloat16) * 2.0

    x = jnp.transpose(x_nchw, (0, 2, 3, 1))                      # NCHW -> NHWC
    # conv1 -> relu -> bn1 -> pool1
    x = conv2d_fused(x, p["c1_w"], p["c1_b"], 7, 7, 4, 0,
                     p["bn1_g"], p["bn1_b"], relu=True, bn=True)
    x = maxpool_3x3_s2(x.astype(jnp.bfloat16))
    # conv2 -> relu -> bn2
    x = conv2d_fused(x, p["c2_w"], p["c2_b"], 5, 5, 1, 2,
                     p["bn2_g"], p["bn2_b"], relu=True, bn=True)
    # conv3..conv5 (no activation / no norm, matching the reference forward)
    x = conv2d_fused(x, p["c3_w"], p["c3_b"], 3, 3, 1, 1)
    x = conv2d_fused(x, p["c4_w"], p["c4_b"], 3, 3, 1, 1)
    x = conv2d_fused(x, p["c5_w"], p["c5_b"], 3, 3, 1, 1)
    # conv6 -> bn3
    x = conv2d_fused(x, p["c6_w"], p["c6_b"], 3, 3, 1, 1,
                     p["bn3_g"], p["bn3_b"], relu=False, bn=True)
    # NHWC flatten; fc1_w rows are stored in matching NHWC order, so no
    # per-forward transpose is needed before the flatten.
    x = x.reshape(B, 64 * 11 * 11)
    # dropout -> fc1 -> relu (dropout fused into the fc1 kernel)
    x = matmul_fused(x, p["fc1_w"], p["fc1_b"], relu=True, drop_mask=mask1)
    # dropout -> fc2 -> relu
    x = matmul_fused(x, p["fc2_w"], p["fc2_b"], relu=True, drop_mask=mask2)
    # fc3 (lane-padded to 128 outputs; slice back to n_classes)
    x = matmul_fused(x, p["fc3_w"], p["fc3_b"])
    return x[:, :n_classes]


if __name__ == "__main__":
    key = jax.random.PRNGKey(0)
    pkey, xkey, dkey = jax.random.split(key, 3)
    params = init_params(pkey, history_length=1, n_classes=5)
    # 96x96 grayscale frames (CarRacing-style), batch=2 — the only spatial size
    # consistent with fc1's 64*11*11 input features.
    x = jax.random.normal(xkey, (2, 1, 96, 96), jnp.float32)
    out = cnn_forward(x, params, dropout_rng=dkey, n_classes=5)
    out = jax.block_until_ready(out)
    assert out.shape == (2, 5), out.shape
    assert bool(jnp.all(jnp.isfinite(out)))
    print("KERNEL_OK")
</pallas_src>

<mosaic_0001>
module attributes {stable_mosaic.version = 11 : i64} {
  func.func @_mm_kernel(%arg0: i32, %arg1: i32, %arg2: memref<1058x49xbf16, #tpu.memory_space<vmem>>, %arg3: memref<49x32xbf16, #tpu.memory_space<vmem>>, %arg4: memref<1x32xf32, #tpu.memory_space<vmem>>, %arg5: memref<1x32xf32, #tpu.memory_space<vmem>>, %arg6: memref<1x32xf32, #tpu.memory_space<vmem>>, %arg7: memref<1058x32xf32, #tpu.memory_space<vmem>>) attributes {dimension_semantics = [#tpu.dimension_semantics<parallel>, #tpu.dimension_semantics<arbitrary>], iteration_bounds = array<i64: 1, 1>, scalar_prefetch = 0 : i64, scratch_operands = 0 : i64, tpu.core_type = #tpu.core_type<tc>, window_params = [{transform_indices = @transform_0, window_bounds = array<i64: 1058, 49>}, {transform_indices = @transform_1, window_bounds = array<i64: 49, 32>}, {pipeline_mode = #tpu.pipeline_mode<synchronous>, transform_indices = @transform_2, window_bounds = array<i64: 1, 32>}, {pipeline_mode = #tpu.pipeline_mode<synchronous>, transform_indices = @transform_3, window_bounds = array<i64: 1, 32>}, {pipeline_mode = #tpu.pipeline_mode<synchronous>, transform_indices = @transform_4, window_bounds = array<i64: 1, 32>}, {transform_indices = @transform_5, window_bounds = array<i64: 1058, 32>}]} {
    %c0_i32 = arith.constant 0 : i32
    %0 = arith.cmpi eq, %arg1, %c0_i32 : i32
    %1 = arith.extui %0 : i1 to i32
    %c0_i32_0 = arith.constant 0 : i32
    %2 = arith.cmpi ne, %1, %c0_i32_0 : i32
    scf.if %2 {
      %cst_10 = arith.constant 0.000000e+00 : f32
      %12 = vector.broadcast %cst_10 : f32 to vector<1058x32xf32>
      %c0_11 = arith.constant 0 : index
      %c0_12 = arith.constant 0 : index
      %13 = vector.load %arg7[%c0_11, %c0_12] : memref<1058x32xf32, #tpu.memory_space<vmem>>, vector<1058x32xf32>
      tpu.vector_store %arg7[%c0_11, %c0_12], %12 {strides = array<i32>} : memref<1058x32xf32, #tpu.memory_space<vmem>>, vector<1058x32xf32>,
    } else {
    }
    %c0 = arith.constant 0 : index
    %c0_1 = arith.constant 0 : index
    %3 = vector.load %arg2[%c0, %c0_1] : memref<1058x49xbf16, #tpu.memory_space<vmem>>, vector<1058x49xbf16>
    %c0_2 = arith.constant 0 : index
    %c0_3 = arith.constant 0 : index
    %4 = vector.load %arg7[%c0_2, %c0_3] : memref<1058x32xf32, #tpu.memory_space<vmem>>, vector<1058x32xf32>
    %c0_4 = arith.constant 0 : index
    %c0_5 = arith.constant 0 : index
    %5 = vector.load %arg3[%c0_4, %c0_5] : memref<49x32xbf16, #tpu.memory_space<vmem>>, vector<49x32xbf16>
    %cst = arith.constant dense<0.000000e+00> : vector<1058x32xf32>
    %6 = tpu.matmul %3, %5, %cst {dimension_numbers = #tpu.dot_dimension_numbers<[1], [0], [0], [1], [0, 0, 1, 1], [], []>} : vector<1058x49xbf16>, vector<49x32xbf16>, vector<1058x32xf32> -> vector<1058x32xf32>
    %7 = arith.addf %4, %6 : vector<1058x32xf32>
    %c0_6 = arith.constant 0 : index
    %c0_7 = arith.constant 0 : index
    %8 = vector.load %arg7[%c0_6, %c0_7] : memref<1058x32xf32, #tpu.memory_space<vmem>>, vector<1058x32xf32>
    tpu.vector_store %arg7[%c0_6, %c0_7], %7 {strides = array<i32>} : memref<1058x32xf32, #tpu.memory_space<vmem>>, vector<1058x32xf32>,
    %c0_i32_8 = arith.constant 0 : i32
    %9 = arith.cmpi eq, %arg1, %c0_i32_8 : i32
    %10 = arith.extui %9 : i1 to i32
    %c0_i32_9 = arith.constant 0 : i32
    %11 = arith.cmpi ne, %10, %c0_i32_9 : i32
    scf.if %11 {
      %c0_10 = arith.constant 0 : index
      %c0_11 = arith.constant 0 : index
      %12 = vector.load %arg7[%c0_10, %c0_11] : memref<1058x32xf32, #tpu.memory_space<vmem>>, vector<1058x32xf32>
      %c0_12 = arith.constant 0 : index
      %c0_13 = arith.constant 0 : index
      %13 = vector.load %arg4[%c0_12, %c0_13] : memref<1x32xf32, #tpu.memory_space<vmem>>, vector<1x32xf32>
      %14 = vector.broadcast %13 : vector<1x32xf32> to vector<1058x32xf32>
      %15 = arith.addf %12, %14 : vector<1058x32xf32>
      %cst_14 = arith.constant 0.000000e+00 : f32
      %16 = vector.broadcast %cst_14 : f32 to vector<1058x32xf32>
      %17 = arith.maximumf %15, %16 : vector<1058x32xf32>
      %cst_15 = arith.constant dense<0.000000e+00> : vector<32xf32>
      %18 = vector.multi_reduction <add>, %17, %cst_15 [0] : vector<1058x32xf32> to vector<32xf32>
      %19 = vector.shape_cast %18 : vector<32xf32> to vector<1x32xf32>
      %cst_16 = arith.constant 1.058000e+03 : f32
      %20 = vector.broadcast %cst_16 : f32 to vector<1x32xf32>
      %21 = arith.divf %19, %20 : vector<1x32xf32>
      %22 = vector.broadcast %21 : vector<1x32xf32> to vector<1058x32xf32>
      %23 = arith.subf %17, %22 : vector<1058x32xf32>
      %24 = arith.mulf %23, %23 : vector<1058x32xf32>
      %cst_17 = arith.constant dense<0.000000e+00> : vector<32xf32>
      %25 = vector.multi_reduction <add>, %24, %cst_17 [0] : vector<1058x32xf32> to vector<32xf32>
      %26 = vector.shape_cast %25 : vector<32xf32> to vector<1x32xf32>
      %cst_18 = arith.constant 1.058000e+03 : f32
      %27 = vector.broadcast %cst_18 : f32 to vector<1x32xf32>
      %28 = arith.divf %26, %27 : vector<1x32xf32>
      %29 = vector.broadcast %21 : vector<1x32xf32> to vector<1058x32xf32>
      %30 = arith.subf %17, %29 : vector<1058x32xf32>
      %cst_19 = arith.constant 9.99999974E-6 : f32
      %31 = vector.broadcast %cst_19 : f32 to vector<1x32xf32>
      %32 = arith.addf %28, %31 : vector<1x32xf32>
      %33 = math.rsqrt %32 : vector<1x32xf32>
      %34 = vector.broadcast %33 : vector<1x32xf32> to vector<1058x32xf32>
      %35 = arith.mulf %30, %34 : vector<1058x32xf32>
      %c0_20 = arith.constant 0 : index
      %c0_21 = arith.constant 0 : index
      %36 = vector.load %arg5[%c0_20, %c0_21] : memref<1x32xf32, #tpu.memory_space<vmem>>, vector<1x32xf32>
      %37 = vector.broadcast %36 : vector<1x32xf32> to vector<1058x32xf32>
      %38 = arith.mulf %35, %37 : vector<1058x32xf32>
      %c0_22 = arith.constant 0 : index
      %c0_23 = arith.constant 0 : index
      %39 = vector.load %arg6[%c0_22, %c0_23] : memref<1x32xf32, #tpu.memory_space<vmem>>, vector<1x32xf32>
      %40 = vector.broadcast %39 : vector<1x32xf32> to vector<1058x32xf32>
      %41 = arith.addf %38, %40 : vector<1058x32xf32>
      %c0_24 = arith.constant 0 : index
      %c0_25 = arith.constant 0 : index
      %42 = vector.load %arg7[%c0_24, %c0_25] : memref<1058x32xf32, #tpu.memory_space<vmem>>, vector<1058x32xf32>
      tpu.vector_store %arg7[%c0_24, %c0_25], %41 {strides = array<i32>} : memref<1058x32xf32, #tpu.memory_space<vmem>>, vector<1058x32xf32>,
    } else {
    }
    return
  }
  func.func @transform_0(%arg0: i32, %arg1: i32) -> (i32, i32) {
    %c0_i32 = arith.constant 0 : i32
    return %arg0, %arg1 : i32, i32
  }
  func.func @transform_1(%arg0: i32, %arg1: i32) -> (i32, i32) {
    %c0_i32 = arith.constant 0 : i32
    %c0_i32_0 = arith.constant 0 : i32
    return %arg1, %c0_i32 : i32, i32
  }
  func.func @transform_2(%arg0: i32, %arg1: i32) -> (i32, i32) {
    %c0_i32 = arith.constant 0 : i32
    %c0_i32_0 = arith.constant 0 : i32
    %c0_i32_1 = arith.constant 0 : i32
    return %c0_i32, %c0_i32_0 : i32, i32
  }
  func.func @transform_3(%arg0: i32, %arg1: i32) -> (i32, i32) {
    %c0_i32 = arith.constant 0 : i32
    %c0_i32_0 = arith.constant 0 : i32
    %c0_i32_1 = arith.constant 0 : i32
    return %c0_i32, %c0_i32_0 : i32, i32
  }
  func.func @transform_4(%arg0: i32, %arg1: i32) -> (i32, i32) {
    %c0_i32 = arith.constant 0 : i32
    %c0_i32_0 = arith.constant 0 : i32
    %c0_i32_1 = arith.constant 0 : i32
    return %c0_i32, %c0_i32_0 : i32, i32
  }
  func.func @transform_5(%arg0: i32, %arg1: i32) -> (i32, i32) {
    %c0_i32 = arith.constant 0 : i32
    %c0_i32_0 = arith.constant 0 : i32
    return %arg0, %c0_i32 : i32, i32
  }
}

</mosaic_0001>

<llo_original>
// kernel: tpu_custom_call.1
$region0: #{tpu_custom_call.1}
  #allocation0 [shape = 'u32[]', space=smem, size = 0x4, offset = 0x4, fixed_abs, tag = 'smem constant byte address 0x4 - core index']
  #allocation1 [shape = 'u32[144,128]{1,0:T(1,128)}', space=vmem, size = 0x12000, scoped, tag = 'internal scratch']
  %s0 = inlined_call_operand.vmem [shape: bf16[1058,49], index: 0, kind: input, shape index: {}]
  %s1 = inlined_call_operand.vmem [shape: bf16[49,32], index: 1, kind: input, shape index: {}]
  %s2 = inlined_call_operand.vmem [shape: f32[1,32], index: 2, kind: input, shape index: {}]
  %s3 = inlined_call_operand.vmem [shape: f32[1,32], index: 3, kind: input, shape index: {}]
  %s4 = inlined_call_operand.vmem [shape: f32[1,32], index: 4, kind: input, shape index: {}]
  %s5 = inlined_call_operand.vmem [shape: f32[1058,32], index: 5, kind: output, shape index: {}]
  %s6 = sld [smem:[#allocation0]]
  $region38: #{tpu_custom_call.1} parent=0
    _
  %s8 = ssub.s32 1, %s6
  %s9 = scalar_select 0, %s8, %s6
  // Predicated region
  $region2: #{tpu_custom_call.1} parent=0 // pred_check
    _
  $region3: #{tpu_custom_call.1} parent=0 // pred_check_branch
    %11 = sbr.rel (0) target = $region5
  $region4: #{tpu_custom_call.1} parent=0 // pred_region
    _
  $region5: #{tpu_custom_call.1} parent=0 // pred_fallthru
    _
  // Predicated region
  $region6: #{tpu_custom_call.1} parent=0 // pred_check
    _
  $region7: #{tpu_custom_call.1} parent=0 // pred_check_branch
    %13 = sbr.rel (0) target = $region9
  $region8: #{tpu_custom_call.1} parent=0 // pred_region
    _
  $region9: #{tpu_custom_call.1} parent=0 // pred_fallthru
    _
  // Predicated region
  $region10: #{tpu_custom_call.1} parent=0 // pred_check
    _
  $region11: #{tpu_custom_call.1} parent=0 // pred_check_branch
    %15 = sbr.rel (0) target = $region13
  $region12: #{tpu_custom_call.1} parent=0 // pred_region
    _
  $region13: #{tpu_custom_call.1} parent=0 // pred_fallthru
    _
  // Predicated region
  $region14: #{tpu_custom_call.1} parent=0 // pred_check
    _
  $region15: #{tpu_custom_call.1} parent=0 // pred_check_branch
    %17 = sbr.rel (0) target = $region17
  $region16: #{tpu_custom_call.1} parent=0 // pred_region
    _
  $region17: #{tpu_custom_call.1} parent=0 // pred_fallthru
    _
  // Predicated region
  $region18: #{tpu_custom_call.1} parent=0 // pred_check
    _
  $region19: #{tpu_custom_call.1} parent=0 // pred_check_branch
    %19 = sbr.rel (0) target = $region21
  $region20: #{tpu_custom_call.1} parent=0 // pred_region
    _
  $region21: #{tpu_custom_call.1} parent=0 // pred_fallthru
    _
  %p21 = scmp.eq.s32.totalorder 0, 0
  // Predicated region
  $region22: #{tpu_custom_call.1} parent=0 // pred_check
    %p22 = pneg %p21
  $region23: #{tpu_custom_call.1} parent=0 // pred_check_branch
    %24 = sbr.rel (%p22) target = $region25
  $region24: #{tpu_custom_call.1} parent=0 // pred_region
    %vm25 = vcmask 261120
    %26 = vst.msk [vmem:[%s5] sm:$0xff] %vm25, 0.0
    %27 = vst.msk [vmem:[%s5 + $0x8] sm:$0xff] %vm25, 0.0
    %28 = vst.msk [vmem:[%s5 + $0x10] sm:$0xff] %vm25, 0.0
    %29 = vst.msk [vmem:[%s5 + $0x18] sm:$0xff] %vm25, 0.0
    %30 = vst.msk [vmem:[%s5 + $0x20] sm:$0xff] %vm25, 0.0
    %31 = vst.msk [vmem:[%s5 + $0x28] sm:$0xff] %vm25, 0.0
    %32 = vst.msk [vmem:[%s5 + $0x30] sm:$0xff] %vm25, 0.0
    %33 = vst.msk [vmem:[%s5 + $0x38] sm:$0xff] %vm25, 0.0
    %34 = vst.msk [vmem:[%s5 + $0x40] sm:$0xff] %vm25, 0.0
    %35 = vst.msk [vmem:[%s5 + $0x48] sm:$0xff] %vm25, 0.0
    %36 = vst.msk [vmem:[%s5 + $0x50] sm:$0xff] %vm25, 0.0
    %37 = vst.msk [vmem:[%s5 + $0x58] sm:$0xff] %vm25, 0.0
    %38 = vst.msk [vmem:[%s5 + $0x60] sm:$0xff] %vm25, 0.0
    %39 = vst.msk [vmem:[%s5 + $0x68] sm:$0xff] %vm25, 0.0
    %40 = vst.msk [vmem:[%s5 + $0x70] sm:$0xff] %vm25, 0.0
    %41 = vst.msk [vmem:[%s5 + $0x78] sm:$0xff] %vm25, 0.0
    %42 = vst.msk [vmem:[%s5 + $0x80] sm:$0xff] %vm25, 0.0
    %43 = vst.msk [vmem:[%s5 + $0x88] sm:$0xff] %vm25, 0.0
    %44 = vst.msk [vmem:[%s5 + $0x90] sm:$0xff] %vm25, 0.0
    %45 = vst.msk [vmem:[%s5 + $0x98] sm:$0xff] %vm25, 0.0
    %46 = vst.msk [vmem:[%s5 + $0xa0] sm:$0xff] %vm25, 0.0
    %47 = vst.msk [vmem:[%s5 + $0xa8] sm:$0xff] %vm25, 0.0
    %48 = vst.msk [vmem:[%s5 + $0xb0] sm:$0xff] %vm25, 0.0
    %49 = vst.msk [vmem:[%s5 + $0xb8] sm:$0xff] %vm25, 0.0
    %50 = vst.msk [vmem:[%s5 + $0xc0] sm:$0xff] %vm25, 0.0
    %51 = vst.msk [vmem:[%s5 + $0xc8] sm:$0xff] %vm25, 0.0
    %52 = vst.msk [vmem:[%s5 + $0xd0] sm:$0xff] %vm25, 0.0
    %53 = vst.msk [vmem:[%s5 + $0xd8] sm:$0xff] %vm25, 0.0
    %54 = vst.msk [vmem:[%s5 + $0xe0] sm:$0xff] %vm25, 0.0
    %55 = vst.msk [vmem:[%s5 + $0xe8] sm:$0xff] %vm25, 0.0
    %56 = vst.msk [vmem:[%s5 + $0xf0] sm:$0xff] %vm25, 0.0
    %57 = vst.msk [vmem:[%s5 + $0xf8] sm:$0xff] %vm25, 0.0
    %58 = vst.msk [vmem:[%s5 + $0x100] sm:$0xff] %vm25, 0.0
    %59 = vst.msk [vmem:[%s5 + $0x108] sm:$0xff] %vm25, 0.0
    %60 = vst.msk [vmem:[%s5 + $0x110] sm:$0xff] %vm25, 0.0
    %61 = vst.msk [vmem:[%s5 + $0x118] sm:$0xff] %vm25, 0.0
    %62 = vst.msk [vmem:[%s5 + $0x120] sm:$0xff] %vm25, 0.0
    %63 = vst.msk [vmem:[%s5 + $0x128] sm:$0xff] %vm25, 0.0
    %64 = vst.msk [vmem:[%s5 + $0x130] sm:$0xff] %vm25, 0.0
    %65 = vst.msk [vmem:[%s5 + $0x138] sm:$0xff] %vm25, 0.0
    %66 = vst.msk [vmem:[%s5 + $0x140] sm:$0xff] %vm25, 0.0
    %67 = vst.msk [vmem:[%s5 + $0x148] sm:$0xff] %vm25, 0.0
    %68 = vst.msk [vmem:[%s5 + $0x150] sm:$0xff] %vm25, 0.0
    %69 = vst.msk [vmem:[%s5 + $0x158] sm:$0xff] %vm25, 0.0
    %70 = vst.msk [vmem:[%s5 + $0x160] sm:$0xff] %vm25, 0.0
    %71 = vst.msk [vmem:[%s5 + $0x168] sm:$0xff] %vm25, 0.0
    %72 = vst.msk [vmem:[%s5 + $0x170] sm:$0xff] %vm25, 0.0
    %73 = vst.msk [vmem:[%s5 + $0x178] sm:$0xff] %vm25, 0.0
    %74 = vst.msk [vmem:[%s5 + $0x180] sm:$0xff] %vm25, 0.0
    %75 = vst.msk [vmem:[%s5 + $0x188] sm:$0xff] %vm25, 0.0
    %76 = vst.msk [vmem:[%s5 + $0x190] sm:$0xff] %vm25, 0.0
    %77 = vst.msk [vmem:[%s5 + $0x198] sm:$0xff] %vm25, 0.0
    %78 = vst.msk [vmem:[%s5 + $0x1a0] sm:$0xff] %vm25, 0.0
    %79 = vst.msk [vmem:[%s5 + $0x1a8] sm:$0xff] %vm25, 0.0
    %80 = vst.msk [vmem:[%s5 + $0x1b0] sm:$0xff] %vm25, 0.0
    %81 = vst.msk [vmem:[%s5 + $0x1b8] sm:$0xff] %vm25, 0.0
    %82 = vst.msk [vmem:[%s5 + $0x1c0] sm:$0xff] %vm25, 0.0
    %83 = vst.msk [vmem:[%s5 + $0x1c8] sm:$0xff] %vm25, 0.0
    %84 = vst.msk [vmem:[%s5 + $0x1d0] sm:$0xff] %vm25, 0.0
    %85 = vst.msk [vmem:[%s5 + $0x1d8] sm:$0xff] %vm25, 0.0
    %86 = vst.msk [vmem:[%s5 + $0x1e0] sm:$0xff] %vm25, 0.0
    %87 = vst.msk [vmem:[%s5 + $0x1e8] sm:$0xff] %vm25, 0.0
    %88 = vst.msk [vmem:[%s5 + $0x1f0] sm:$0xff] %vm25, 0.0
    %89 = vst.msk [vmem:[%s5 + $0x1f8] sm:$0xff] %vm25, 0.0
    %90 = vst.msk [vmem:[%s5 + $0x200] sm:$0xff] %vm25, 0.0
    %91 = vst.msk [vmem:[%s5 + $0x208] sm:$0xff] %vm25, 0.0
    %92 = vst.msk [vmem:[%s5 + $0x210] sm:$0xff] %vm25, 0.0
    %93 = vst.msk [vmem:[%s5 + $0x218] sm:$0xff] %vm25, 0.0
    %94 = vst.msk [vmem:[%s5 + $0x220] sm:$0xff] %vm25, 0.0
    %95 = vst.msk [vmem:[%s5 + $0x228] sm:$0xff] %vm25, 0.0
    %96 = vst.msk [vmem:[%s5 + $0x230] sm:$0xff] %vm25, 0.0
    %97 = vst.msk [vmem:[%s5 + $0x238] sm:$0xff] %vm25, 0.0
    %98 = vst.msk [vmem:[%s5 + $0x240] sm:$0xff] %vm25, 0.0
    %99 = vst.msk [vmem:[%s5 + $0x248] sm:$0xff] %vm25, 0.0
    %100 = vst.msk [vmem:[%s5 + $0x250] sm:$0xff] %vm25, 0.0
    %101 = vst.msk [vmem:[%s5 + $0x258] sm:$0xff] %vm25, 0.0
    %102 = vst.msk [vmem:[%s5 + $0x260] sm:$0xff] %vm25, 0.0
    %103 = vst.msk [vmem:[%s5 + $0x268] sm:$0xff] %vm25, 0.0
    %104 = vst.msk [vmem:[%s5 + $0x270] sm:$0xff] %vm25, 0.0
    %105 = vst.msk [vmem:[%s5 + $0x278] sm:$0xff] %vm25, 0.0
    %106 = vst.msk [vmem:[%s5 + $0x280] sm:$0xff] %vm25, 0.0
    %107 = vst.msk [vmem:[%s5 + $0x288] sm:$0xff] %vm25, 0.0
    %108 = vst.msk [vmem:[%s5 + $0x290] sm:$0xff] %vm25, 0.0
    %109 = vst.msk [vmem:[%s5 + $0x298] sm:$0xff] %vm25, 0.0
    %110 = vst.msk [vmem:[%s5 + $0x2a0] sm:$0xff] %vm25, 0.0
    %111 = vst.msk [vmem:[%s5 + $0x2a8] sm:$0xff] %vm25, 0.0
    %112 = vst.msk [vmem:[%s5 + $0x2b0] sm:$0xff] %vm25, 0.0
    %113 = vst.msk [vmem:[%s5 + $0x2b8] sm:$0xff] %vm25, 0.0
    %114 = vst.msk [vmem:[%s5 + $0x2c0] sm:$0xff] %vm25, 0.0
    %115 = vst.msk [vmem:[%s5 + $0x2c8] sm:$0xff] %vm25, 0.0
    %116 = vst.msk [vmem:[%s5 + $0x2d0] sm:$0xff] %vm25, 0.0
    %117 = vst.msk [vmem:[%s5 + $0x2d8] sm:$0xff] %vm25, 0.0
    %118 = vst.msk [vmem:[%s5 + $0x2e0] sm:$0xff] %vm25, 0.0
    %119 = vst.msk [vmem:[%s5 + $0x2e8] sm:$0xff] %vm25, 0.0
    %120 = vst.msk [vmem:[%s5 + $0x2f0] sm:$0xff] %vm25, 0.0
    %121 = vst.msk [vmem:[%s5 + $0x2f8] sm:$0xff] %vm25, 0.0
    %122 = vst.msk [vmem:[%s5 + $0x300] sm:$0xff] %vm25, 0.0
    %123 = vst.msk [vmem:[%s5 + $0x308] sm:$0xff] %vm25, 0.0
    %124 = vst.msk [vmem:[%s5 + $0x310] sm:$0xff] %vm25, 0.0
    %125 = vst.msk [vmem:[%s5 + $0x318] sm:$0xff] %vm25, 0.0
    %126 = vst.msk [vmem:[%s5 + $0x320] sm:$0xff] %vm25, 0.0
    %127 = vst.msk [vmem:[%s5 + $0x328] sm:$0xff] %vm25, 0.0
    %128 = vst.msk [vmem:[%s5 + $0x330] sm:$0xff] %vm25, 0.0
    %129 = vst.msk [vmem:[%s5 + $0x338] sm:$0xff] %vm25, 0.0
    %130 = vst.msk [vmem:[%s5 + $0x340] sm:$0xff] %vm25, 0.0
    %131 = vst.msk [vmem:[%s5 + $0x348] sm:$0xff] %vm25, 0.0
    %132 = vst.msk [vmem:[%s5 + $0x350] sm:$0xff] %vm25, 0.0
    %133 = vst.msk [vmem:[%s5 + $0x358] sm:$0xff] %vm25, 0.0
    %134 = vst.msk [vmem:[%s5 + $0x360] sm:$0xff] %vm25, 0.0
    %135 = vst.msk [vmem:[%s5 + $0x368] sm:$0xff] %vm25, 0.0
    %136 = vst.msk [vmem:[%s5 + $0x370] sm:$0xff] %vm25, 0.0
    %137 = vst.msk [vmem:[%s5 + $0x378] sm:$0xff] %vm25, 0.0
    %138 = vst.msk [vmem:[%s5 + $0x380] sm:$0xff] %vm25, 0.0
    %139 = vst.msk [vmem:[%s5 + $0x388] sm:$0xff] %vm25, 0.0
    %140 = vst.msk [vmem:[%s5 + $0x390] sm:$0xff] %vm25, 0.0
    %141 = vst.msk [vmem:[%s5 + $0x398] sm:$0xff] %vm25, 0.0
    %142 = vst.msk [vmem:[%s5 + $0x3a0] sm:$0xff] %vm25, 0.0
    %143 = vst.msk [vmem:[%s5 + $0x3a8] sm:$0xff] %vm25, 0.0
    %144 = vst.msk [vmem:[%s5 + $0x3b0] sm:$0xff] %vm25, 0.0
    %145 = vst.msk [vmem:[%s5 + $0x3b8] sm:$0xff] %vm25, 0.0
    %146 = vst.msk [vmem:[%s5 + $0x3c0] sm:$0xff] %vm25, 0.0
    %147 = vst.msk [vmem:[%s5 + $0x3c8] sm:$0xff] %vm25, 0.0
    %148 = vst.msk [vmem:[%s5 + $0x3d0] sm:$0xff] %vm25, 0.0
    %149 = vst.msk [vmem:[%s5 + $0x3d8] sm:$0xff] %vm25, 0.0
    %150 = vst.msk [vmem:[%s5 + $0x3e0] sm:$0xff] %vm25, 0.0
    %151 = vst.msk [vmem:[%s5 + $0x3e8] sm:$0xff] %vm25, 0.0
    %152 = vst.msk [vmem:[%s5 + $0x3f0] sm:$0xff] %vm25, 0.0
    %153 = vst.msk [vmem:[%s5 + $0x3f8] sm:$0xff] %vm25, 0.0
    %154 = vst.msk [vmem:[%s5 + $0x400] sm:$0xff] %vm25, 0.0
    %155 = vst.msk [vmem:[%s5 + $0x408] sm:$0xff] %vm25, 0.0
    %156 = vst.msk [vmem:[%s5 + $0x410] sm:$0xff] %vm25, 0.0
    %157 = vst.msk [vmem:[%s5 + $0x418] sm:$0xff] %vm25, 0.0
    %vm158 = vcmask 254976
    %159 = vst.msk [vmem:[%s5 + $0x420] sm:$0x3] %vm158, 0.0
  $region25: #{tpu_custom_call.1} parent=0 // pred_fallthru
    _
  %v160 = vld [vmem:[%s0] sm:$0xf]
  %v161 = vld [vmem:[%s0 + $0x4] sm:$0xf]
  %v162 = vld [vmem:[%s0 + $0x8] sm:$0xf]
  %v163 = vld [vmem:[%s0 + $0xc] sm:$0xf]
  %v164 = vld [vmem:[%s0 + $0x10] sm:$0xf]
  %v165 = vld [vmem:[%s0 + $0x14] sm:$0xf]
  %v166 = vld [vmem:[%s0 + $0x18] sm:$0xf]
  %v167 = vld [vmem:[%s0 + $0x1c] sm:$0xf]
  %v168 = vld [vmem:[%s0 + $0x20] sm:$0xf]
  %v169 = vld [vmem:[%s0 + $0x24] sm:$0xf]
  %v170 = vld [vmem:[%s0 + $0x28] sm:$0xf]
  %v171 = vld [vmem:[%s0 + $0x2c] sm:$0xf]
  %v172 = vld [vmem:[%s0 + $0x30] sm:$0xf]
  %v173 = vld [vmem:[%s0 + $0x34] sm:$0xf]
  %v174 = vld [vmem:[%s0 + $0x38] sm:$0xf]
  %v175 = vld [vmem:[%s0 + $0x3c] sm:$0xf]
  %v176 = vld [vmem:[%s0 + $0x40] sm:$0xf]
  %v177 = vld [vmem:[%s0 + $0x44] sm:$0xf]
  %v178 = vld [vmem:[%s0 + $0x48] sm:$0xf]
  %v179 = vld [vmem:[%s0 + $0x4c] sm:$0xf]
  %v180 = vld [vmem:[%s0 + $0x50] sm:$0xf]
  %v181 = vld [vmem:[%s0 + $0x54] sm:$0xf]
  %v182 = vld [vmem:[%s0 + $0x58] sm:$0xf]
  %v183 = vld [vmem:[%s0 + $0x5c] sm:$0xf]
  %v184 = vld [vmem:[%s0 + $0x60] sm:$0xf]
  %v185 = vld [vmem:[%s0 + $0x64] sm:$0xf]
  %v186 = vld [vmem:[%s0 + $0x68] sm:$0xf]
  %v187 = vld [vmem:[%s0 + $0x6c] sm:$0xf]
  %v188 = vld [vmem:[%s0 + $0x70] sm:$0xf]
  %v189 = vld [vmem:[%s0 + $0x74] sm:$0xf]
  %v190 = vld [vmem:[%s0 + $0x78] sm:$0xf]
  %v191 = vld [vmem:[%s0 + $0x7c] sm:$0xf]
  %v192 = vld [vmem:[%s0 + $0x80] sm:$0xf]
  %v193 = vld [vmem:[%s0 + $0x84] sm:$0xf]
  %v194 = vld [vmem:[%s0 + $0x88] sm:$0xf]
  %v195 = vld [vmem:[%s0 + $0x8c] sm:$0xf]
  %v196 = vld [vmem:[%s0 + $0x90] sm:$0xf]
  %v197 = vld [vmem:[%s0 + $0x94] sm:$0xf]
  %v198 = vld [vmem:[%s0 + $0x98] sm:$0xf]
  %v199 = vld [vmem:[%s0 + $0x9c] sm:$0xf]
  %v200 = vld [vmem:[%s0 + $0xa0] sm:$0xf]
  %v201 = vld [vmem:[%s0 + $0xa4] sm:$0xf]
  %v202 = vld [vmem:[%s0 + $0xa8] sm:$0xf]
  %v203 = vld [vmem:[%s0 + $0xac] sm:$0xf]
  %v204 = vld [vmem:[%s0 + $0xb0] sm:$0xf]
  %v205 = vld [vmem:[%s0 + $0xb4] sm:$0xf]
  %v206 = vld [vmem:[%s0 + $0xb8] sm:$0xf]
  %v207 = vld [vmem:[%s0 + $0xbc] sm:$0xf]
  %v208 = vld [vmem:[%s0 + $0xc0] sm:$0xf]
  %v209 = vld [vmem:[%s0 + $0xc4] sm:$0xf]
  %v210 = vld [vmem:[%s0 + $0xc8] sm:$0xf]
  %v211 = vld [vmem:[%s0 + $0xcc] sm:$0xf]
  %v212 = vld [vmem:[%s0 + $0xd0] sm:$0xf]
  %v213 = vld [vmem:[%s0 + $0xd4] sm:$0xf]
  %v214 = vld [vmem:[%s0 + $0xd8] sm:$0xf]
  %v215 = vld [vmem:[%s0 + $0xdc] sm:$0xf]
  %v216 = vld [vmem:[%s0 + $0xe0] sm:$0xf]
  %v217 = vld [vmem:[%s0 + $0xe4] sm:$0xf]
  %v218 = vld [vmem:[%s0 + $0xe8] sm:$0xf]
  %v219 = vld [vmem:[%s0 + $0xec] sm:$0xf]
  %v220 = vld [vmem:[%s0 + $0xf0] sm:$0xf]
  %v221 = vld [vmem:[%s0 + $0xf4] sm:$0xf]
  %v222 = vld [vmem:[%s0 + $0xf8] sm:$0xf]
  %v223 = vld [vmem:[%s0 + $0xfc] sm:$0xf]
  %v224 = vld [vmem:[%s0 + $0x100] sm:$0xf]
  %v225 = vld [vmem:[%s0 + $0x104] sm:$0xf]
  %v226 = vld [vmem:[%s0 + $0x108] sm:$0xf]
  %v227 = vld [vmem:[%s0 + $0x10c] sm:$0xf]
  %v228 = vld [vmem:[%s0 + $0x110] sm:$0xf]
  %v229 = vld [vmem:[%s0 + $0x114] sm:$0xf]
  %v230 = vld [vmem:[%s0 + $0x118] sm:$0xf]
  %v231 = vld [vmem:[%s0 + $0x11c] sm:$0xf]
  %v232 = vld [vmem:[%s0 + $0x120] sm:$0xf]
  %v233 = vld [vmem:[%s0 + $0x124] sm:$0xf]
  %v234 = vld [vmem:[%s0 + $0x128] sm:$0xf]
  %v235 = vld [vmem:[%s0 + $0x12c] sm:$0xf]
  %v236 = vld [vmem:[%s0 + $0x130] sm:$0xf]
  %v237 = vld [vmem:[%s0 + $0x134] sm:$0xf]
  %v238 = vld [vmem:[%s0 + $0x138] sm:$0xf]
  %v239 = vld [vmem:[%s0 + $0x13c] sm:$0xf]
  %v240 = vld [vmem:[%s0 + $0x140] sm:$0xf]
  %v241 = vld [vmem:[%s0 + $0x144] sm:$0xf]
  %v242 = vld [vmem:[%s0 + $0x148] sm:$0xf]
  %v243 = vld [vmem:[%s0 + $0x14c] sm:$0xf]
  %v244 = vld [vmem:[%s0 + $0x150] sm:$0xf]
  %v245 = vld [vmem:[%s0 + $0x154] sm:$0xf]
  %v246 = vld [vmem:[%s0 + $0x158] sm:$0xf]
  %v247 = vld [vmem:[%s0 + $0x15c] sm:$0xf]
  %v248 = vld [vmem:[%s0 + $0x160] sm:$0xf]
  %v249 = vld [vmem:[%s0 + $0x164] sm:$0xf]
  %v250 = vld [vmem:[%s0 + $0x168] sm:$0xf]
  %v251 = vld [vmem:[%s0 + $0x16c] sm:$0xf]
  %v252 = vld [vmem:[%s0 + $0x170] sm:$0xf]
  %v253 = vld [vmem:[%s0 + $0x174] sm:$0xf]
  %v254 = vld [vmem:[%s0 + $0x178] sm:$0xf]
  %v255 = vld [vmem:[%s0 + $0x17c] sm:$0xf]
  %v256 = vld [vmem:[%s0 + $0x180] sm:$0xf]
  %v257 = vld [vmem:[%s0 + $0x184] sm:$0xf]
  %v258 = vld [vmem:[%s0 + $0x188] sm:$0xf]
  %v259 = vld [vmem:[%s0 + $0x18c] sm:$0xf]
  %v260 = vld [vmem:[%s0 + $0x190] sm:$0xf]
  %v261 = vld [vmem:[%s0 + $0x194] sm:$0xf]
  %v262 = vld [vmem:[%s0 + $0x198] sm:$0xf]
  %v263 = vld [vmem:[%s0 + $0x19c] sm:$0xf]
  %v264 = vld [vmem:[%s0 + $0x1a0] sm:$0xf]
  %v265 = vld [vmem:[%s0 + $0x1a4] sm:$0xf]
  %v266 = vld [vmem:[%s0 + $0x1a8] sm:$0xf]
  %v267 = vld [vmem:[%s0 + $0x1ac] sm:$0xf]
  %v268 = vld [vmem:[%s0 + $0x1b0] sm:$0xf]
  %v269 = vld [vmem:[%s0 + $0x1b4] sm:$0xf]
  %v270 = vld [vmem:[%s0 + $0x1b8] sm:$0xf]
  %v271 = vld [vmem:[%s0 + $0x1bc] sm:$0xf]
  %v272 = vld [vmem:[%s0 + $0x1c0] sm:$0xf]
  %v273 = vld [vmem:[%s0 + $0x1c4] sm:$0xf]
  %v274 = vld [vmem:[%s0 + $0x1c8] sm:$0xf]
  %v275 = vld [vmem:[%s0 + $0x1cc] sm:$0xf]
  %v276 = vld [vmem:[%s0 + $0x1d0] sm:$0xf]
  %v277 = vld [vmem:[%s0 + $0x1d4] sm:$0xf]
  %v278 = vld [vmem:[%s0 + $0x1d8] sm:$0xf]
  %v279 = vld [vmem:[%s0 + $0x1dc] sm:$0xf]
  %v280 = vld [vmem:[%s0 + $0x1e0] sm:$0xf]
  %v281 = vld [vmem:[%s0 + $0x1e4] sm:$0xf]
  %v282 = vld [vmem:[%s0 + $0x1e8] sm:$0xf]
  %v283 = vld [vmem:[%s0 + $0x1ec] sm:$0xf]
  %v284 = vld [vmem:[%s0 + $0x1f0] sm:$0xf]
  %v285 = vld [vmem:[%s0 + $0x1f4] sm:$0xf]
  %v286 = vld [vmem:[%s0 + $0x1f8] sm:$0xf]
  %v287 = vld [vmem:[%s0 + $0x1fc] sm:$0xf]
  %v288 = vld [vmem:[%s0 + $0x200] sm:$0xf]
  %v289 = vld [vmem:[%s0 + $0x204] sm:$0xf]
  %v290 = vld [vmem:[%s0 + $0x208] sm:$0xf]
  %v291 = vld [vmem:[%s0 + $0x20c] sm:$0xf]
  %v292 = vld [vmem:[%s0 + $0x210] sm:$0x1]
  %v293 = vld [vmem:[%s5] sm:$0xff]
  %v294 = vld [vmem:[%s5 + $0x8] sm:$0xff]
  %v295 = vld [vmem:[%s5 + $0x10] sm:$0xff]
  %v296 = vld [vmem:[%s5 + $0x18] sm:$0xff]
  %v297 = vld [vmem:[%s5 + $0x20] sm:$0xff]
  %v298 = vld [vmem:[%s5 + $0x28] sm:$0xff]
  %v299 = vld [vmem:[%s5 + $0x30] sm:$0xff]
  %v300 = vld [vmem:[%s5 + $0x38] sm:$0xff]
  %v301 = vld [vmem:[%s5 + $0x40] sm:$0xff]
  %v302 = vld [vmem:[%s5 + $0x48] sm:$0xff]
  %v303 = vld [vmem:[%s5 + $0x50] sm:$0xff]
  %v304 = vld [vmem:[%s5 + $0x58] sm:$0xff]
  %v305 = vld [vmem:[%s5 + $0x60] sm:$0xff]
  %v306 = vld [vmem:[%s5 + $0x68] sm:$0xff]
  %v307 = vld [vmem:[%s5 + $0x70] sm:$0xff]
  %v308 = vld [vmem:[%s5 + $0x78] sm:$0xff]
  %v309 = vld [vmem:[%s5 + $0x80] sm:$0xff]
  %v310 = vld [vmem:[%s5 + $0x88] sm:$0xff]
  %v311 = vld [vmem:[%s5 + $0x90] sm:$0xff]
  %v312 = vld [vmem:[%s5 + $0x98] sm:$0xff]
  %v313 = vld [vmem:[%s5 + $0xa0] sm:$0xff]
  %v314 = vld [vmem:[%s5 + $0xa8] sm:$0xff]
  %v315 = vld [vmem:[%s5 + $0xb0] sm:$0xff]
  %v316 = vld [vmem:[%s5 + $0xb8] sm:$0xff]
  %v317 = vld [vmem:[%s5 + $0xc0] sm:$0xff]
  %v318 = vld [vmem:[%s5 + $0xc8] sm:$0xff]
  %v319 = vld [vmem:[%s5 + $0xd0] sm:$0xff]
  %v320 = vld [vmem:[%s5 + $0xd8] sm:$0xff]
  %v321 = vld [vmem:[%s5 + $0xe0] sm:$0xff]
  %v322 = vld [vmem:[%s5 + $0xe8] sm:$0xff]
  %v323 = vld [vmem:[%s5 + $0xf0] sm:$0xff]
  %v324 = vld [vmem:[%s5 + $0xf8] sm:$0xff]
  %v325 = vld [vmem:[%s5 + $0x100] sm:$0xff]
  %v326 = vld [vmem:[%s5 + $0x108] sm:$0xff]
  %v327 = vld [vmem:[%s5 + $0x110] sm:$0xff]
  %v328 = vld [vmem:[%s5 + $0x118] sm:$0xff]
  %v329 = vld [vmem:[%s5 + $0x120] sm:$0xff]
  %v330 = vld [vmem:[%s5 + $0x128] sm:$0xff]
  %v331 = vld [vmem:[%s5 + $0x130] sm:$0xff]
  %v332 = vld [vmem:[%s5 + $0x138] sm:$0xff]
  %v333 = vld [vmem:[%s5 + $0x140] sm:$0xff]
  %v334 = vld [vmem:[%s5 + $0x148] sm:$0xff]
  %v335 = vld [vmem:[%s5 + $0x150] sm:$0xff]
  %v336 = vld [vmem:[%s5 + $0x158] sm:$0xff]
  %v337 = vld [vmem:[%s5 + $0x160] sm:$0xff]
  %v338 = vld [vmem:[%s5 + $0x168] sm:$0xff]
  %v339 = vld [vmem:[%s5 + $0x170] sm:$0xff]
  %v340 = vld [vmem:[%s5 + $0x178] sm:$0xff]
  %v341 = vld [vmem:[%s5 + $0x180] sm:$0xff]
  %v342 = vld [vmem:[%s5 + $0x188] sm:$0xff]
  %v343 = vld [vmem:[%s5 + $0x190] sm:$0xff]
  %v344 = vld [vmem:[%s5 + $0x198] sm:$0xff]
  %v345 = vld [vmem:[%s5 + $0x1a0] sm:$0xff]
  %v346 = vld [vmem:[%s5 + $0x1a8] sm:$0xff]
  %v347 = vld [vmem:[%s5 + $0x1b0] sm:$0xff]
  %v348 = vld [vmem:[%s5 + $0x1b8] sm:$0xff]
  %v349 = vld [vmem:[%s5 + $0x1c0] sm:$0xff]
  %v350 = vld [vmem:[%s5 + $0x1c8] sm:$0xff]
  %v351 = vld [vmem:[%s5 + $0x1d0] sm:$0xff]
  %v352 = vld [vmem:[%s5 + $0x1d8] sm:$0xff]
  %v353 = vld [vmem:[%s5 + $0x1e0] sm:$0xff]
  %v354 = vld [vmem:[%s5 + $0x1e8] sm:$0xff]
  %v355 = vld [vmem:[%s5 + $0x1f0] sm:$0xff]
  %v356 = vld [vmem:[%s5 + $0x1f8] sm:$0xff]
  %v357 = vld [vmem:[%s5 + $0x200] sm:$0xff]
  %v358 = vld [vmem:[%s5 + $0x208] sm:$0xff]
  %v359 = vld [vmem:[%s5 + $0x210] sm:$0xff]
  %v360 = vld [vmem:[%s5 + $0x218] sm:$0xff]
  %v361 = vld [vmem:[%s5 + $0x220] sm:$0xff]
  %v362 = vld [vmem:[%s5 + $0x228] sm:$0xff]
  %v363 = vld [vmem:[%s5 + $0x230] sm:$0xff]
  %v364 = vld [vmem:[%s5 + $0x238] sm:$0xff]
  %v365 = vld [vmem:[%s5 + $0x240] sm:$0xff]
  %v366 = vld [vmem:[%s5 + $0x248] sm:$0xff]
  %v367 = vld [vmem:[%s5 + $0x250] sm:$0xff]
  %v368 = vld [vmem:[%s5 + $0x258] sm:$0xff]
  %v369 = vld [vmem:[%s5 + $0x260] sm:$0xff]
  %v370 = vld [vmem:[%s5 + $0x268] sm:$0xff]
  %v371 = vld [vmem:[%s5 + $0x270] sm:$0xff]
  %v372 = vld [vmem:[%s5 + $0x278] sm:$0xff]
  %v373 = vld [vmem:[%s5 + $0x280] sm:$0xff]
  %v374 = vld [vmem:[%s5 + $0x288] sm:$0xff]
  %v375 = vld [vmem:[%s5 + $0x290] sm:$0xff]
  %v376 = vld [vmem:[%s5 + $0x298] sm:$0xff]
  %v377 = vld [vmem:[%s5 + $0x2a0] sm:$0xff]
  %v378 = vld [vmem:[%s5 + $0x2a8] sm:$0xff]
  %v379 = vld [vmem:[%s5 + $0x2b0] sm:$0xff]
  %v380 = vld [vmem:[%s5 + $0x2b8] sm:$0xff]
  %v381 = vld [vmem:[%s5 + $0x2c0] sm:$0xff]
  %v382 = vld [vmem:[%s5 + $0x2c8] sm:$0xff]
  %v383 = vld [vmem:[%s5 + $0x2d0] sm:$0xff]
  %v384 = vld [vmem:[%s5 + $0x2d8] sm:$0xff]
  %v385 = vld [vmem:[%s5 + $0x2e0] sm:$0xff]
  %v386 = vld [vmem:[%s5 + $0x2e8] sm:$0xff]
  %v387 = vld [vmem:[%s5 + $0x2f0] sm:$0xff]
  %v388 = vld [vmem:[%s5 + $0x2f8] sm:$0xff]
  %v389 = vld [vmem:[%s5 + $0x300] sm:$0xff]
  %v390 = vld [vmem:[%s5 + $0x308] sm:$0xff]
  %v391 = vld [vmem:[%s5 + $0x310] sm:$0xff]
  %v392 = vld [vmem:[%s5 + $0x318] sm:$0xff]
  %v393 = vld [vmem:[%s5 + $0x320] sm:$0xff]
  %v394 = vld [vmem:[%s5 + $0x328] sm:$0xff]
  %v395 = vld [vmem:[%s5 + $0x330] sm:$0xff]
  %v396 = vld [vmem:[%s5 + $0x338] sm:$0xff]
  %v397 = vld [vmem:[%s5 + $0x340] sm:$0xff]
  %v398 = vld [vmem:[%s5 + $0x348] sm:$0xff]
  %v399 = vld [vmem:[%s5 + $0x350] sm:$0xff]
  %v400 = vld [vmem:[%s5 + $0x358] sm:$0xff]
  %v401 = vld [vmem:[%s5 + $0x360] sm:$0xff]
  %v402 = vld [vmem:[%s5 + $0x368] sm:$0xff]
  %v403 = vld [vmem:[%s5 + $0x370] sm:$0xff]
  %v404 = vld [vmem:[%s5 + $0x378] sm:$0xff]
  %v405 = vld [vmem:[%s5 + $0x380] sm:$0xff]
  %v406 = vld [vmem:[%s5 + $0x388] sm:$0xff]
  %v407 = vld [vmem:[%s5 + $0x390] sm:$0xff]
  %v408 = vld [vmem:[%s5 + $0x398] sm:$0xff]
  %v409 = vld [vmem:[%s5 + $0x3a0] sm:$0xff]
  %v410 = vld [vmem:[%s5 + $0x3a8] sm:$0xff]
  %v411 = vld [vmem:[%s5 + $0x3b0] sm:$0xff]
  %v412 = vld [vmem:[%s5 + $0x3b8] sm:$0xff]
  %v413 = vld [vmem:[%s5 + $0x3c0] sm:$0xff]
  %v414 = vld [vmem:[%s5 + $0x3c8] sm:$0xff]
  %v415 = vld [vmem:[%s5 + $0x3d0] sm:$0xff]
  %v416 = vld [vmem:[%s5 + $0x3d8] sm:$0xff]
  %v417 = vld [vmem:[%s5 + $0x3e0] sm:$0xff]
  %v418 = vld [vmem:[%s5 + $0x3e8] sm:$0xff]
  %v419 = vld [vmem:[%s5 + $0x3f0] sm:$0xff]
  %v420 = vld [vmem:[%s5 + $0x3f8] sm:$0xff]
  %v421 = vld [vmem:[%s5 + $0x400] sm:$0xff]
  %v422 = vld [vmem:[%s5 + $0x408] sm:$0xff]
  %v423 = vld [vmem:[%s5 + $0x410] sm:$0xff]
  %v424 = vld [vmem:[%s5 + $0x418] sm:$0xff]
  %v425 = vld [vmem:[%s5 + $0x420] sm:$0x3]
  %v426 = vld [vmem:[%s1] sm:$0xf]
  %v427 = vld [vmem:[%s1 + $0x4] sm:$0xf]
  %v428 = vld [vmem:[%s1 + $0x8] sm:$0xf]
  %v429 = vld [vmem:[%s1 + $0xc] sm:$0xf]
  %v430 = vld [vmem:[%s1 + $0x10] sm:$0xf]
  %v431 = vld [vmem:[%s1 + $0x14] sm:$0xf]
  %v432 = vld [vmem:[%s1 + $0x18] sm:$0x1]
  %v566 = vunpack.c.l.b16 %v160
  %v567 = vunpack.c.l.b16 %v161
  %v568 = vunpack.c.l.b16 %v162
  %v569 = vunpack.c.l.b16 %v163
  %v570 = vunpack.c.l.b16 %v164
  %v571 = vunpack.c.l.b16 %v165
  %v572 = vunpack.c.l.b16 %v166
  %v573 = vunpack.c.l.b16 %v167
  %v574 = vunpack.c.l.b16 %v168
  %v575 = vunpack.c.l.b16 %v169
  %v576 = vunpack.c.l.b16 %v170
  %v577 = vunpack.c.l.b16 %v171
  %v578 = vunpack.c.l.b16 %v172
  %v579 = vunpack.c.l.b16 %v173
  %v580 = vunpack.c.l.b16 %v174
  %v581 = vunpack.c.l.b16 %v175
  %v582 = vunpack.c.l.b16 %v176
  %v583 = vunpack.c.l.b16 %v177
  %v584 = vunpack.c.l.b16 %v178
  %v585 = vunpack.c.l.b16 %v179
  %v586 = vunpack.c.l.b16 %v180
  %v587 = vunpack.c.l.b16 %v181
  %v588 = vunpack.c.l.b16 %v182
  %v589 = vunpack.c.l.b16 %v183
  %v590 = vunpack.c.l.b16 %v184
  %v591 = vunpack.c.l.b16 %v185
  %v592 = vunpack.c.l.b16 %v186
  %v593 = vunpack.c.l.b16 %v187
  %v594 = vunpack.c.l.b16 %v188
  %v595 = vunpack.c.l.b16 %v189
  %v596 = vunpack.c.l.b16 %v190
  %v597 = vunpack.c.l.b16 %v191
  %v598 = vunpack.c.l.b16 %v192
  %v599 = vunpack.c.l.b16 %v193
  %v600 = vunpack.c.l.b16 %v194
  %v601 = vunpack.c.l.b16 %v195
  %v602 = vunpack.c.l.b16 %v196
  %v603 = vunpack.c.l.b16 %v197
  %v604 = vunpack.c.l.b16 %v198
  %v605 = vunpack.c.l.b16 %v199
  %v606 = vunpack.c.l.b16 %v200
  %v607 = vunpack.c.l.b16 %v201
  %v608 = vunpack.c.l.b16 %v202
  %v609 = vunpack.c.l.b16 %v203
  %v610 = vunpack.c.l.b16 %v204
  %v611 = vunpack.c.l.b16 %v205
  %v612 = vunpack.c.l.b16 %v206
  %v613 = vunpack.c.l.b16 %v207
  %v614 = vunpack.c.l.b16 %v208
  %v615 = vunpack.c.l.b16 %v209
  %v616 = vunpack.c.l.b16 %v210
  %v617 = vunpack.c.l.b16 %v211
  %v618 = vunpack.c.l.b16 %v212
  %v619 = vunpack.c.l.b16 %v213
  %v620 = vunpack.c.l.b16 %v214
  %v621 = vunpack.c.l.b16 %v215
  %v622 = vunpack.c.l.b16 %v216
  %v623 = vunpack.c.l.b16 %v217
  %v624 = vunpack.c.l.b16 %v218
  %v625 = vunpack.c.l.b16 %v219
  %v626 = vunpack.c.l.b16 %v220
  %v627 = vunpack.c.l.b16 %v221
  %v628 = vunpack.c.l.b16 %v222
  %v629 = vunpack.c.l.b16 %v223
  %v630 = vunpack.c.l.b16 %v224
  %v631 = vunpack.c.l.b16 %v225
  %v632 = vunpack.c.l.b16 %v226
  %v633 = vunpack.c.l.b16 %v227
  %v634 = vunpack.c.l.b16 %v228
  %v635 = vunpack.c.l.b16 %v229
  %v636 = vunpack.c.l.b16 %v230
  %v637 = vunpack.c.l.b16 %v231
  %v638 = vunpack.c.l.b16 %v232
  %v639 = vunpack.c.l.b16 %v233
  %v640 = vunpack.c.l.b16 %v234
  %v641 = vunpack.c.l.b16 %v235
  %v642 = vunpack.c.l.b16 %v236
  %v643 = vunpack.c.l.b16 %v237
  %v644 = vunpack.c.l.b16 %v238
  %v645 = vunpack.c.l.b16 %v239
  %v646 = vunpack.c.l.b16 %v240
  %v647 = vunpack.c.l.b16 %v241
  %v648 = vunpack.c.l.b16 %v242
  %v649 = vunpack.c.l.b16 %v243
  %v650 = vunpack.c.l.b16 %v244
  %v651 = vunpack.c.l.b16 %v245
  %v652 = vunpack.c.l.b16 %v246
  %v653 = vunpack.c.l.b16 %v247
  %v654 = vunpack.c.l.b16 %v248
  %v655 = vunpack.c.l.b16 %v249
  %v656 = vunpack.c.l.b16 %v250
  %v657 = vunpack.c.l.b16 %v251
  %v658 = vunpack.c.l.b16 %v252
  %v659 = vunpack.c.l.b16 %v253
  %v660 = vunpack.c.l.b16 %v254
  %v661 = vunpack.c.l.b16 %v255
  %v662 = vunpack.c.l.b16 %v256
  %v663 = vunpack.c.l.b16 %v257
  %v664 = vunpack.c.l.b16 %v258
  %v665 = vunpack.c.l.b16 %v259
  %v666 = vunpack.c.l.b16 %v260
  %v667 = vunpack.c.l.b16 %v261
  %v668 = vunpack.c.l.b16 %v262
  %v669 = vunpack.c.l.b16 %v263
  %v670 = vunpack.c.l.b16 %v264
  %v671 = vunpack.c.l.b16 %v265
  %v672 = vunpack.c.l.b16 %v266
  %v673 = vunpack.c.l.b16 %v267
  %v674 = vunpack.c.l.b16 %v268
  %v675 = vunpack.c.l.b16 %v269
  %v676 = vunpack.c.l.b16 %v270
  %v677 = vunpack.c.l.b16 %v271
  %v678 = vunpack.c.l.b16 %v272
  %v679 = vunpack.c.l.b16 %v273
  %v680 = vunpack.c.l.b16 %v274
  %v681 = vunpack.c.l.b16 %v275
  %v682 = vunpack.c.l.b16 %v276
  %v683 = vunpack.c.l.b16 %v277
  %v684 = vunpack.c.l.b16 %v278
  %v685 = vunpack.c.l.b16 %v279
  %v686 = vunpack.c.l.b16 %v280
  %v687 = vunpack.c.l.b16 %v281
  %v688 = vunpack.c.l.b16 %v282
  %v689 = vunpack.c.l.b16 %v283
  %v690 = vunpack.c.l.b16 %v284
  %v691 = vunpack.c.l.b16 %v285
  %v692 = vunpack.c.l.b16 %v286
  %v693 = vunpack.c.l.b16 %v287
  %v694 = vunpack.c.l.b16 %v288
  %v695 = vunpack.c.l.b16 %v289
  %v696 = vunpack.c.l.b16 %v290
  %v697 = vunpack.c.l.b16 %v291
  %v698 = vunpack.c.l.b16 %v292
  %v699 = vpack.c.b16 %v567, %v566
  %v700 = vpack.c.b16 %v569, %v568
  %v701 = vpack.c.b16 %v571, %v570
  %v702 = vpack.c.b16 %v573, %v572
  %v703 = vpack.c.b16 %v575, %v574
  %v704 = vpack.c.b16 %v577, %v576
  %v705 = vpack.c.b16 %v579, %v578
  %v706 = vpack.c.b16 %v581, %v580
  %v707 = vpack.c.b16 %v583, %v582
  %v708 = vpack.c.b16 %v585, %v584
  %v709 = vpack.c.b16 %v587, %v586
  %v710 = vpack.c.b16 %v589, %v588
  %v711 = vpack.c.b16 %v591, %v590
  %v712 = vpack.c.b16 %v593, %v592
  %v713 = vpack.c.b16 %v595, %v594
  %v714 = vpack.c.b16 %v597, %v596
  %v715 = vpack.c.b16 %v599, %v598
  %v716 = vpack.c.b16 %v601, %v600
  %v717 = vpack.c.b16 %v603, %v602
  %v718 = vpack.c.b16 %v605, %v604
  %v719 = vpack.c.b16 %v607, %v606
  %v720 = vpack.c.b16 %v609, %v608
  %v721 = vpack.c.b16 %v611, %v610
  %v722 = vpack.c.b16 %v613, %v612
  %v723 = vpack.c.b16 %v615, %v614
  %v724 = vpack.c.b16 %v617, %v616
  %v725 = vpack.c.b16 %v619, %v618
  %v726 = vpack.c.b16 %v621, %v620
  %v727 = vpack.c.b16 %v623, %v622
  %v728 = vpack.c.b16 %v625, %v624
  %v729 = vpack.c.b16 %v627, %v626
  %v730 = vpack.c.b16 %v629, %v628
  %v731 = vpack.c.b16 %v631, %v630
  %v732 = vpack.c.b16 %v633, %v632
  %v733 = vpack.c.b16 %v635, %v634
  %v734 = vpack.c.b16 %v637, %v636
  %v735 = vpack.c.b16 %v639, %v638
  %v736 = vpack.c.b16 %v641, %v640
  %v737 = vpack.c.b16 %v643, %v642
  %v738 = vpack.c.b16 %v645, %v644
  %v739 = vpack.c.b16 %v647, %v646
  %v740 = vpack.c.b16 %v649, %v648
  %v741 = vpack.c.b16 %v651, %v650
  %v742 = vpack.c.b16 %v653, %v652
  %v743 = vpack.c.b16 %v655, %v654
  %v744 = vpack.c.b16 %v657, %v656
  %v745 = vpack.c.b16 %v659, %v658
  %v746 = vpack.c.b16 %v661, %v660
  %v747 = vpack.c.b16 %v663, %v662
  %v748 = vpack.c.b16 %v665, %v664
  %v749 = vpack.c.b16 %v667, %v666
  %v750 = vpack.c.b16 %v669, %v668
  %v751 = vpack.c.b16 %v671, %v670
  %v752 = vpack.c.b16 %v673, %v672
  %v753 = vpack.c.b16 %v675, %v674
  %v754 = vpack.c.b16 %v677, %v676
  %v755 = vpack.c.b16 %v679, %v678
  %v756 = vpack.c.b16 %v681, %v680
  %v757 = vpack.c.b16 %v683, %v682
  %v758 = vpack.c.b16 %v685, %v684
  %v759 = vpack.c.b16 %v687, %v686
  %v760 = vpack.c.b16 %v689, %v688
  %v761 = vpack.c.b16 %v691, %v690
  %v762 = vpack.c.b16 %v693, %v692
  %v763 = vpack.c.b16 %v695, %v694
  %v764 = vpack.c.b16 %v697, %v696
  %v765 = vpack.c.b16 %v698, %v698
  %v773 = vunpack.c.l.b16 %v426
  %v774 = vunpack.c.l.b16 %v427
  %v775 = vunpack.c.l.b16 %v428
  %v776 = vunpack.c.l.b16 %v429
  %v777 = vunpack.c.l.b16 %v430
  %v778 = vunpack.c.l.b16 %v431
  %v779 = vunpack.c.l.b16 %v432
  %v780 = vpack.c.b16 %v774, %v773
  %v781 = vpack.c.b16 %v776, %v775
  %v782 = vpack.c.b16 %v778, %v777
  %v783 = vpack.c.b16 %v779, %v779
  %vm787 = vcmask 400384
  %v789 = vsel %vm787, %v699, 0
  %v792 = vsel %vm787, %v700, 0
  %v795 = vsel %vm787, %v701, 0
  %v798 = vsel %vm787, %v702, 0
  %v801 = vsel %vm787, %v703, 0
  %v804 = vsel %vm787, %v704, 0
  %v807 = vsel %vm787, %v705, 0
  %v810 = vsel %vm787, %v706, 0
  %v813 = vsel %vm787, %v707, 0
  %v816 = vsel %vm787, %v708, 0
  %v819 = vsel %vm787, %v709, 0
  %v822 = vsel %vm787, %v710, 0
  %v825 = vsel %vm787, %v711, 0
  %v828 = vsel %vm787, %v712, 0
  %v831 = vsel %vm787, %v713, 0
  %v834 = vsel %vm787, %v714, 0
  %v837 = vsel %vm787, %v715, 0
  %v840 = vsel %vm787, %v716, 0
  %v843 = vsel %vm787, %v717, 0
  %v846 = vsel %vm787, %v718, 0
  %v849 = vsel %vm787, %v719, 0
  %v852 = vsel %vm787, %v720, 0
  %v855 = vsel %vm787, %v721, 0
  %v858 = vsel %vm787, %v722, 0
  %v861 = vsel %vm787, %v723, 0
  %v864 = vsel %vm787, %v724, 0
  %v867 = vsel %vm787, %v725, 0
  %v870 = vsel %vm787, %v726, 0
  %v873 = vsel %vm787, %v727, 0
  %v876 = vsel %vm787, %v728, 0
  %v879 = vsel %vm787, %v729, 0
  %v882 = vsel %vm787, %v730, 0
  %v885 = vsel %vm787, %v731, 0
  %v888 = vsel %vm787, %v732, 0
  %v891 = vsel %vm787, %v733, 0
  %v894 = vsel %vm787, %v734, 0
  %v897 = vsel %vm787, %v735, 0
  %v900 = vsel %vm787, %v736, 0
  %v903 = vsel %vm787, %v737, 0
  %v906 = vsel %vm787, %v738, 0
  %v909 = vsel %vm787, %v739, 0
  %v912 = vsel %vm787, %v740, 0
  %v915 = vsel %vm787, %v741, 0
  %v918 = vsel %vm787, %v742, 0
  %v921 = vsel %vm787, %v743, 0
  %v924 = vsel %vm787, %v744, 0
  %v927 = vsel %vm787, %v745, 0
  %v930 = vsel %vm787, %v746, 0
  %v933 = vsel %vm787, %v747, 0
  %v936 = vsel %vm787, %v748, 0
  %v939 = vsel %vm787, %v749, 0
  %v942 = vsel %vm787, %v750, 0
  %v945 = vsel %vm787, %v751, 0
  %v948 = vsel %vm787, %v752, 0
  %v951 = vsel %vm787, %v753, 0
  %v954 = vsel %vm787, %v754, 0
  %v957 = vsel %vm787, %v755, 0
  %v960 = vsel %vm787, %v756, 0
  %v963 = vsel %vm787, %v757, 0
  %v966 = vsel %vm787, %v758, 0
  %v969 = vsel %vm787, %v759, 0
  %v972 = vsel %vm787, %v760, 0
  %v975 = vsel %vm787, %v761, 0
  %v978 = vsel %vm787, %v762, 0
  %v981 = vsel %vm787, %v763, 0
  %v984 = vsel %vm787, %v764, 0
  %v987 = vsel %vm787, %v765, 0
  %vm989 = vcmask 1040384
  %v990 = vsel 0, 4294967295, 65535
  %v991 = vsel %vm989, %v990, 0
  %v993 = vand.u32 %v783, %v991
  %995 = vmatprep.subr.bf16.mxu0 0
  %996 = vmatpush1.bf16.msra.mxu0 %v780
  %997 = vmatprep.subr.bf16.mxu0 0
  %998 = vmatpush1.bf16.msra.mxu0 %v781
  %999 = vmatprep.subr.bf16.mxu0 0
  %1000 = vmatpush1.bf16.msra.mxu0 %v782
  %1001 = vmatprep.subr.bf16.mxu0 0
  %1002 = vmatpush1.bf16.msra.mxu0 %v993
  %1003 = vmatprep.subr.bf16.mxu0 0
  %1004 = vmatpush1.bf16.msra.mxu0 0
  %1005 = vmatprep.subr.bf16.mxu0 0
  %1006 = vmatpush1.bf16.msra.mxu0 0
  %1007 = vmatprep.subr.bf16.mxu0 0
  %1008 = vmatpush1.bf16.msra.mxu0 0
  %1009 = vmatprep.subr.bf16.mxu0 0
  %1010 = vmatpush1.bf16.msra.mxu0 0
  %1011 = vmatprep.subr.bf16.mxu0 0
  %1012 = vmatpush1.bf16.msra.mxu0 0
  %1013 = vmatprep.subr.bf16.mxu0 0
  %1014 = vmatpush1.bf16.msra.mxu0 0
  %1015 = vmatprep.subr.bf16.mxu0 0
  %1016 = vmatpush1.bf16.msra.mxu0 0
  %1017 = vmatprep.subr.bf16.mxu0 0
  %1018 = vmatpush1.bf16.msra.mxu0 0
  %1019 = vmatprep.subr.bf16.mxu0 0
  %1020 = vmatpush1.bf16.msra.mxu0 0
  %1021 = vmatprep.subr.bf16.mxu0 0
  %1022 = vmatpush1.bf16.msra.mxu0 0
  %1023 = vmatprep.subr.bf16.mxu0 0
  %1024 = vmatpush1.bf16.msra.mxu0 0
  %1025 = vmatprep.subr.bf16.mxu0 0
  %1026 = vmatpush1.bf16.msra.mxu0 0
  %1027 = vmatprep.mubr.bf16.mxu0 0
  %1028 = vmatmul.mubr.bf16.gmra.mrb[0].mxu0 %v789
  %v1029 = vpop.f32.mrb[0].mxu0
  %v1030 = vadd.f32 0.0, %v1029
  %v1031 = vpop.f32.mrb[0].mxu0
  %v1032 = vpop.f32.mrb[0].mxu0
  %v1033 = vadd.f32 0.0, %v1032
  %v1034 = vpop.f32.mrb[0].mxu0
  %1035 = vmatprep.mubr.bf16.mxu0 0
  %1036 = vmatmul.mubr.bf16.gmra.mrb[0].mxu0 %v792
  %v1037 = vpop.f32.mrb[0].mxu0
  %v1038 = vadd.f32 0.0, %v1037
  %v1039 = vpop.f32.mrb[0].mxu0
  %v1040 = vpop.f32.mrb[0].mxu0
  %v1041 = vadd.f32 0.0, %v1040
  %v1042 = vpop.f32.mrb[0].mxu0
  %1043 = vmatprep.mubr.bf16.mxu0 0
  %1044 = vmatmul.mubr.bf16.gmra.mrb[0].mxu0 %v795
  %v1045 = vpop.f32.mrb[0].mxu0
  %v1046 = vadd.f32 0.0, %v1045
  %v1047 = vpop.f32.mrb[0].mxu0
  %v1048 = vpop.f32.mrb[0].mxu0
  %v1049 = vadd.f32 0.0, %v1048
  %v1050 = vpop.f32.mrb[0].mxu0
  %1051 = vmatprep.mubr.bf16.mxu0 0
  %1052 = vmatmul.mubr.bf16.gmra.mrb[0].mxu0 %v798
  %v1053 = vpop.f32.mrb[0].mxu0
  %v1054 = vadd.f32 0.0, %v1053
  %v1055 = vpop.f32.mrb[0].mxu0
  %v1056 = vpop.f32.mrb[0].mxu0
  %v1057 = vadd.f32 0.0, %v1056
  %v1058 = vpop.f32.mrb[0].mxu0
  %1059 = vmatprep.mubr.bf16.mxu0 0
  %1060 = vmatmul.mubr.bf16.gmra.mrb[0].mxu0 %v801
  %v1061 = vpop.f32.mrb[0].mxu0
  %v1062 = vadd.f32 0.0, %v1061
  %v1063 = vpop.f32.mrb[0].mxu0
  %v1064 = vpop.f32.mrb[0].mxu0
  %v1065 = vadd.f32 0.0, %v1064
  %v1066 = vpop.f32.mrb[0].mxu0
  %1067 = vmatprep.mubr.bf16.mxu0 0
  %1068 = vmatmul.mubr.bf16.gmra.mrb[0].mxu0 %v804
  %v1069 = vpop.f32.mrb[0].mxu0
  %v1070 = vadd.f32 0.0, %v1069
  %v1071 = vpop.f32.mrb[0].mxu0
  %v1072 = vpop.f32.mrb[0].mxu0
  %v1073 = vadd.f32 0.0, %v1072
  %v1074 = vpop.f32.mrb[0].mxu0
  %1075 = vmatprep.mubr.bf16.mxu0 0
  %1076 = vmatmul.mubr.bf16.gmra.mrb[0].mxu0 %v807
  %v1077 = vpop.f32.mrb[0].mxu0
  %v1078 = vadd.f32 0.0, %v1077
  %v1079 = vpop.f32.mrb[0].mxu0
  %v1080 = vpop.f32.mrb[0].mxu0
  %v1081 = vadd.f32 0.0, %v1080
  %v1082 = vpop.f32.mrb[0].mxu0
  %1083 = vmatprep.mubr.bf16.mxu0 0
  %1084 = vmatmul.mubr.bf16.gmra.mrb[0].mxu0 %v810
  %v1085 = vpop.f32.mrb[0].mxu0
  %v1086 = vadd.f32 0.0, %v1085
  %v1087 = vpop.f32.mrb[0].mxu0
  %v1088 = vpop.f32.mrb[0].mxu0
  %v1089 = vadd.f32 0.0, %v1088
  %v1090 = vpop.f32.mrb[0].mxu0
  %1091 = vmatprep.mubr.bf16.mxu0 0
  %1092 = vmatmul.mubr.bf16.gmra.mrb[0].mxu0 %v813
  %v1093 = vpop.f32.mrb[0].mxu0
  %v1094 = vadd.f32 0.0, %v1093
  %v1095 = vpop.f32.mrb[0].mxu0
  %v1096 = vpop.f32.mrb[0].mxu0
  %v1097 = vadd.f32 0.0, %v1096
  %v1098 = vpop.f32.mrb[0].mxu0
  %1099 = vmatprep.mubr.bf16.mxu0 0
  %1100 = vmatmul.mubr.bf16.gmra.mrb[0].mxu0 %v816
  %v1101 = vpop.f32.mrb[0].mxu0
  %v1102 = vadd.f32 0.0, %v1101
  %v1103 = vpop.f32.mrb[0].mxu0
  %v1104 = vpop.f32.mrb[0].mxu0
  %v1105 = vadd.f32 0.0, %v1104
  %v1106 = vpop.f32.mrb[0].mxu0
  %1107 = vmatprep.mubr.bf16.mxu0 0
  %1108 = vmatmul.mubr.bf16.gmra.mrb[0].mxu0 %v819
  %v1109 = vpop.f32.mrb[0].mxu0
  %v1110 = vadd.f32 0.0, %v1109
  %v1111 = vpop.f32.mrb[0].mxu0
  %v1112 = vpop.f32.mrb[0].mxu0
  %v1113 = vadd.f32 0.0, %v1112
  %v1114 = vpop.f32.mrb[0].mxu0
  %1115 = vmatprep.mubr.bf16.mxu0 0
  %1116 = vmatmul.mubr.bf16.gmra.mrb[0].mxu0 %v822
  %v1117 = vpop.f32.mrb[0].mxu0
  %v1118 = vadd.f32 0.0, %v1117
  %v1119 = vpop.f32.mrb[0].mxu0
  %v1120 = vpop.f32.mrb[0].mxu0
  %v1121 = vadd.f32 0.0, %v1120
  %v1122 = vpop.f32.mrb[0].mxu0
  %1123 = vmatprep.mubr.bf16.mxu0 0
  %1124 = vmatmul.mubr.bf16.gmra.mrb[0].mxu0 %v825
  %v1125 = vpop.f32.mrb[0].mxu0
  %v1126 = vadd.f32 0.0, %v1125
  %v1127 = vpop.f32.mrb[0].mxu0
  %v1128 = vpop.f32.mrb[0].mxu0
  %v1129 = vadd.f32 0.0, %v1128
  %v1130 = vpop.f32.mrb[0].mxu0
  %1131 = vmatprep.mubr.bf16.mxu0 0
  %1132 = vmatmul.mubr.bf16.gmra.mrb[0].mxu0 %v828
  %v1133 = vpop.f32.mrb[0].mxu0
  %v1134 = vadd.f32 0.0, %v1133
  %v1135 = vpop.f32.mrb[0].mxu0
  %v1136 = vpop.f32.mrb[0].mxu0
  %v1137 = vadd.f32 0.0, %v1136
  %v1138 = vpop.f32.mrb[0].mxu0
  %1139 = vmatprep.mubr.bf16.mxu0 0
  %1140 = vmatmul.mubr.bf16.gmra.mrb[0].mxu0 %v831
  %v1141 = vpop.f32.mrb[0].mxu0
  %v1142 = vadd.f32 0.0, %v1141
  %v1143 = vpop.f32.mrb[0].mxu0
  %v1144 = vpop.f32.mrb[0].mxu0
  %v1145 = vadd.f32 0.0, %v1144
  %v1146 = vpop.f32.mrb[0].mxu0
  %1147 = vmatprep.mubr.bf16.mxu0 0
  %1148 = vmatmul.mubr.bf16.gmra.mrb[0].mxu0 %v834
  %v1149 = vpop.f32.mrb[0].mxu0
  %v1150 = vadd.f32 0.0, %v1149
  %v1151 = vpop.f32.mrb[0].mxu0
  %v1152 = vpop.f32.mrb[0].mxu0
  %v1153 = vadd.f32 0.0, %v1152
  %v1154 = vpop.f32.mrb[0].mxu0
  %1155 = vmatprep.mubr.bf16.mxu0 0
  %1156 = vmatmul.mubr.bf16.gmra.mrb[0].mxu0 %v837
  %v1157 = vpop.f32.mrb[0].mxu0
  %v1158 = vadd.f32 0.0, %v1157
  %v1159 = vpop.f32.mrb[0].mxu0
  %v1160 = vpop.f32.mrb[0].mxu0
  %v1161 = vadd.f32 0.0, %v1160
  %v1162 = vpop.f32.mrb[0].mxu0
  %1163 = vmatprep.mubr.bf16.mxu0 0
  %1164 = vmatmul.mubr.bf16.gmra.mrb[0].mxu0 %v840
  %v1165 = vpop.f32.mrb[0].mxu0
  %v1166 = vadd.f32 0.0, %v1165
  %v1167 = vpop.f32.mrb[0].mxu0
  %v1168 = vpop.f32.mrb[0].mxu0
  %v1169 = vadd.f32 0.0, %v1168
  %v1170 = vpop.f32.mrb[0].mxu0
  %1171 = vmatprep.mubr.bf16.mxu0 0
  %1172 = vmatmul.mubr.bf16.gmra.mrb[0].mxu0 %v843
  %v1173 = vpop.f32.mrb[0].mxu0
  %v1174 = vadd.f32 0.0, %v1173
  %v1175 = vpop.f32.mrb[0].mxu0
  %v1176 = vpop.f32.mrb[0].mxu0
  %v1177 = vadd.f32 0.0, %v1176
  %v1178 = vpop.f32.mrb[0].mxu0
  %1179 = vmatprep.mubr.bf16.mxu0 0
  %1180 = vmatmul.mubr.bf16.gmra.mrb[0].mxu0 %v846
  %v1181 = vpop.f32.mrb[0].mxu0
  %v1182 = vadd.f32 0.0, %v1181
  %v1183 = vpop.f32.mrb[0].mxu0
  %v1184 = vpop.f32.mrb[0].mxu0
  %v1185 = vadd.f32 0.0, %v1184
  %v1186 = vpop.f32.mrb[0].mxu0
  %1187 = vmatprep.mubr.bf16.mxu0 0
  %1188 = vmatmul.mubr.bf16.gmra.mrb[0].mxu0 %v849
  %v1189 = vpop.f32.mrb[0].mxu0
  %v1190 = vadd.f32 0.0, %v1189
  %v1191 = vpop.f32.mrb[0].mxu0
  %v1192 = vpop.f32.mrb[0].mxu0
  %v1193 = vadd.f32 0.0, %v1192
  %v1194 = vpop.f32.mrb[0].mxu0
  %1195 = vmatprep.mubr.bf16.mxu0 0
  %1196 = vmatmul.mubr.bf16.gmra.mrb[0].mxu0 %v852
  %v1197 = vpop.f32.mrb[0].mxu0
  %v1198 = vadd.f32 0.0, %v1197
  %v1199 = vpop.f32.mrb[0].mxu0
  %v1200 = vpop.f32.mrb[0].mxu0
  %v1201 = vadd.f32 0.0, %v1200
  %v1202 = vpop.f32.mrb[0].mxu0
  %1203 = vmatprep.mubr.bf16.mxu0 0
  %1204 = vmatmul.mubr.bf16.gmra.mrb[0].mxu0 %v855
  %v1205 = vpop.f32.mrb[0].mxu0
  %v1206 = vadd.f32 0.0, %v1205
  %v1207 = vpop.f32.mrb[0].mxu0
  %v1208 = vpop.f32.mrb[0].mxu0
  %v1209 = vadd.f32 0.0, %v1208
  %v1210 = vpop.f32.mrb[0].mxu0
  %1211 = vmatprep.mubr.bf16.mxu0 0
  %1212 = vmatmul.mubr.bf16.gmra.mrb[0].mxu0 %v858
  %v1213 = vpop.f32.mrb[0].mxu0
  %v1214 = vadd.f32 0.0, %v1213
  %v1215 = vpop.f32.mrb[0].mxu0
  %v1216 = vpop.f32.mrb[0].mxu0
  %v1217 = vadd.f32 0.0, %v1216
  %v1218 = vpop.f32.mrb[0].mxu0
  %1219 = vmatprep.mubr.bf16.mxu0 0
  %1220 = vmatmul.mubr.bf16.gmra.mrb[0].mxu0 %v861
  %v1221 = vpop.f32.mrb[0].mxu0
  %v1222 = vadd.f32 0.0, %v1221
  %v1223 = vpop.f32.mrb[0].mxu0
  %v1224 = vpop.f32.mrb[0].mxu0
  %v1225 = vadd.f32 0.0, %v1224
  %v1226 = vpop.f32.mrb[0].mxu0
  %1227 = vmatprep.mubr.bf16.mxu0 0
  %1228 = vmatmul.mubr.bf16.gmra.mrb[0].mxu0 %v864
  %v1229 = vpop.f32.mrb[0].mxu0
  %v1230 = vadd.f32 0.0, %v1229
  %v1231 = vpop.f32.mrb[0].mxu0
  %v1232 = vpop.f32.mrb[0].mxu0
  %v1233 = vadd.f32 0.0, %v1232
  %v1234 = vpop.f32.mrb[0].mxu0
  %1235 = vmatprep.mubr.bf16.mxu0 0
  %1236 = vmatmul.mubr.bf16.gmra.mrb[0].mxu0 %v867
  %v1237 = vpop.f32.mrb[0].mxu0
  %v1238 = vadd.f32 0.0, %v1237
  %v1239 = vpop.f32.mrb[0].mxu0
  %v1240 = vpop.f32.mrb[0].mxu0
  %v1241 = vadd.f32 0.0, %v1240
  %v1242 = vpop.f32.mrb[0].mxu0
  %1243 = vmatprep.mubr.bf16.mxu0 0
  %1244 = vmatmul.mubr.bf16.gmra.mrb[0].mxu0 %v870
  %v1245 = vpop.f32.mrb[0].mxu0
  %v1246 = vadd.f32 0.0, %v1245
  %v1247 = vpop.f32.mrb[0].mxu0
  %v1248 = vpop.f32.mrb[0].mxu0
  %v1249 = vadd.f32 0.0, %v1248
  %v1250 = vpop.f32.mrb[0].mxu0
  %1251 = vmatprep.mubr.bf16.mxu0 0
  %1252 = vmatmul.mubr.bf16.gmra.mrb[0].mxu0 %v873
  %v1253 = vpop.f32.mrb[0].mxu0
  %v1254 = vadd.f32 0.0, %v1253
  %v1255 = vpop.f32.mrb[0].mxu0
  %v1256 = vpop.f32.mrb[0].mxu0
  %v1257 = vadd.f32 0.0, %v1256
  %v1258 = vpop.f32.mrb[0].mxu0
  %1259 = vmatprep.mubr.bf16.mxu0 0
  %1260 = vmatmul.mubr.bf16.gmra.mrb[0].mxu0 %v876
  %v1261 = vpop.f32.mrb[0].mxu0
  %v1262 = vadd.f32 0.0, %v1261
  %v1263 = vpop.f32.mrb[0].mxu0
  %v1264 = vpop.f32.mrb[0].mxu0
  %v1265 = vadd.f32 0.0, %v1264
  %v1266 = vpop.f32.mrb[0].mxu0
  %1267 = vmatprep.mubr.bf16.mxu0 0
  %1268 = vmatmul.mubr.bf16.gmra.mrb[0].mxu0 %v879
  %v1269 = vpop.f32.mrb[0].mxu0
  %v1270 = vadd.f32 0.0, %v1269
  %v1271 = vpop.f32.mrb[0].mxu0
  %v1272 = vpop.f32.mrb[0].mxu0
  %v1273 = vadd.f32 0.0, %v1272
  %v1274 = vpop.f32.mrb[0].mxu0
  %1275 = vmatprep.mubr.bf16.mxu0 0
  %1276 = vmatmul.mubr.bf16.gmra.mrb[0].mxu0 %v882
  %v1277 = vpop.f32.mrb[0].mxu0
  %v1278 = vadd.f32 0.0, %v1277
  %v1279 = vpop.f32.mrb[0].mxu0
  %v1280 = vpop.f32.mrb[0].mxu0
  %v1281 = vadd.f32 0.0, %v1280
  %v1282 = vpop.f32.mrb[0].mxu0
  %1283 = vmatprep.mubr.bf16.mxu0 0
  %1284 = vmatmul.mubr.bf16.gmra.mrb[0].mxu0 %v885
  %v1285 = vpop.f32.mrb[0].mxu0
  %v1286 = vadd.f32 0.0, %v1285
  %v1287 = vpop.f32.mrb[0].mxu0
  %v1288 = vpop.f32.mrb[0].mxu0
  %v1289 = vadd.f32 0.0, %v1288
  %v1290 = vpop.f32.mrb[0].mxu0
  %1291 = vmatprep.mubr.bf16.mxu0 0
  %1292 = vmatmul.mubr.bf16.gmra.mrb[0].mxu0 %v888
  %v1293 = vpop.f32.mrb[0].mxu0
  %v1294 = vadd.f32 0.0, %v1293
  %v1295 = vpop.f32.mrb[0].mxu0
  %v1296 = vpop.f32.mrb[0].mxu0
  %v1297 = vadd.f32 0.0, %v1296
  %v1298 = vpop.f32.mrb[0].mxu0
  %1299 = vmatprep.mubr.bf16.mxu0 0
  %1300 = vmatmul.mubr.bf16.gmra.mrb[0].mxu0 %v891
  %v1301 = vpop.f32.mrb[0].mxu0
  %v1302 = vadd.f32 0.0, %v1301
  %v1303 = vpop.f32.mrb[0].mxu0
  %v1304 = vpop.f32.mrb[0].mxu0
  %v1305 = vadd.f32 0.0, %v1304
  %v1306 = vpop.f32.mrb[0].mxu0
  %1307 = vmatprep.mubr.bf16.mxu0 0
  %1308 = vmatmul.mubr.bf16.gmra.mrb[0].mxu0 %v894
  %v1309 = vpop.f32.mrb[0].mxu0
  %v1310 = vadd.f32 0.0, %v1309
  %v1311 = vpop.f32.mrb[0].mxu0
  %v1312 = vpop.f32.mrb[0].mxu0
  %v1313 = vadd.f32 0.0, %v1312
  %v1314 = vpop.f32.mrb[0].mxu0
  %1315 = vmatprep.mubr.bf16.mxu0 0
  %1316 = vmatmul.mubr.bf16.gmra.mrb[0].mxu0 %v897
  %v1317 = vpop.f32.mrb[0].mxu0
  %v1318 = vadd.f32 0.0, %v1317
  %v1319 = vpop.f32.mrb[0].mxu0
  %v1320 = vpop.f32.mrb[0].mxu0
  %v1321 = vadd.f32 0.0, %v1320
  %v1322 = vpop.f32.mrb[0].mxu0
  %1323 = vmatprep.mubr.bf16.mxu0 0
  %1324 = vmatmul.mubr.bf16.gmra.mrb[0].mxu0 %v900
  %v1325 = vpop.f32.mrb[0].mxu0
  %v1326 = vadd.f32 0.0, %v1325
  %v1327 = vpop.f32.mrb[0].mxu0
  %v1328 = vpop.f32.mrb[0].mxu0
  %v1329 = vadd.f32 0.0, %v1328
  %v1330 = vpop.f32.mrb[0].mxu0
  %1331 = vmatprep.mubr.bf16.mxu0 0
  %1332 = vmatmul.mubr.bf16.gmra.mrb[0].mxu0 %v903
  %v1333 = vpop.f32.mrb[0].mxu0
  %v1334 = vadd.f32 0.0, %v1333
  %v1335 = vpop.f32.mrb[0].mxu0
  %v1336 = vpop.f32.mrb[0].mxu0
  %v1337 = vadd.f32 0.0, %v1336
  %v1338 = vpop.f32.mrb[0].mxu0
  %1339 = vmatprep.mubr.bf16.mxu0 0
  %1340 = vmatmul.mubr.bf16.gmra.mrb[0].mxu0 %v906
  %v1341 = vpop.f32.mrb[0].mxu0
  %v1342 = vadd.f32 0.0, %v1341
  %v1343 = vpop.f32.mrb[0].mxu0
  %v1344 = vpop.f32.mrb[0].mxu0
  %v1345 = vadd.f32 0.0, %v1344
  %v1346 = vpop.f32.mrb[0].mxu0
  %1347 = vmatprep.mubr.bf16.mxu0 0
  %1348 = vmatmul.mubr.bf16.gmra.mrb[0].mxu0 %v909
  %v1349 = vpop.f32.mrb[0].mxu0
  %v1350 = vadd.f32 0.0, %v1349
  %v1351 = vpop.f32.mrb[0].mxu0
  %v1352 = vpop.f32.mrb[0].mxu0
  %v1353 = vadd.f32 0.0, %v1352
  %v1354 = vpop.f32.mrb[0].mxu0
  %1355 = vmatprep.mubr.bf16.mxu0 0
  %1356 = vmatmul.mubr.bf16.gmra.mrb[0].mxu0 %v912
  %v1357 = vpop.f32.mrb[0].mxu0
  %v1358 = vadd.f32 0.0, %v1357
  %v1359 = vpop.f32.mrb[0].mxu0
  %v1360 = vpop.f32.mrb[0].mxu0
  %v1361 = vadd.f32 0.0, %v1360
  %v1362 = vpop.f32.mrb[0].mxu0
  %1363 = vmatprep.mubr.bf16.mxu0 0
  %1364 = vmatmul.mubr.bf16.gmra.mrb[0].mxu0 %v915
  %v1365 = vpop.f32.mrb[0].mxu0
  %v1366 = vadd.f32 0.0, %v1365
  %v1367 = vpop.f32.mrb[0].mxu0
  %v1368 = vpop.f32.mrb[0].mxu0
  %v1369 = vadd.f32 0.0, %v1368
  %v1370 = vpop.f32.mrb[0].mxu0
  %1371 = vmatprep.mubr.bf16.mxu0 0
  %1372 = vmatmul.mubr.bf16.gmra.mrb[0].mxu0 %v918
  %v1373 = vpop.f32.mrb[0].mxu0
  %v1374 = vadd.f32 0.0, %v1373
  %v1375 = vpop.f32.mrb[0].mxu0
  %v1376 = vpop.f32.mrb[0].mxu0
  %v1377 = vadd.f32 0.0, %v1376
  %v1378 = vpop.f32.mrb[0].mxu0
  %1379 = vmatprep.mubr.bf16.mxu0 0
  %1380 = vmatmul.mubr.bf16.gmra.mrb[0].mxu0 %v921
  %v1381 = vpop.f32.mrb[0].mxu0
  %v1382 = vadd.f32 0.0, %v1381
  %v1383 = vpop.f32.mrb[0].mxu0
  %v1384 = vpop.f32.mrb[0].mxu0
  %v1385 = vadd.f32 0.0, %v1384
  %v1386 = vpop.f32.mrb[0].mxu0
  %1387 = vmatprep.mubr.bf16.mxu0 0
  %1388 = vmatmul.mubr.bf16.gmra.mrb[0].mxu0 %v924
  %v1389 = vpop.f32.mrb[0].mxu0
  %v1390 = vadd.f32 0.0, %v1389
  %v1391 = vpop.f32.mrb[0].mxu0
  %v1392 = vpop.f32.mrb[0].mxu0
  %v1393 = vadd.f32 0.0, %v1392
  %v1394 = vpop.f32.mrb[0].mxu0
  %1395 = vmatprep.mubr.bf16.mxu0 0
  %1396 = vmatmul.mubr.bf16.gmra.mrb[0].mxu0 %v927
  %v1397 = vpop.f32.mrb[0].mxu0
  %v1398 = vadd.f32 0.0, %v1397
  %v1399 = vpop.f32.mrb[0].mxu0
  %v1400 = vpop.f32.mrb[0].mxu0
  %v1401 = vadd.f32 0.0, %v1400
  %v1402 = vpop.f32.mrb[0].mxu0
  %1403 = vmatprep.mubr.bf16.mxu0 0
  %1404 = vmatmul.mubr.bf16.gmra.mrb[0].mxu0 %v930
  %v1405 = vpop.f32.mrb[0].mxu0
  %v1406 = vadd.f32 0.0, %v1405
  %v1407 = vpop.f32.mrb[0].mxu0
  %v1408 = vpop.f32.mrb[0].mxu0
  %v1409 = vadd.f32 0.0, %v1408
  %v1410 = vpop.f32.mrb[0].mxu0
  %1411 = vmatprep.mubr.bf16.mxu0 0
  %1412 = vmatmul.mubr.bf16.gmra.mrb[0].mxu0 %v933
  %v1413 = vpop.f32.mrb[0].mxu0
  %v1414 = vadd.f32 0.0, %v1413
  %v1415 = vpop.f32.mrb[0].mxu0
  %v1416 = vpop.f32.mrb[0].mxu0
  %v1417 = vadd.f32 0.0, %v1416
  %v1418 = vpop.f32.mrb[0].mxu0
  %1419 = vmatprep.mubr.bf16.mxu0 0
  %1420 = vmatmul.mubr.bf16.gmra.mrb[0].mxu0 %v936
  %v1421 = vpop.f32.mrb[0].mxu0
  %v1422 = vadd.f32 0.0, %v1421
  %v1423 = vpop.f32.mrb[0].mxu0
  %v1424 = vpop.f32.mrb[0].mxu0
  %v1425 = vadd.f32 0.0, %v1424
  %v1426 = vpop.f32.mrb[0].mxu0
  %1427 = vmatprep.mubr.bf16.mxu0 0
  %1428 = vmatmul.mubr.bf16.gmra.mrb[0].mxu0 %v939
  %v1429 = vpop.f32.mrb[0].mxu0
  %v1430 = vadd.f32 0.0, %v1429
  %v1431 = vpop.f32.mrb[0].mxu0
  %v1432 = vpop.f32.mrb[0].mxu0
  %v1433 = vadd.f32 0.0, %v1432
  %v1434 = vpop.f32.mrb[0].mxu0
  %1435 = vmatprep.mubr.bf16.mxu0 0
  %1436 = vmatmul.mubr.bf16.gmra.mrb[0].mxu0 %v942
  %v1437 = vpop.f32.mrb[0].mxu0
  %v1438 = vadd.f32 0.0, %v1437
  %v1439 = vpop.f32.mrb[0].mxu0
  %v1440 = vpop.f32.mrb[0].mxu0
  %v1441 = vadd.f32 0.0, %v1440
  %v1442 = vpop.f32.mrb[0].mxu0
  %1443 = vmatprep.mubr.bf16.mxu0 0
  %1444 = vmatmul.mubr.bf16.gmra.mrb[0].mxu0 %v945
  %v1445 = vpop.f32.mrb[0].mxu0
  %v1446 = vadd.f32 0.0, %v1445
  %v1447 = vpop.f32.mrb[0].mxu0
  %v1448 = vpop.f32.mrb[0].mxu0
  %v1449 = vadd.f32 0.0, %v1448
  %v1450 = vpop.f32.mrb[0].mxu0
  %1451 = vmatprep.mubr.bf16.mxu0 0
  %1452 = vmatmul.mubr.bf16.gmra.mrb[0].mxu0 %v948
  %v1453 = vpop.f32.mrb[0].mxu0
  %v1454 = vadd.f32 0.0, %v1453
  %v1455 = vpop.f32.mrb[0].mxu0
  %v1456 = vpop.f32.mrb[0].mxu0
  %v1457 = vadd.f32 0.0, %v1456
  %v1458 = vpop.f32.mrb[0].mxu0
  %1459 = vmatprep.mubr.bf16.mxu0 0
  %1460 = vmatmul.mubr.bf16.gmra.mrb[0].mxu0 %v951
  %v1461 = vpop.f32.mrb[0].mxu0
  %v1462 = vadd.f32 0.0, %v1461
  %v1463 = vpop.f32.mrb[0].mxu0
  %v1464 = vpop.f32.mrb[0].mxu0
  %v1465 = vadd.f32 0.0, %v1464
  %v1466 = vpop.f32.mrb[0].mxu0
  %1467 = vmatprep.mubr.bf16.mxu0 0
  %1468 = vmatmul.mubr.bf16.gmra.mrb[0].mxu0 %v954
  %v1469 = vpop.f32.mrb[0].mxu0
  %v1470 = vadd.f32 0.0, %v1469
  %v1471 = vpop.f32.mrb[0].mxu0
  %v1472 = vpop.f32.mrb[0].mxu0
  %v1473 = vadd.f32 0.0, %v1472
  %v1474 = vpop.f32.mrb[0].mxu0
  %1475 = vmatprep.mubr.bf16.mxu0 0
  %1476 = vmatmul.mubr.bf16.gmra.mrb[0].mxu0 %v957
  %v1477 = vpop.f32.mrb[0].mxu0
  %v1478 = vadd.f32 0.0, %v1477
  %v1479 = vpop.f32.mrb[0].mxu0
  %v1480 = vpop.f32.mrb[0].mxu0
  %v1481 = vadd.f32 0.0, %v1480
  %v1482 = vpop.f32.mrb[0].mxu0
  %1483 = vmatprep.mubr.bf16.mxu0 0
  %1484 = vmatmul.mubr.bf16.gmra.mrb[0].mxu0 %v960
  %v1485 = vpop.f32.mrb[0].mxu0
  %v1486 = vadd.f32 0.0, %v1485
  %v1487 = vpop.f32.mrb[0].mxu0
  %v1488 = vpop.f32.mrb[0].mxu0
  %v1489 = vadd.f32 0.0, %v1488
  %v1490 = vpop.f32.mrb[0].mxu0
  %1491 = vmatprep.mubr.bf16.mxu0 0
  %1492 = vmatmul.mubr.bf16.gmra.mrb[0].mxu0 %v963
  %v1493 = vpop.f32.mrb[0].mxu0
  %v1494 = vadd.f32 0.0, %v1493
  %v1495 = vpop.f32.mrb[0].mxu0
  %v1496 = vpop.f32.mrb[0].mxu0
  %v1497 = vadd.f32 0.0, %v1496
  %v1498 = vpop.f32.mrb[0].mxu0
  %1499 = vmatprep.mubr.bf16.mxu0 0
  %1500 = vmatmul.mubr.bf16.gmra.mrb[0].mxu0 %v966
  %v1501 = vpop.f32.mrb[0].mxu0
  %v1502 = vadd.f32 0.0, %v1501
  %v1503 = vpop.f32.mrb[0].mxu0
  %v1504 = vpop.f32.mrb[0].mxu0
  %v1505 = vadd.f32 0.0, %v1504
  %v1506 = vpop.f32.mrb[0].mxu0
  %1507 = vmatprep.mubr.bf16.mxu0 0
  %1508 = vmatmul.mubr.bf16.gmra.mrb[0].mxu0 %v969
  %v1509 = vpop.f32.mrb[0].mxu0
  %v1510 = vadd.f32 0.0, %v1509
  %v1511 = vpop.f32.mrb[0].mxu0
  %v1512 = vpop.f32.mrb[0].mxu0
  %v1513 = vadd.f32 0.0, %v1512
  %v1514 = vpop.f32.mrb[0].mxu0
  %1515 = vmatprep.mubr.bf16.mxu0 0
  %1516 = vmatmul.mubr.bf16.gmra.mrb[0].mxu0 %v972
  %v1517 = vpop.f32.mrb[0].mxu0
  %v1518 = vadd.f32 0.0, %v1517
  %v1519 = vpop.f32.mrb[0].mxu0
  %v1520 = vpop.f32.mrb[0].mxu0
  %v1521 = vadd.f32 0.0, %v1520
  %v1522 = vpop.f32.mrb[0].mxu0
  %1523 = vmatprep.mubr.bf16.mxu0 0
  %1524 = vmatmul.mubr.bf16.gmra.mrb[0].mxu0 %v975
  %v1525 = vpop.f32.mrb[0].mxu0
  %v1526 = vadd.f32 0.0, %v1525
  %v1527 = vpop.f32.mrb[0].mxu0
  %v1528 = vpop.f32.mrb[0].mxu0
  %v1529 = vadd.f32 0.0, %v1528
  %v1530 = vpop.f32.mrb[0].mxu0
  %1531 = vmatprep.mubr.bf16.mxu0 0
  %1532 = vmatmul.mubr.bf16.gmra.mrb[0].mxu0 %v978
  %v1533 = vpop.f32.mrb[0].mxu0
  %v1534 = vadd.f32 0.0, %v1533
  %v1535 = vpop.f32.mrb[0].mxu0
  %v1536 = vpop.f32.mrb[0].mxu0
  %v1537 = vadd.f32 0.0, %v1536
  %v1538 = vpop.f32.mrb[0].mxu0
  %1539 = vmatprep.mubr.bf16.mxu0 0
  %1540 = vmatmul.mubr.bf16.gmra.mrb[0].mxu0 %v981
  %v1541 = vpop.f32.mrb[0].mxu0
  %v1542 = vadd.f32 0.0, %v1541
  %v1543 = vpop.f32.mrb[0].mxu0
  %v1544 = vpop.f32.mrb[0].mxu0
  %v1545 = vadd.f32 0.0, %v1544
  %v1546 = vpop.f32.mrb[0].mxu0
  %1547 = vmatprep.mubr.bf16.mxu0 0
  %1548 = vmatmul.mubr.bf16.gmra.mrb[0].mxu0 %v984
  %v1549 = vpop.f32.mrb[0].mxu0
  %v1550 = vadd.f32 0.0, %v1549
  %v1551 = vpop.f32.mrb[0].mxu0
  %v1552 = vpop.f32.mrb[0].mxu0
  %v1553 = vadd.f32 0.0, %v1552
  %v1554 = vpop.f32.mrb[0].mxu0
  %1555 = vmatprep.mubr.bf16.mxu0 0
  %1556 = vmatmul.mubr.bf16.gmra.mrb[0].mxu0 %v987
  %v1557 = vpop.f32.mrb[0].mxu0
  %v1558 = vadd.f32 0.0, %v1557
  %v1559 = vpop.f32.mrb[0].mxu0
  %v1560 = vpop.f32.mrb[0].mxu0
  %v1561 = vpop.f32.mrb[0].mxu0
  %1562 = vdwg.mxu0
  %v1563 = vadd.f32 %v293, %v1030
  %v1564 = vadd.f32 %v294, %v1033
  %v1565 = vadd.f32 %v295, %v1038
  %v1566 = vadd.f32 %v296, %v1041
  %v1567 = vadd.f32 %v297, %v1046
  %v1568 = vadd.f32 %v298, %v1049
  %v1569 = vadd.f32 %v299, %v1054
  %v1570 = vadd.f32 %v300, %v1057
  %v1571 = vadd.f32 %v301, %v1062
  %v1572 = vadd.f32 %v302, %v1065
  %v1573 = vadd.f32 %v303, %v1070
  %v1574 = vadd.f32 %v304, %v1073
  %v1575 = vadd.f32 %v305, %v1078
  %v1576 = vadd.f32 %v306, %v1081
  %v1577 = vadd.f32 %v307, %v1086
  %v1578 = vadd.f32 %v308, %v1089
  %v1579 = vadd.f32 %v309, %v1094
  %v1580 = vadd.f32 %v310, %v1097
  %v1581 = vadd.f32 %v311, %v1102
  %v1582 = vadd.f32 %v312, %v1105
  %v1583 = vadd.f32 %v313, %v1110
  %v1584 = vadd.f32 %v314, %v1113
  %v1585 = vadd.f32 %v315, %v1118
  %v1586 = vadd.f32 %v316, %v1121
  %v1587 = vadd.f32 %v317, %v1126
  %v1588 = vadd.f32 %v318, %v1129
  %v1589 = vadd.f32 %v319, %v1134
  %v1590 = vadd.f32 %v320, %v1137
  %v1591 = vadd.f32 %v321, %v1142
  %v1592 = vadd.f32 %v322, %v1145
  %v1593 = vadd.f32 %v323, %v1150
  %v1594 = vadd.f32 %v324, %v1153
  %v1595 = vadd.f32 %v325, %v1158
  %v1596 = vadd.f32 %v326, %v1161
  %v1597 = vadd.f32 %v327, %v1166
  %v1598 = vadd.f32 %v328, %v1169
  %v1599 = vadd.f32 %v329, %v1174
  %v1600 = vadd.f32 %v330, %v1177
  %v1601 = vadd.f32 %v331, %v1182
  %v1602 = vadd.f32 %v332, %v1185
  %v1603 = vadd.f32 %v333, %v1190
  %v1604 = vadd.f32 %v334, %v1193
  %v1605 = vadd.f32 %v335, %v1198
  %v1606 = vadd.f32 %v336, %v1201
  %v1607 = vadd.f32 %v337, %v1206
  %v1608 = vadd.f32 %v338, %v1209
  %v1609 = vadd.f32 %v339, %v1214
  %v1610 = vadd.f32 %v340, %v1217
  %v1611 = vadd.f32 %v341, %v1222
  %v1612 = vadd.f32 %v342, %v1225
  %v1613 = vadd.f32 %v343, %v1230
  %v1614 = vadd.f32 %v344, %v1233
  %v1615 = vadd.f32 %v345, %v1238
  %v1616 = vadd.f32 %v346, %v1241
  %v1617 = vadd.f32 %v347, %v1246
  %v1618 = vadd.f32 %v348, %v1249
  %v1619 = vadd.f32 %v349, %v1254
  %v1620 = vadd.f32 %v350, %v1257
  %v1621 = vadd.f32 %v351, %v1262
  %v1622 = vadd.f32 %v352, %v1265
  %v1623 = vadd.f32 %v353, %v1270
  %v1624 = vadd.f32 %v354, %v1273
  %v1625 = vadd.f32 %v355, %v1278
  %v1626 = vadd.f32 %v356, %v1281
  %v1627 = vadd.f32 %v357, %v1286
  %v1628 = vadd.f32 %v358, %v1289
  %v1629 = vadd.f32 %v359, %v1294
  %v1630 = vadd.f32 %v360, %v1297
  %v1631 = vadd.f32 %v361, %v1302
  %v1632 = vadd.f32 %v362, %v1305
  %v1633 = vadd.f32 %v363, %v1310
  %v1634 = vadd.f32 %v364, %v1313
  %v1635 = vadd.f32 %v365, %v1318
  %v1636 = vadd.f32 %v366, %v1321
  %v1637 = vadd.f32 %v367, %v1326
  %v1638 = vadd.f32 %v368, %v1329
  %v1639 = vadd.f32 %v369, %v1334
  %v1640 = vadd.f32 %v370, %v1337
  %v1641 = vadd.f32 %v371, %v1342
  %v1642 = vadd.f32 %v372, %v1345
  %v1643 = vadd.f32 %v373, %v1350
  %v1644 = vadd.f32 %v374, %v1353
  %v1645 = vadd.f32 %v375, %v1358
  %v1646 = vadd.f32 %v376, %v1361
  %v1647 = vadd.f32 %v377, %v1366
  %v1648 = vadd.f32 %v378, %v1369
  %v1649 = vadd.f32 %v379, %v1374
  %v1650 = vadd.f32 %v380, %v1377
  %v1651 = vadd.f32 %v381, %v1382
  %v1652 = vadd.f32 %v382, %v1385
  %v1653 = vadd.f32 %v383, %v1390
  %v1654 = vadd.f32 %v384, %v1393
  %v1655 = vadd.f32 %v385, %v1398
  %v1656 = vadd.f32 %v386, %v1401
  %v1657 = vadd.f32 %v387, %v1406
  %v1658 = vadd.f32 %v388, %v1409
  %v1659 = vadd.f32 %v389, %v1414
  %v1660 = vadd.f32 %v390, %v1417
  %v1661 = vadd.f32 %v391, %v1422
  %v1662 = vadd.f32 %v392, %v1425
  %v1663 = vadd.f32 %v393, %v1430
  %v1664 = vadd.f32 %v394, %v1433
  %v1665 = vadd.f32 %v395, %v1438
  %v1666 = vadd.f32 %v396, %v1441
  %v1667 = vadd.f32 %v397, %v1446
  %v1668 = vadd.f32 %v398, %v1449
  %v1669 = vadd.f32 %v399, %v1454
  %v1670 = vadd.f32 %v400, %v1457
  %v1671 = vadd.f32 %v401, %v1462
  %v1672 = vadd.f32 %v402, %v1465
  %v1673 = vadd.f32 %v403, %v1470
  %v1674 = vadd.f32 %v404, %v1473
  %v1675 = vadd.f32 %v405, %v1478
  %v1676 = vadd.f32 %v406, %v1481
  %v1677 = vadd.f32 %v407, %v1486
  %v1678 = vadd.f32 %v408, %v1489
  %v1679 = vadd.f32 %v409, %v1494
  %v1680 = vadd.f32 %v410, %v1497
  %v1681 = vadd.f32 %v411, %v1502
  %v1682 = vadd.f32 %v412, %v1505
  %v1683 = vadd.f32 %v413, %v1510
  %v1684 = vadd.f32 %v414, %v1513
  %v1685 = vadd.f32 %v415, %v1518
  %v1686 = vadd.f32 %v416, %v1521
  %v1687 = vadd.f32 %v417, %v1526
  %v1688 = vadd.f32 %v418, %v1529
  %v1689 = vadd.f32 %v419, %v1534
  %v1690 = vadd.f32 %v420, %v1537
  %v1691 = vadd.f32 %v421, %v1542
  %v1692 = vadd.f32 %v422, %v1545
  %v1693 = vadd.f32 %v423, %v1550
  %v1694 = vadd.f32 %v424, %v1553
  %v1695 = vadd.f32 %v425, %v1558
  %vm1696 = vcmask 261120
  %1697 = vst.msk [vmem:[%s5] sm:$0xff] %vm1696, %v1563
  %1698 = vst.msk [vmem:[%s5 + $0x8] sm:$0xff] %vm1696, %v1564
  %1699 = vst.msk [vmem:[%s5 + $0x10] sm:$0xff] %vm1696, %v1565
  %1700 = vst.msk [vmem:[%s5 + $0x18] sm:$0xff] %vm1696, %v1566
  %1701 = vst.msk [vmem:[%s5 + $0x20] sm:$0xff] %vm1696, %v1567
  %1702 = vst.msk [vmem:[%s5 + $0x28] sm:$0xff] %vm1696, %v1568
  %1703 = vst.msk [vmem:[%s5 + $0x30] sm:$0xff] %vm1696, %v1569
  %1704 = vst.msk [vmem:[%s5 + $0x38] sm:$0xff] %vm1696, %v1570
  %1705 = vst.msk [vmem:[%s5 + $0x40] sm:$0xff] %vm1696, %v1571
  %1706 = vst.msk [vmem:[%s5 + $0x48] sm:$0xff] %vm1696, %v1572
  %1707 = vst.msk [vmem:[%s5 + $0x50] sm:$0xff] %vm1696, %v1573
  %1708 = vst.msk [vmem:[%s5 + $0x58] sm:$0xff] %vm1696, %v1574
  %1709 = vst.msk [vmem:[%s5 + $0x60] sm:$0xff] %vm1696, %v1575
  %1710 = vst.msk [vmem:[%s5 + $0x68] sm:$0xff] %vm1696, %v1576
  %1711 = vst.msk [vmem:[%s5 + $0x70] sm:$0xff] %vm1696, %v1577
  %1712 = vst.msk [vmem:[%s5 + $0x78] sm:$0xff] %vm1696, %v1578
  %1713 = vst.msk [vmem:[%s5 + $0x80] sm:$0xff] %vm1696, %v1579
  %1714 = vst.msk [vmem:[%s5 + $0x88] sm:$0xff] %vm1696, %v1580
  %1715 = vst.msk [vmem:[%s5 + $0x90] sm:$0xff] %vm1696, %v1581
  %1716 = vst.msk [vmem:[%s5 + $0x98] sm:$0xff] %vm1696, %v1582
  %1717 = vst.msk [vmem:[%s5 + $0xa0] sm:$0xff] %vm1696, %v1583
  %1718 = vst.msk [vmem:[%s5 + $0xa8] sm:$0xff] %vm1696, %v1584
  %1719 = vst.msk [vmem:[%s5 + $0xb0] sm:$0xff] %vm1696, %v1585
  %1720 = vst.msk [vmem:[%s5 + $0xb8] sm:$0xff] %vm1696, %v1586
  %1721 = vst.msk [vmem:[%s5 + $0xc0] sm:$0xff] %vm1696, %v1587
  %1722 = vst.msk [vmem:[%s5 + $0xc8] sm:$0xff] %vm1696, %v1588
  %1723 = vst.msk [vmem:[%s5 + $0xd0] sm:$0xff] %vm1696, %v1589
  %1724 = vst.msk [vmem:[%s5 + $0xd8] sm:$0xff] %vm1696, %v1590
  %1725 = vst.msk [vmem:[%s5 + $0xe0] sm:$0xff] %vm1696, %v1591
  %1726 = vst.msk [vmem:[%s5 + $0xe8] sm:$0xff] %vm1696, %v1592
  %1727 = vst.msk [vmem:[%s5 + $0xf0] sm:$0xff] %vm1696, %v1593
  %1728 = vst.msk [vmem:[%s5 + $0xf8] sm:$0xff] %vm1696, %v1594
  %1729 = vst.msk [vmem:[%s5 + $0x100] sm:$0xff] %vm1696, %v1595
  %1730 = vst.msk [vmem:[%s5 + $0x108] sm:$0xff] %vm1696, %v1596
  %1731 = vst.msk [vmem:[%s5 + $0x110] sm:$0xff] %vm1696, %v1597
  %1732 = vst.msk [vmem:[%s5 + $0x118] sm:$0xff] %vm1696, %v1598
  %1733 = vst.msk [vmem:[%s5 + $0x120] sm:$0xff] %vm1696, %v1599
  %1734 = vst.msk [vmem:[%s5 + $0x128] sm:$0xff] %vm1696, %v1600
  %1735 = vst.msk [vmem:[%s5 + $0x130] sm:$0xff] %vm1696, %v1601
  %1736 = vst.msk [vmem:[%s5 + $0x138] sm:$0xff] %vm1696, %v1602
  %1737 = vst.msk [vmem:[%s5 + $0x140] sm:$0xff] %vm1696, %v1603
  %1738 = vst.msk [vmem:[%s5 + $0x148] sm:$0xff] %vm1696, %v1604
  %1739 = vst.msk [vmem:[%s5 + $0x150] sm:$0xff] %vm1696, %v1605
  %1740 = vst.msk [vmem:[%s5 + $0x158] sm:$0xff] %vm1696, %v1606
  %1741 = vst.msk [vmem:[%s5 + $0x160] sm:$0xff] %vm1696, %v1607
  %1742 = vst.msk [vmem:[%s5 + $0x168] sm:$0xff] %vm1696, %v1608
  %1743 = vst.msk [vmem:[%s5 + $0x170] sm:$0xff] %vm1696, %v1609
  %1744 = vst.msk [vmem:[%s5 + $0x178] sm:$0xff] %vm1696, %v1610
  %1745 = vst.msk [vmem:[%s5 + $0x180] sm:$0xff] %vm1696, %v1611
  %1746 = vst.msk [vmem:[%s5 + $0x188] sm:$0xff] %vm1696, %v1612
  %1747 = vst.msk [vmem:[%s5 + $0x190] sm:$0xff] %vm1696, %v1613
  %1748 = vst.msk [vmem:[%s5 + $0x198] sm:$0xff] %vm1696, %v1614
  %1749 = vst.msk [vmem:[%s5 + $0x1a0] sm:$0xff] %vm1696, %v1615
  %1750 = vst.msk [vmem:[%s5 + $0x1a8] sm:$0xff] %vm1696, %v1616
  %1751 = vst.msk [vmem:[%s5 + $0x1b0] sm:$0xff] %vm1696, %v1617
  %1752 = vst.msk [vmem:[%s5 + $0x1b8] sm:$0xff] %vm1696, %v1618
  %1753 = vst.msk [vmem:[%s5 + $0x1c0] sm:$0xff] %vm1696, %v1619
  %1754 = vst.msk [vmem:[%s5 + $0x1c8] sm:$0xff] %vm1696, %v1620
  %1755 = vst.msk [vmem:[%s5 + $0x1d0] sm:$0xff] %vm1696, %v1621
  %1756 = vst.msk [vmem:[%s5 + $0x1d8] sm:$0xff] %vm1696, %v1622
  %1757 = vst.msk [vmem:[%s5 + $0x1e0] sm:$0xff] %vm1696, %v1623
  %1758 = vst.msk [vmem:[%s5 + $0x1e8] sm:$0xff] %vm1696, %v1624
  %1759 = vst.msk [vmem:[%s5 + $0x1f0] sm:$0xff] %vm1696, %v1625
  %1760 = vst.msk [vmem:[%s5 + $0x1f8] sm:$0xff] %vm1696, %v1626
  %1761 = vst.msk [vmem:[%s5 + $0x200] sm:$0xff] %vm1696, %v1627
  %1762 = vst.msk [vmem:[%s5 + $0x208] sm:$0xff] %vm1696, %v1628
  %1763 = vst.msk [vmem:[%s5 + $0x210] sm:$0xff] %vm1696, %v1629
  %1764 = vst.msk [vmem:[%s5 + $0x218] sm:$0xff] %vm1696, %v1630
  %1765 = vst.msk [vmem:[%s5 + $0x220] sm:$0xff] %vm1696, %v1631
  %1766 = vst.msk [vmem:[%s5 + $0x228] sm:$0xff] %vm1696, %v1632
  %1767 = vst.msk [vmem:[%s5 + $0x230] sm:$0xff] %vm1696, %v1633
  %1768 = vst.msk [vmem:[%s5 + $0x238] sm:$0xff] %vm1696, %v1634
  %1769 = vst.msk [vmem:[%s5 + $0x240] sm:$0xff] %vm1696, %v1635
  %1770 = vst.msk [vmem:[%s5 + $0x248] sm:$0xff] %vm1696, %v1636
  %1771 = vst.msk [vmem:[%s5 + $0x250] sm:$0xff] %vm1696, %v1637
  %1772 = vst.msk [vmem:[%s5 + $0x258] sm:$0xff] %vm1696, %v1638
  %1773 = vst.msk [vmem:[%s5 + $0x260] sm:$0xff] %vm1696, %v1639
  %1774 = vst.msk [vmem:[%s5 + $0x268] sm:$0xff] %vm1696, %v1640
  %1775 = vst.msk [vmem:[%s5 + $0x270] sm:$0xff] %vm1696, %v1641
  %1776 = vst.msk [vmem:[%s5 + $0x278] sm:$0xff] %vm1696, %v1642
  %1777 = vst.msk [vmem:[%s5 + $0x280] sm:$0xff] %vm1696, %v1643
  %1778 = vst.msk [vmem:[%s5 + $0x288] sm:$0xff] %vm1696, %v1644
  %1779 = vst.msk [vmem:[%s5 + $0x290] sm:$0xff] %vm1696, %v1645
  %1780 = vst.msk [vmem:[%s5 + $0x298] sm:$0xff] %vm1696, %v1646
  %1781 = vst.msk [vmem:[%s5 + $0x2a0] sm:$0xff] %vm1696, %v1647
  %1782 = vst.msk [vmem:[%s5 + $0x2a8] sm:$0xff] %vm1696, %v1648
  %1783 = vst.msk [vmem:[%s5 + $0x2b0] sm:$0xff] %vm1696, %v1649
  %1784 = vst.msk [vmem:[%s5 + $0x2b8] sm:$0xff] %vm1696, %v1650
  %1785 = vst.msk [vmem:[%s5 + $0x2c0] sm:$0xff] %vm1696, %v1651
  %1786 = vst.msk [vmem:[%s5 + $0x2c8] sm:$0xff] %vm1696, %v1652
  %1787 = vst.msk [vmem:[%s5 + $0x2d0] sm:$0xff] %vm1696, %v1653
  %1788 = vst.msk [vmem:[%s5 + $0x2d8] sm:$0xff] %vm1696, %v1654
  %1789 = vst.msk [vmem:[%s5 + $0x2e0] sm:$0xff] %vm1696, %v1655
  %1790 = vst.msk [vmem:[%s5 + $0x2e8] sm:$0xff] %vm1696, %v1656
  %1791 = vst.msk [vmem:[%s5 + $0x2f0] sm:$0xff] %vm1696, %v1657
  %1792 = vst.msk [vmem:[%s5 + $0x2f8] sm:$0xff] %vm1696, %v1658
  %1793 = vst.msk [vmem:[%s5 + $0x300] sm:$0xff] %vm1696, %v1659
  %1794 = vst.msk [vmem:[%s5 + $0x308] sm:$0xff] %vm1696, %v1660
  %1795 = vst.msk [vmem:[%s5 + $0x310] sm:$0xff] %vm1696, %v1661
  %1796 = vst.msk [vmem:[%s5 + $0x318] sm:$0xff] %vm1696, %v1662
  %1797 = vst.msk [vmem:[%s5 + $0x320] sm:$0xff] %vm1696, %v1663
  %1798 = vst.msk [vmem:[%s5 + $0x328] sm:$0xff] %vm1696, %v1664
  %1799 = vst.msk [vmem:[%s5 + $0x330] sm:$0xff] %vm1696, %v1665
  %1800 = vst.msk [vmem:[%s5 + $0x338] sm:$0xff] %vm1696, %v1666
  %1801 = vst.msk [vmem:[%s5 + $0x340] sm:$0xff] %vm1696, %v1667
  %1802 = vst.msk [vmem:[%s5 + $0x348] sm:$0xff] %vm1696, %v1668
  %1803 = vst.msk [vmem:[%s5 + $0x350] sm:$0xff] %vm1696, %v1669
  %1804 = vst.msk [vmem:[%s5 + $0x358] sm:$0xff] %vm1696, %v1670
  %1805 = vst.msk [vmem:[%s5 + $0x360] sm:$0xff] %vm1696, %v1671
  %1806 = vst.msk [vmem:[%s5 + $0x368] sm:$0xff] %vm1696, %v1672
  %1807 = vst.msk [vmem:[%s5 + $0x370] sm:$0xff] %vm1696, %v1673
  %1808 = vst.msk [vmem:[%s5 + $0x378] sm:$0xff] %vm1696, %v1674
  %1809 = vst.msk [vmem:[%s5 + $0x380] sm:$0xff] %vm1696, %v1675
  %1810 = vst.msk [vmem:[%s5 + $0x388] sm:$0xff] %vm1696, %v1676
  %1811 = vst.msk [vmem:[%s5 + $0x390] sm:$0xff] %vm1696, %v1677
  %1812 = vst.msk [vmem:[%s5 + $0x398] sm:$0xff] %vm1696, %v1678
  %1813 = vst.msk [vmem:[%s5 + $0x3a0] sm:$0xff] %vm1696, %v1679
  %1814 = vst.msk [vmem:[%s5 + $0x3a8] sm:$0xff] %vm1696, %v1680
  %1815 = vst.msk [vmem:[%s5 + $0x3b0] sm:$0xff] %vm1696, %v1681
  %1816 = vst.msk [vmem:[%s5 + $0x3b8] sm:$0xff] %vm1696, %v1682
  %1817 = vst.msk [vmem:[%s5 + $0x3c0] sm:$0xff] %vm1696, %v1683
  %1818 = vst.msk [vmem:[%s5 + $0x3c8] sm:$0xff] %vm1696, %v1684
  %1819 = vst.msk [vmem:[%s5 + $0x3d0] sm:$0xff] %vm1696, %v1685
  %1820 = vst.msk [vmem:[%s5 + $0x3d8] sm:$0xff] %vm1696, %v1686
  %1821 = vst.msk [vmem:[%s5 + $0x3e0] sm:$0xff] %vm1696, %v1687
  %1822 = vst.msk [vmem:[%s5 + $0x3e8] sm:$0xff] %vm1696, %v1688
  %1823 = vst.msk [vmem:[%s5 + $0x3f0] sm:$0xff] %vm1696, %v1689
  %1824 = vst.msk [vmem:[%s5 + $0x3f8] sm:$0xff] %vm1696, %v1690
  %1825 = vst.msk [vmem:[%s5 + $0x400] sm:$0xff] %vm1696, %v1691
  %1826 = vst.msk [vmem:[%s5 + $0x408] sm:$0xff] %vm1696, %v1692
  %1827 = vst.msk [vmem:[%s5 + $0x410] sm:$0xff] %vm1696, %v1693
  %1828 = vst.msk [vmem:[%s5 + $0x418] sm:$0xff] %vm1696, %v1694
  %vm1829 = vcmask 254976
  %1830 = vst.msk [vmem:[%s5 + $0x420] sm:$0x3] %vm1829, %v1695
  // Predicated region
  $region26: #{tpu_custom_call.1} parent=0 // pred_check
    %p1831 = pneg %p21
  $region27: #{tpu_custom_call.1} parent=0 // pred_check_branch
    %1833 = sbr.rel (%p1831) target = $region29
  $region28: #{tpu_custom_call.1} parent=0 // pred_region
    %v1834 = vld [vmem:[%s5] sm:$0xff]
    %v1835 = vld [vmem:[%s5 + $0x8] sm:$0xff]
    %v1836 = vld [vmem:[%s5 + $0x10] sm:$0xff]
    %v1837 = vld [vmem:[%s5 + $0x18] sm:$0xff]
    %v1838 = vld [vmem:[%s5 + $0x20] sm:$0xff]
    %v1839 = vld [vmem:[%s5 + $0x28] sm:$0xff]
    %v1840 = vld [vmem:[%s5 + $0x30] sm:$0xff]
    %v1841 = vld [vmem:[%s5 + $0x38] sm:$0xff]
    %v1842 = vld [vmem:[%s5 + $0x40] sm:$0xff]
    %v1843 = vld [vmem:[%s5 + $0x48] sm:$0xff]
    %v1844 = vld [vmem:[%s5 + $0x50] sm:$0xff]
    %v1845 = vld [vmem:[%s5 + $0x58] sm:$0xff]
    %v1846 = vld [vmem:[%s5 + $0x60] sm:$0xff]
    %v1847 = vld [vmem:[%s5 + $0x68] sm:$0xff]
    %v1848 = vld [vmem:[%s5 + $0x70] sm:$0xff]
    %v1849 = vld [vmem:[%s5 + $0x78] sm:$0xff]
    %v1850 = vld [vmem:[%s5 + $0x80] sm:$0xff]
    %v1851 = vld [vmem:[%s5 + $0x88] sm:$0xff]
    %v1852 = vld [vmem:[%s5 + $0x90] sm:$0xff]
    %v1853 = vld [vmem:[%s5 + $0x98] sm:$0xff]
    %v1854 = vld [vmem:[%s5 + $0xa0] sm:$0xff]
    %v1855 = vld [vmem:[%s5 + $0xa8] sm:$0xff]
    %v1856 = vld [vmem:[%s5 + $0xb0] sm:$0xff]
    %v1857 = vld [vmem:[%s5 + $0xb8] sm:$0xff]
    %v1858 = vld [vmem:[%s5 + $0xc0] sm:$0xff]
    %v1859 = vld [vmem:[%s5 + $0xc8] sm:$0xff]
    %v1860 = vld [vmem:[%s5 + $0xd0] sm:$0xff]
    %v1861 = vld [vmem:[%s5 + $0xd8] sm:$0xff]
    %v1862 = vld [vmem:[%s5 + $0xe0] sm:$0xff]
    %v1863 = vld [vmem:[%s5 + $0xe8] sm:$0xff]
    %v1864 = vld [vmem:[%s5 + $0xf0] sm:$0xff]
    %v1865 = vld [vmem:[%s5 + $0xf8] sm:$0xff]
    %v1866 = vld [vmem:[%s5 + $0x100] sm:$0xff]
    %v1867 = vld [vmem:[%s5 + $0x108] sm:$0xff]
    %v1868 = vld [vmem:[%s5 + $0x110] sm:$0xff]
    %v1869 = vld [vmem:[%s5 + $0x118] sm:$0xff]
    %v1870 = vld [vmem:[%s5 + $0x120] sm:$0xff]
    %v1871 = vld [vmem:[%s5 + $0x128] sm:$0xff]
    %v1872 = vld [vmem:[%s5 + $0x130] sm:$0xff]
    %v1873 = vld [vmem:[%s5 + $0x138] sm:$0xff]
    %v1874 = vld [vmem:[%s5 + $0x140] sm:$0xff]
    %v1875 = vld [vmem:[%s5 + $0x148] sm:$0xff]
    %v1876 = vld [vmem:[%s5 + $0x150] sm:$0xff]
    %v1877 = vld [vmem:[%s5 + $0x158] sm:$0xff]
    %v1878 = vld [vmem:[%s5 + $0x160] sm:$0xff]
    %v1879 = vld [vmem:[%s5 + $0x168] sm:$0xff]
    %v1880 = vld [vmem:[%s5 + $0x170] sm:$0xff]
    %v1881 = vld [vmem:[%s5 + $0x178] sm:$0xff]
    %v1882 = vld [vmem:[%s5 + $0x180] sm:$0xff]
    %v1883 = vld [vmem:[%s5 + $0x188] sm:$0xff]
    %v1884 = vld [vmem:[%s5 + $0x190] sm:$0xff]
    %v1885 = vld [vmem:[%s5 + $0x198] sm:$0xff]
    %v1886 = vld [vmem:[%s5 + $0x1a0] sm:$0xff]
    %v1887 = vld [vmem:[%s5 + $0x1a8] sm:$0xff]
    %v1888 = vld [vmem:[%s5 + $0x1b0] sm:$0xff]
    %v1889 = vld [vmem:[%s5 + $0x1b8] sm:$0xff]
    %v1890 = vld [vmem:[%s5 + $0x1c0] sm:$0xff]
    %v1891 = vld [vmem:[%s5 + $0x1c8] sm:$0xff]
    %v1892 = vld [vmem:[%s5 + $0x1d0] sm:$0xff]
    %v1893 = vld [vmem:[%s5 + $0x1d8] sm:$0xff]
    %v1894 = vld [vmem:[%s5 + $0x1e0] sm:$0xff]
    %v1895 = vld [vmem:[%s5 + $0x1e8] sm:$0xff]
    %v1896 = vld [vmem:[%s5 + $0x1f0] sm:$0xff]
    %v1897 = vld [vmem:[%s5 + $0x1f8] sm:$0xff]
    %v1898 = vld [vmem:[%s5 + $0x200] sm:$0xff]
    %v1899 = vld [vmem:[%s5 + $0x208] sm:$0xff]
    %v1900 = vld [vmem:[%s5 + $0x210] sm:$0xff]
    %v1901 = vld [vmem:[%s5 + $0x218] sm:$0xff]
    %v1902 = vld [vmem:[%s5 + $0x220] sm:$0xff]
    %v1903 = vld [vmem:[%s5 + $0x228] sm:$0xff]
    %v1904 = vld [vmem:[%s5 + $0x230] sm:$0xff]
    %v1905 = vld [vmem:[%s5 + $0x238] sm:$0xff]
    %v1906 = vld [vmem:[%s5 + $0x240] sm:$0xff]
    %v1907 = vld [vmem:[%s5 + $0x248] sm:$0xff]
    %v1908 = vld [vmem:[%s5 + $0x250] sm:$0xff]
    %v1909 = vld [vmem:[%s5 + $0x258] sm:$0xff]
    %v1910 = vld [vmem:[%s5 + $0x260] sm:$0xff]
    %v1911 = vld [vmem:[%s5 + $0x268] sm:$0xff]
    %v1912 = vld [vmem:[%s5 + $0x270] sm:$0xff]
    %v1913 = vld [vmem:[%s5 + $0x278] sm:$0xff]
    %v1914 = vld [vmem:[%s5 + $0x280] sm:$0xff]
    %v1915 = vld [vmem:[%s5 + $0x288] sm:$0xff]
    %v1916 = vld [vmem:[%s5 + $0x290] sm:$0xff]
    %v1917 = vld [vmem:[%s5 + $0x298] sm:$0xff]
    %v1918 = vld [vmem:[%s5 + $0x2a0] sm:$0xff]
    %v1919 = vld [vmem:[%s5 + $0x2a8] sm:$0xff]
    %v1920 = vld [vmem:[%s5 + $0x2b0] sm:$0xff]
    %v1921 = vld [vmem:[%s5 + $0x2b8] sm:$0xff]
    %v1922 = vld [vmem:[%s5 + $0x2c0] sm:$0xff]
    %v1923 = vld [vmem:[%s5 + $0x2c8] sm:$0xff]
    %v1924 = vld [vmem:[%s5 + $0x2d0] sm:$0xff]
    %v1925 = vld [vmem:[%s5 + $0x2d8] sm:$0xff]
    %v1926 = vld [vmem:[%s5 + $0x2e0] sm:$0xff]
    %v1927 = vld [vmem:[%s5 + $0x2e8] sm:$0xff]
    %v1928 = vld [vmem:[%s5 + $0x2f0] sm:$0xff]
    %v1929 = vld [vmem:[%s5 + $0x2f8] sm:$0xff]
    %v1930 = vld [vmem:[%s5 + $0x300] sm:$0xff]
    %v1931 = vld [vmem:[%s5 + $0x308] sm:$0xff]
    %v1932 = vld [vmem:[%s5 + $0x310] sm:$0xff]
    %v1933 = vld [vmem:[%s5 + $0x318] sm:$0xff]
    %v1934 = vld [vmem:[%s5 + $0x320] sm:$0xff]
    %v1935 = vld [vmem:[%s5 + $0x328] sm:$0xff]
    %v1936 = vld [vmem:[%s5 + $0x330] sm:$0xff]
    %v1937 = vld [vmem:[%s5 + $0x338] sm:$0xff]
    %v1938 = vld [vmem:[%s5 + $0x340] sm:$0xff]
    %v1939 = vld [vmem:[%s5 + $0x348] sm:$0xff]
    %v1940 = vld [vmem:[%s5 + $0x350] sm:$0xff]
    %v1941 = vld [vmem:[%s5 + $0x358] sm:$0xff]
    %v1942 = vld [vmem:[%s5 + $0x360] sm:$0xff]
    %v1943 = vld [vmem:[%s5 + $0x368] sm:$0xff]
    %v1944 = vld [vmem:[%s5 + $0x370] sm:$0xff]
    %v1945 = vld [vmem:[%s5 + $0x378] sm:$0xff]
    %v1946 = vld [vmem:[%s5 + $0x380] sm:$0xff]
    %v1947 = vld [vmem:[%s5 + $0x388] sm:$0xff]
    %v1948 = vld [vmem:[%s5 + $0x390] sm:$0xff]
    %v1949 = vld [vmem:[%s5 + $0x398] sm:$0xff]
    %v1950 = vld [vmem:[%s5 + $0x3a0] sm:$0xff]
    %v1951 = vld [vmem:[%s5 + $0x3a8] sm:$0xff]
    %v1952 = vld [vmem:[%s5 + $0x3b0] sm:$0xff]
    %v1953 = vld [vmem:[%s5 + $0x3b8] sm:$0xff]
    %v1954 = vld [vmem:[%s5 + $0x3c0] sm:$0xff]
    %v1955 = vld [vmem:[%s5 + $0x3c8] sm:$0xff]
    %v1956 = vld [vmem:[%s5 + $0x3d0] sm:$0xff]
    %v1957 = vld [vmem:[%s5 + $0x3d8] sm:$0xff]
    %v1958 = vld [vmem:[%s5 + $0x3e0] sm:$0xff]
    %v1959 = vld [vmem:[%s5 + $0x3e8] sm:$0xff]
    %v1960 = vld [vmem:[%s5 + $0x3f0] sm:$0xff]
    %v1961 = vld [vmem:[%s5 + $0x3f8] sm:$0xff]
    %v1962 = vld [vmem:[%s5 + $0x400] sm:$0xff]
    %v1963 = vld [vmem:[%s5 + $0x408] sm:$0xff]
    %v1964 = vld [vmem:[%s5 + $0x410] sm:$0xff]
    %v1965 = vld [vmem:[%s5 + $0x418] sm:$0xff]
    %v1966 = vld [vmem:[%s5 + $0x420] sm:$0x3]
    %v1967 = vld [vmem:[%s2] sm:$0x1]
    %v1969 = vlaneseq
    %v1970 = vshrl.u32 %v1969, 7
    %v1971 = vsub.s32 0, %v1970
    %v1972 = vrot.slane %v1967, %v1971
    %v1974 = vadd.f32 %v1834, %v1972
    %v1975 = vadd.f32 %v1835, %v1972
    %v1976 = vadd.f32 %v1836, %v1972
    %v1977 = vadd.f32 %v1837, %v1972
    %v1978 = vadd.f32 %v1838, %v1972
    %v1979 = vadd.f32 %v1839, %v1972
    %v1980 = vadd.f32 %v1840, %v1972
    %v1981 = vadd.f32 %v1841, %v1972
    %v1982 = vadd.f32 %v1842, %v1972
    %v1983 = vadd.f32 %v1843, %v1972
    %v1984 = vadd.f32 %v1844, %v1972
    %v1985 = vadd.f32 %v1845, %v1972
    %v1986 = vadd.f32 %v1846, %v1972
    %v1987 = vadd.f32 %v1847, %v1972
    %v1988 = vadd.f32 %v1848, %v1972
    %v1989 = vadd.f32 %v1849, %v1972
    %v1990 = vadd.f32 %v1850, %v1972
    %v1991 = vadd.f32 %v1851, %v1972
    %v1992 = vadd.f32 %v1852, %v1972
    %v1993 = vadd.f32 %v1853, %v1972
    %v1994 = vadd.f32 %v1854, %v1972
    %v1995 = vadd.f32 %v1855, %v1972
    %v1996 = vadd.f32 %v1856, %v1972
    %v1997 = vadd.f32 %v1857, %v1972
    %v1998 = vadd.f32 %v1858, %v1972
    %v1999 = vadd.f32 %v1859, %v1972
    %v2000 = vadd.f32 %v1860, %v1972
    %v2001 = vadd.f32 %v1861, %v1972
    %v2002 = vadd.f32 %v1862, %v1972
    %v2003 = vadd.f32 %v1863, %v1972
    %v2004 = vadd.f32 %v1864, %v1972
    %v2005 = vadd.f32 %v1865, %v1972
    %v2006 = vadd.f32 %v1866, %v1972
    %v2007 = vadd.f32 %v1867, %v1972
    %v2008 = vadd.f32 %v1868, %v1972
    %v2009 = vadd.f32 %v1869, %v1972
    %v2010 = vadd.f32 %v1870, %v1972
    %v2011 = vadd.f32 %v1871, %v1972
    %v2012 = vadd.f32 %v1872, %v1972
    %v2013 = vadd.f32 %v1873, %v1972
    %v2014 = vadd.f32 %v1874, %v1972
    %v2015 = vadd.f32 %v1875, %v1972
    %v2016 = vadd.f32 %v1876, %v1972
    %v2017 = vadd.f32 %v1877, %v1972
    %v2018 = vadd.f32 %v1878, %v1972
    %v2019 = vadd.f32 %v1879, %v1972
    %v2020 = vadd.f32 %v1880, %v1972
    %v2021 = vadd.f32 %v1881, %v1972
    %v2022 = vadd.f32 %v1882, %v1972
    %v2023 = vadd.f32 %v1883, %v1972
    %v2024 = vadd.f32 %v1884, %v1972
    %v2025 = vadd.f32 %v1885, %v1972
    %v2026 = vadd.f32 %v1886, %v1972
    %v2027 = vadd.f32 %v1887, %v1972
    %v2028 = vadd.f32 %v1888, %v1972
    %v2029 = vadd.f32 %v1889, %v1972
    %v2030 = vadd.f32 %v1890, %v1972
    %v2031 = vadd.f32 %v1891, %v1972
    %v2032 = vadd.f32 %v1892, %v1972
    %v2033 = vadd.f32 %v1893, %v1972
    %v2034 = vadd.f32 %v1894, %v1972
    %v2035 = vadd.f32 %v1895, %v1972
    %v2036 = vadd.f32 %v1896, %v1972
    %v2037 = vadd.f32 %v1897, %v1972
    %v2038 = vadd.f32 %v1898, %v1972
    %v2039 = vadd.f32 %v1899, %v1972
    %v2040 = vadd.f32 %v1900, %v1972
    %v2041 = vadd.f32 %v1901, %v1972
    %v2042 = vadd.f32 %v1902, %v1972
    %v2043 = vadd.f32 %v1903, %v1972
    %v2044 = vadd.f32 %v1904, %v1972
    %v2045 = vadd.f32 %v1905, %v1972
    %v2046 = vadd.f32 %v1906, %v1972
    %v2047 = vadd.f32 %v1907, %v1972
    %v2048 = vadd.f32 %v1908, %v1972
    %v2049 = vadd.f32 %v1909, %v1972
    %v2050 = vadd.f32 %v1910, %v1972
    %v2051 = vadd.f32 %v1911, %v1972
    %v2052 = vadd.f32 %v1912, %v1972
    %v2053 = vadd.f32 %v1913, %v1972
    %v2054 = vadd.f32 %v1914, %v1972
    %v2055 = vadd.f32 %v1915, %v1972
    %v2056 = vadd.f32 %v1916, %v1972
    %v2057 = vadd.f32 %v1917, %v1972
    %v2058 = vadd.f32 %v1918, %v1972
    %v2059 = vadd.f32 %v1919, %v1972
    %v2060 = vadd.f32 %v1920, %v1972
    %v2061 = vadd.f32 %v1921, %v1972
    %v2062 = vadd.f32 %v1922, %v1972
    %v2063 = vadd.f32 %v1923, %v1972
    %v2064 = vadd.f32 %v1924, %v1972
    %v2065 = vadd.f32 %v1925, %v1972
    %v2066 = vadd.f32 %v1926, %v1972
    %v2067 = vadd.f32 %v1927, %v1972
    %v2068 = vadd.f32 %v1928, %v1972
    %v2069 = vadd.f32 %v1929, %v1972
    %v2070 = vadd.f32 %v1930, %v1972
    %v2071 = vadd.f32 %v1931, %v1972
    %v2072 = vadd.f32 %v1932, %v1972
    %v2073 = vadd.f32 %v1933, %v1972
    %v2074 = vadd.f32 %v1934, %v1972
    %v2075 = vadd.f32 %v1935, %v1972
    %v2076 = vadd.f32 %v1936, %v1972
    %v2077 = vadd.f32 %v1937, %v1972
    %v2078 = vadd.f32 %v1938, %v1972
    %v2079 = vadd.f32 %v1939, %v1972
    %v2080 = vadd.f32 %v1940, %v1972
    %v2081 = vadd.f32 %v1941, %v1972
    %v2082 = vadd.f32 %v1942, %v1972
    %v2083 = vadd.f32 %v1943, %v1972
    %v2084 = vadd.f32 %v1944, %v1972
    %v2085 = vadd.f32 %v1945, %v1972
    %v2086 = vadd.f32 %v1946, %v1972
    %v2087 = vadd.f32 %v1947, %v1972
    %v2088 = vadd.f32 %v1948, %v1972
    %v2089 = vadd.f32 %v1949, %v1972
    %v2090 = vadd.f32 %v1950, %v1972
    %v2091 = vadd.f32 %v1951, %v1972
    %v2092 = vadd.f32 %v1952, %v1972
    %v2093 = vadd.f32 %v1953, %v1972
    %v2094 = vadd.f32 %v1954, %v1972
    %v2095 = vadd.f32 %v1955, %v1972
    %v2096 = vadd.f32 %v1956, %v1972
    %v2097 = vadd.f32 %v1957, %v1972
    %v2098 = vadd.f32 %v1958, %v1972
    %v2099 = vadd.f32 %v1959, %v1972
    %v2100 = vadd.f32 %v1960, %v1972
    %v2101 = vadd.f32 %v1961, %v1972
    %v2102 = vadd.f32 %v1962, %v1972
    %v2103 = vadd.f32 %v1963, %v1972
    %v2104 = vadd.f32 %v1964, %v1972
    %v2105 = vadd.f32 %v1965, %v1972
    %v2106 = vadd.f32 %v1966, %v1972
    %v2107 = vmax.f32 %v1974, 0.0
    %v2108 = vmax.f32 %v1975, 0.0
    %v2109 = vmax.f32 %v1976, 0.0
    %v2110 = vmax.f32 %v1977, 0.0
    %v2111 = vmax.f32 %v1978, 0.0
    %v2112 = vmax.f32 %v1979, 0.0
    %v2113 = vmax.f32 %v1980, 0.0
    %v2114 = vmax.f32 %v1981, 0.0
    %v2115 = vmax.f32 %v1982, 0.0
    %v2116 = vmax.f32 %v1983, 0.0
    %v2117 = vmax.f32 %v1984, 0.0
    %v2118 = vmax.f32 %v1985, 0.0
    %v2119 = vmax.f32 %v1986, 0.0
    %v2120 = vmax.f32 %v1987, 0.0
    %v2121 = vmax.f32 %v1988, 0.0
    %v2122 = vmax.f32 %v1989, 0.0
    %v2123 = vmax.f32 %v1990, 0.0
    %v2124 = vmax.f32 %v1991, 0.0
    %v2125 = vmax.f32 %v1992, 0.0
    %v2126 = vmax.f32 %v1993, 0.0
    %v2127 = vmax.f32 %v1994, 0.0
    %v2128 = vmax.f32 %v1995, 0.0
    %v2129 = vmax.f32 %v1996, 0.0
    %v2130 = vmax.f32 %v1997, 0.0
    %v2131 = vmax.f32 %v1998, 0.0
    %v2132 = vmax.f32 %v1999, 0.0
    %v2133 = vmax.f32 %v2000, 0.0
    %v2134 = vmax.f32 %v2001, 0.0
    %v2135 = vmax.f32 %v2002, 0.0
    %v2136 = vmax.f32 %v2003, 0.0
    %v2137 = vmax.f32 %v2004, 0.0
    %v2138 = vmax.f32 %v2005, 0.0
    %v2139 = vmax.f32 %v2006, 0.0
    %v2140 = vmax.f32 %v2007, 0.0
    %v2141 = vmax.f32 %v2008, 0.0
    %v2142 = vmax.f32 %v2009, 0.0
    %v2143 = vmax.f32 %v2010, 0.0
    %v2144 = vmax.f32 %v2011, 0.0
    %v2145 = vmax.f32 %v2012, 0.0
    %v2146 = vmax.f32 %v2013, 0.0
    %v2147 = vmax.f32 %v2014, 0.0
    %v2148 = vmax.f32 %v2015, 0.0
    %v2149 = vmax.f32 %v2016, 0.0
    %v2150 = vmax.f32 %v2017, 0.0
    %v2151 = vmax.f32 %v2018, 0.0
    %v2152 = vmax.f32 %v2019, 0.0
    %v2153 = vmax.f32 %v2020, 0.0
    %v2154 = vmax.f32 %v2021, 0.0
    %v2155 = vmax.f32 %v2022, 0.0
    %v2156 = vmax.f32 %v2023, 0.0
    %v2157 = vmax.f32 %v2024, 0.0
    %v2158 = vmax.f32 %v2025, 0.0
    %v2159 = vmax.f32 %v2026, 0.0
    %v2160 = vmax.f32 %v2027, 0.0
    %v2161 = vmax.f32 %v2028, 0.0
    %v2162 = vmax.f32 %v2029, 0.0
    %v2163 = vmax.f32 %v2030, 0.0
    %v2164 = vmax.f32 %v2031, 0.0
    %v2165 = vmax.f32 %v2032, 0.0
    %v2166 = vmax.f32 %v2033, 0.0
    %v2167 = vmax.f32 %v2034, 0.0
    %v2168 = vmax.f32 %v2035, 0.0
    %v2169 = vmax.f32 %v2036, 0.0
    %v2170 = vmax.f32 %v2037, 0.0
    %v2171 = vmax.f32 %v2038, 0.0
    %v2172 = vmax.f32 %v2039, 0.0
    %v2173 = vmax.f32 %v2040, 0.0
    %v2174 = vmax.f32 %v2041, 0.0
    %v2175 = vmax.f32 %v2042, 0.0
    %v2176 = vmax.f32 %v2043, 0.0
    %v2177 = vmax.f32 %v2044, 0.0
    %v2178 = vmax.f32 %v2045, 0.0
    %v2179 = vmax.f32 %v2046, 0.0
    %v2180 = vmax.f32 %v2047, 0.0
    %v2181 = vmax.f32 %v2048, 0.0
    %v2182 = vmax.f32 %v2049, 0.0
    %v2183 = vmax.f32 %v2050, 0.0
    %v2184 = vmax.f32 %v2051, 0.0
    %v2185 = vmax.f32 %v2052, 0.0
    %v2186 = vmax.f32 %v2053, 0.0
    %v2187 = vmax.f32 %v2054, 0.0
    %v2188 = vmax.f32 %v2055, 0.0
    %v2189 = vmax.f32 %v2056, 0.0
    %v2190 = vmax.f32 %v2057, 0.0
    %v2191 = vmax.f32 %v2058, 0.0
    %v2192 = vmax.f32 %v2059, 0.0
    %v2193 = vmax.f32 %v2060, 0.0
    %v2194 = vmax.f32 %v2061, 0.0
    %v2195 = vmax.f32 %v2062, 0.0
    %v2196 = vmax.f32 %v2063, 0.0
    %v2197 = vmax.f32 %v2064, 0.0
    %v2198 = vmax.f32 %v2065, 0.0
    %v2199 = vmax.f32 %v2066, 0.0
    %v2200 = vmax.f32 %v2067, 0.0
    %v2201 = vmax.f32 %v2068, 0.0
    %v2202 = vmax.f32 %v2069, 0.0
    %v2203 = vmax.f32 %v2070, 0.0
    %v2204 = vmax.f32 %v2071, 0.0
    %v2205 = vmax.f32 %v2072, 0.0
    %v2206 = vmax.f32 %v2073, 0.0
    %v2207 = vmax.f32 %v2074, 0.0
    %v2208 = vmax.f32 %v2075, 0.0
    %v2209 = vmax.f32 %v2076, 0.0
    %v2210 = vmax.f32 %v2077, 0.0
    %v2211 = vmax.f32 %v2078, 0.0
    %v2212 = vmax.f32 %v2079, 0.0
    %v2213 = vmax.f32 %v2080, 0.0
    %v2214 = vmax.f32 %v2081, 0.0
    %v2215 = vmax.f32 %v2082, 0.0
    %v2216 = vmax.f32 %v2083, 0.0
    %v2217 = vmax.f32 %v2084, 0.0
    %v2218 = vmax.f32 %v2085, 0.0
    %v2219 = vmax.f32 %v2086, 0.0
    %v2220 = vmax.f32 %v2087, 0.0
    %v2221 = vmax.f32 %v2088, 0.0
    %v2222 = vmax.f32 %v2089, 0.0
    %v2223 = vmax.f32 %v2090, 0.0
    %v2224 = vmax.f32 %v2091, 0.0
    %v2225 = vmax.f32 %v2092, 0.0
    %v2226 = vmax.f32 %v2093, 0.0
    %v2227 = vmax.f32 %v2094, 0.0
    %v2228 = vmax.f32 %v2095, 0.0
    %v2229 = vmax.f32 %v2096, 0.0
    %v2230 = vmax.f32 %v2097, 0.0
    %v2231 = vmax.f32 %v2098, 0.0
    %v2232 = vmax.f32 %v2099, 0.0
    %v2233 = vmax.f32 %v2100, 0.0
    %v2234 = vmax.f32 %v2101, 0.0
    %v2235 = vmax.f32 %v2102, 0.0
    %v2236 = vmax.f32 %v2103, 0.0
    %v2237 = vmax.f32 %v2104, 0.0
    %v2238 = vmax.f32 %v2105, 0.0
    %v2239 = vmax.f32 %v2106, 0.0
    %v2240 = vsel %vm1696, %v2107, 0.0
    %v2241 = vsel %vm1696, %v2108, 0.0
    %v2242 = vadd.f32 %v2240, %v2241
    %v2243 = vsel %vm1696, %v2109, 0.0
    %v2244 = vadd.f32 %v2242, %v2243
    %v2245 = vsel %vm1696, %v2110, 0.0
    %v2246 = vadd.f32 %v2244, %v2245
    %v2247 = vsel %vm1696, %v2111, 0.0
    %v2248 = vadd.f32 %v2246, %v2247
    %v2249 = vsel %vm1696, %v2112, 0.0
    %v2250 = vadd.f32 %v2248, %v2249
    %v2251 = vsel %vm1696, %v2113, 0.0
    %v2252 = vadd.f32 %v2250, %v2251
    %v2253 = vsel %vm1696, %v2114, 0.0
    %v2254 = vadd.f32 %v2252, %v2253
    %v2255 = vsel %vm1696, %v2115, 0.0
    %v2256 = vadd.f32 %v2254, %v2255
    %v2257 = vsel %vm1696, %v2116, 0.0
    %v2258 = vadd.f32 %v2256, %v2257
    %v2259 = vsel %vm1696, %v2117, 0.0
    %v2260 = vadd.f32 %v2258, %v2259
    %v2261 = vsel %vm1696, %v2118, 0.0
    %v2262 = vadd.f32 %v2260, %v2261
    %v2263 = vsel %vm1696, %v2119, 0.0
    %v2264 = vadd.f32 %v2262, %v2263
    %v2265 = vsel %vm1696, %v2120, 0.0
    %v2266 = vadd.f32 %v2264, %v2265
    %v2267 = vsel %vm1696, %v2121, 0.0
    %v2268 = vadd.f32 %v2266, %v2267
    %v2269 = vsel %vm1696, %v2122, 0.0
    %v2270 = vadd.f32 %v2268, %v2269
    %v2271 = vsel %vm1696, %v2123, 0.0
    %v2272 = vadd.f32 %v2270, %v2271
    %v2273 = vsel %vm1696, %v2124, 0.0
    %v2274 = vadd.f32 %v2272, %v2273
    %v2275 = vsel %vm1696, %v2125, 0.0
    %v2276 = vadd.f32 %v2274, %v2275
    %v2277 = vsel %vm1696, %v2126, 0.0
    %v2278 = vadd.f32 %v2276, %v2277
    %v2279 = vsel %vm1696, %v2127, 0.0
    %v2280 = vadd.f32 %v2278, %v2279
    %v2281 = vsel %vm1696, %v2128, 0.0
    %v2282 = vadd.f32 %v2280, %v2281
    %v2283 = vsel %vm1696, %v2129, 0.0
    %v2284 = vadd.f32 %v2282, %v2283
    %v2285 = vsel %vm1696, %v2130, 0.0
    %v2286 = vadd.f32 %v2284, %v2285
    %v2287 = vsel %vm1696, %v2131, 0.0
    %v2288 = vadd.f32 %v2286, %v2287
    %v2289 = vsel %vm1696, %v2132, 0.0
    %v2290 = vadd.f32 %v2288, %v2289
    %v2291 = vsel %vm1696, %v2133, 0.0
    %v2292 = vadd.f32 %v2290, %v2291
    %v2293 = vsel %vm1696, %v2134, 0.0
    %v2294 = vadd.f32 %v2292, %v2293
    %v2295 = vsel %vm1696, %v2135, 0.0
    %v2296 = vadd.f32 %v2294, %v2295
    %v2297 = vsel %vm1696, %v2136, 0.0
    %v2298 = vadd.f32 %v2296, %v2297
    %v2299 = vsel %vm1696, %v2137, 0.0
    %v2300 = vadd.f32 %v2298, %v2299
    %v2301 = vsel %vm1696, %v2138, 0.0
    %v2302 = vadd.f32 %v2300, %v2301
    %v2303 = vsel %vm1696, %v2139, 0.0
    %v2304 = vadd.f32 %v2302, %v2303
    %v2305 = vsel %vm1696, %v2140, 0.0
    %v2306 = vadd.f32 %v2304, %v2305
    %v2307 = vsel %vm1696, %v2141, 0.0
    %v2308 = vadd.f32 %v2306, %v2307
    %v2309 = vsel %vm1696, %v2142, 0.0
    %v2310 = vadd.f32 %v2308, %v2309
    %v2311 = vsel %vm1696, %v2143, 0.0
    %v2312 = vadd.f32 %v2310, %v2311
    %v2313 = vsel %vm1696, %v2144, 0.0
    %v2314 = vadd.f32 %v2312, %v2313
    %v2315 = vsel %vm1696, %v2145, 0.0
    %v2316 = vadd.f32 %v2314, %v2315
    %v2317 = vsel %vm1696, %v2146, 0.0
    %v2318 = vadd.f32 %v2316, %v2317
    %v2319 = vsel %vm1696, %v2147, 0.0
    %v2320 = vadd.f32 %v2318, %v2319
    %v2321 = vsel %vm1696, %v2148, 0.0
    %v2322 = vadd.f32 %v2320, %v2321
    %v2323 = vsel %vm1696, %v2149, 0.0
    %v2324 = vadd.f32 %v2322, %v2323
    %v2325 = vsel %vm1696, %v2150, 0.0
    %v2326 = vadd.f32 %v2324, %v2325
    %v2327 = vsel %vm1696, %v2151, 0.0
    %v2328 = vadd.f32 %v2326, %v2327
    %v2329 = vsel %vm1696, %v2152, 0.0
    %v2330 = vadd.f32 %v2328, %v2329
    %v2331 = vsel %vm1696, %v2153, 0.0
    %v2332 = vadd.f32 %v2330, %v2331
    %v2333 = vsel %vm1696, %v2154, 0.0
    %v2334 = vadd.f32 %v2332, %v2333
    %v2335 = vsel %vm1696, %v2155, 0.0
    %v2336 = vadd.f32 %v2334, %v2335
    %v2337 = vsel %vm1696, %v2156, 0.0
    %v2338 = vadd.f32 %v2336, %v2337
    %v2339 = vsel %vm1696, %v2157, 0.0
    %v2340 = vadd.f32 %v2338, %v2339
    %v2341 = vsel %vm1696, %v2158, 0.0
    %v2342 = vadd.f32 %v2340, %v2341
    %v2343 = vsel %vm1696, %v2159, 0.0
    %v2344 = vadd.f32 %v2342, %v2343
    %v2345 = vsel %vm1696, %v2160, 0.0
    %v2346 = vadd.f32 %v2344, %v2345
    %v2347 = vsel %vm1696, %v2161, 0.0
    %v2348 = vadd.f32 %v2346, %v2347
    %v2349 = vsel %vm1696, %v2162, 0.0
    %v2350 = vadd.f32 %v2348, %v2349
    %v2351 = vsel %vm1696, %v2163, 0.0
    %v2352 = vadd.f32 %v2350, %v2351
    %v2353 = vsel %vm1696, %v2164, 0.0
    %v2354 = vadd.f32 %v2352, %v2353
    %v2355 = vsel %vm1696, %v2165, 0.0
    %v2356 = vadd.f32 %v2354, %v2355
    %v2357 = vsel %vm1696, %v2166, 0.0
    %v2358 = vadd.f32 %v2356, %v2357
    %v2359 = vsel %vm1696, %v2167, 0.0
    %v2360 = vadd.f32 %v2358, %v2359
    %v2361 = vsel %vm1696, %v2168, 0.0
    %v2362 = vadd.f32 %v2360, %v2361
    %v2363 = vsel %vm1696, %v2169, 0.0
    %v2364 = vadd.f32 %v2362, %v2363
    %v2365 = vsel %vm1696, %v2170, 0.0
    %v2366 = vadd.f32 %v2364, %v2365
    %v2367 = vsel %vm1696, %v2171, 0.0
    %v2368 = vadd.f32 %v2366, %v2367
    %v2369 = vsel %vm1696, %v2172, 0.0
    %v2370 = vadd.f32 %v2368, %v2369
    %v2371 = vsel %vm1696, %v2173, 0.0
    %v2372 = vadd.f32 %v2370, %v2371
    %v2373 = vsel %vm1696, %v2174, 0.0
    %v2374 = vadd.f32 %v2372, %v2373
    %v2375 = vsel %vm1696, %v2175, 0.0
    %v2376 = vadd.f32 %v2374, %v2375
    %v2377 = vsel %vm1696, %v2176, 0.0
    %v2378 = vadd.f32 %v2376, %v2377
    %v2379 = vsel %vm1696, %v2177, 0.0
    %v2380 = vadd.f32 %v2378, %v2379
    %v2381 = vsel %vm1696, %v2178, 0.0
    %v2382 = vadd.f32 %v2380, %v2381
    %v2383 = vsel %vm1696, %v2179, 0.0
    %v2384 = vadd.f32 %v2382, %v2383
    %v2385 = vsel %vm1696, %v2180, 0.0
    %v2386 = vadd.f32 %v2384, %v2385
    %v2387 = vsel %vm1696, %v2181, 0.0
    %v2388 = vadd.f32 %v2386, %v2387
    %v2389 = vsel %vm1696, %v2182, 0.0
    %v2390 = vadd.f32 %v2388, %v2389
    %v2391 = vsel %vm1696, %v2183, 0.0
    %v2392 = vadd.f32 %v2390, %v2391
    %v2393 = vsel %vm1696, %v2184, 0.0
    %v2394 = vadd.f32 %v2392, %v2393
    %v2395 = vsel %vm1696, %v2185, 0.0
    %v2396 = vadd.f32 %v2394, %v2395
    %v2397 = vsel %vm1696, %v2186, 0.0
    %v2398 = vadd.f32 %v2396, %v2397
    %v2399 = vsel %vm1696, %v2187, 0.0
    %v2400 = vadd.f32 %v2398, %v2399
    %v2401 = vsel %vm1696, %v2188, 0.0
    %v2402 = vadd.f32 %v2400, %v2401
    %v2403 = vsel %vm1696, %v2189, 0.0
    %v2404 = vadd.f32 %v2402, %v2403
    %v2405 = vsel %vm1696, %v2190, 0.0
    %v2406 = vadd.f32 %v2404, %v2405
    %v2407 = vsel %vm1696, %v2191, 0.0
    %v2408 = vadd.f32 %v2406, %v2407
    %v2409 = vsel %vm1696, %v2192, 0.0
    %v2410 = vadd.f32 %v2408, %v2409
    %v2411 = vsel %vm1696, %v2193, 0.0
    %v2412 = vadd.f32 %v2410, %v2411
    %v2413 = vsel %vm1696, %v2194, 0.0
    %v2414 = vadd.f32 %v2412, %v2413
    %v2415 = vsel %vm1696, %v2195, 0.0
    %v2416 = vadd.f32 %v2414, %v2415
    %v2417 = vsel %vm1696, %v2196, 0.0
    %v2418 = vadd.f32 %v2416, %v2417
    %v2419 = vsel %vm1696, %v2197, 0.0
    %v2420 = vadd.f32 %v2418, %v2419
    %v2421 = vsel %vm1696, %v2198, 0.0
    %v2422 = vadd.f32 %v2420, %v2421
    %v2423 = vsel %vm1696, %v2199, 0.0
    %v2424 = vadd.f32 %v2422, %v2423
    %v2425 = vsel %vm1696, %v2200, 0.0
    %v2426 = vadd.f32 %v2424, %v2425
    %v2427 = vsel %vm1696, %v2201, 0.0
    %v2428 = vadd.f32 %v2426, %v2427
    %v2429 = vsel %vm1696, %v2202, 0.0
    %v2430 = vadd.f32 %v2428, %v2429
    %v2431 = vsel %vm1696, %v2203, 0.0
    %v2432 = vadd.f32 %v2430, %v2431
    %v2433 = vsel %vm1696, %v2204, 0.0
    %v2434 = vadd.f32 %v2432, %v2433
    %v2435 = vsel %vm1696, %v2205, 0.0
    %v2436 = vadd.f32 %v2434, %v2435
    %v2437 = vsel %vm1696, %v2206, 0.0
    %v2438 = vadd.f32 %v2436, %v2437
    %v2439 = vsel %vm1696, %v2207, 0.0
    %v2440 = vadd.f32 %v2438, %v2439
    %v2441 = vsel %vm1696, %v2208, 0.0
    %v2442 = vadd.f32 %v2440, %v2441
    %v2443 = vsel %vm1696, %v2209, 0.0
    %v2444 = vadd.f32 %v2442, %v2443
    %v2445 = vsel %vm1696, %v2210, 0.0
    %v2446 = vadd.f32 %v2444, %v2445
    %v2447 = vsel %vm1696, %v2211, 0.0
    %v2448 = vadd.f32 %v2446, %v2447
    %v2449 = vsel %vm1696, %v2212, 0.0
    %v2450 = vadd.f32 %v2448, %v2449
    %v2451 = vsel %vm1696, %v2213, 0.0
    %v2452 = vadd.f32 %v2450, %v2451
    %v2453 = vsel %vm1696, %v2214, 0.0
    %v2454 = vadd.f32 %v2452, %v2453
    %v2455 = vsel %vm1696, %v2215, 0.0
    %v2456 = vadd.f32 %v2454, %v2455
    %v2457 = vsel %vm1696, %v2216, 0.0
    %v2458 = vadd.f32 %v2456, %v2457
    %v2459 = vsel %vm1696, %v2217, 0.0
    %v2460 = vadd.f32 %v2458, %v2459
    %v2461 = vsel %vm1696, %v2218, 0.0
    %v2462 = vadd.f32 %v2460, %v2461
    %v2463 = vsel %vm1696, %v2219, 0.0
    %v2464 = vadd.f32 %v2462, %v2463
    %v2465 = vsel %vm1696, %v2220, 0.0
    %v2466 = vadd.f32 %v2464, %v2465
    %v2467 = vsel %vm1696, %v2221, 0.0
    %v2468 = vadd.f32 %v2466, %v2467
    %v2469 = vsel %vm1696, %v2222, 0.0
    %v2470 = vadd.f32 %v2468, %v2469
    %v2471 = vsel %vm1696, %v2223, 0.0
    %v2472 = vadd.f32 %v2470, %v2471
    %v2473 = vsel %vm1696, %v2224, 0.0
    %v2474 = vadd.f32 %v2472, %v2473
    %v2475 = vsel %vm1696, %v2225, 0.0
    %v2476 = vadd.f32 %v2474, %v2475
    %v2477 = vsel %vm1696, %v2226, 0.0
    %v2478 = vadd.f32 %v2476, %v2477
    %v2479 = vsel %vm1696, %v2227, 0.0
    %v2480 = vadd.f32 %v2478, %v2479
    %v2481 = vsel %vm1696, %v2228, 0.0
    %v2482 = vadd.f32 %v2480, %v2481
    %v2483 = vsel %vm1696, %v2229, 0.0
    %v2484 = vadd.f32 %v2482, %v2483
    %v2485 = vsel %vm1696, %v2230, 0.0
    %v2486 = vadd.f32 %v2484, %v2485
    %v2487 = vsel %vm1696, %v2231, 0.0
    %v2488 = vadd.f32 %v2486, %v2487
    %v2489 = vsel %vm1696, %v2232, 0.0
    %v2490 = vadd.f32 %v2488, %v2489
    %v2491 = vsel %vm1696, %v2233, 0.0
    %v2492 = vadd.f32 %v2490, %v2491
    %v2493 = vsel %vm1696, %v2234, 0.0
    %v2494 = vadd.f32 %v2492, %v2493
    %v2495 = vsel %vm1696, %v2235, 0.0
    %v2496 = vadd.f32 %v2494, %v2495
    %v2497 = vsel %vm1696, %v2236, 0.0
    %v2498 = vadd.f32 %v2496, %v2497
    %v2499 = vsel %vm1696, %v2237, 0.0
    %v2500 = vadd.f32 %v2498, %v2499
    %v2501 = vsel %vm1696, %v2238, 0.0
    %v2502 = vadd.f32 %v2500, %v2501
    %v2503 = vsel %vm1829, %v2239, 0.0
    %v2504 = vadd.f32 %v2502, %v2503
    %v2505 = vrot.slane %v2504, 4
    %v2506 = vadd.f32 %v2504, %v2505
    %v2507 = vrot.slane %v2506, 2
    %v2508 = vadd.f32 %v2506, %v2507
    %v2509 = vrot.slane %v2508, 1
    %v2510 = vadd.f32 %v2508, %v2509
    %v2511 = vrcp.pop 1058.0
    %v2512 = vmul.f32 %v2510, %v2511
    %v2513 = vsub.f32 %v2107, %v2512
    %v2514 = vsub.f32 %v2108, %v2512
    %v2515 = vsub.f32 %v2109, %v2512
    %v2516 = vsub.f32 %v2110, %v2512
    %v2517 = vsub.f32 %v2111, %v2512
    %v2518 = vsub.f32 %v2112, %v2512
    %v2519 = vsub.f32 %v2113, %v2512
    %v2520 = vsub.f32 %v2114, %v2512
    %v2521 = vsub.f32 %v2115, %v2512
    %v2522 = vsub.f32 %v2116, %v2512
    %v2523 = vsub.f32 %v2117, %v2512
    %v2524 = vsub.f32 %v2118, %v2512
    %v2525 = vsub.f32 %v2119, %v2512
    %v2526 = vsub.f32 %v2120, %v2512
    %v2527 = vsub.f32 %v2121, %v2512
    %v2528 = vsub.f32 %v2122, %v2512
    %v2529 = vsub.f32 %v2123, %v2512
    %v2530 = vsub.f32 %v2124, %v2512
    %v2531 = vsub.f32 %v2125, %v2512
    %v2532 = vsub.f32 %v2126, %v2512
    %v2533 = vsub.f32 %v2127, %v2512
    %v2534 = vsub.f32 %v2128, %v2512
    %v2535 = vsub.f32 %v2129, %v2512
    %v2536 = vsub.f32 %v2130, %v2512
    %v2537 = vsub.f32 %v2131, %v2512
    %v2538 = vsub.f32 %v2132, %v2512
    %v2539 = vsub.f32 %v2133, %v2512
    %v2540 = vsub.f32 %v2134, %v2512
    %v2541 = vsub.f32 %v2135, %v2512
    %v2542 = vsub.f32 %v2136, %v2512
    %v2543 = vsub.f32 %v2137, %v2512
    %v2544 = vsub.f32 %v2138, %v2512
    %v2545 = vsub.f32 %v2139, %v2512
    %v2546 = vsub.f32 %v2140, %v2512
    %v2547 = vsub.f32 %v2141, %v2512
    %v2548 = vsub.f32 %v2142, %v2512
    %v2549 = vsub.f32 %v2143, %v2512
    %v2550 = vsub.f32 %v2144, %v2512
    %v2551 = vsub.f32 %v2145, %v2512
    %v2552 = vsub.f32 %v2146, %v2512
    %v2553 = vsub.f32 %v2147, %v2512
    %v2554 = vsub.f32 %v2148, %v2512
    %v2555 = vsub.f32 %v2149, %v2512
    %v2556 = vsub.f32 %v2150, %v2512
    %v2557 = vsub.f32 %v2151, %v2512
    %v2558 = vsub.f32 %v2152, %v2512
    %v2559 = vsub.f32 %v2153, %v2512
    %v2560 = vsub.f32 %v2154, %v2512
    %v2561 = vsub.f32 %v2155, %v2512
    %v2562 = vsub.f32 %v2156, %v2512
    %v2563 = vsub.f32 %v2157, %v2512
    %v2564 = vsub.f32 %v2158, %v2512
    %v2565 = vsub.f32 %v2159, %v2512
    %v2566 = vsub.f32 %v2160, %v2512
    %v2567 = vsub.f32 %v2161, %v2512
    %v2568 = vsub.f32 %v2162, %v2512
    %v2569 = vsub.f32 %v2163, %v2512
    %v2570 = vsub.f32 %v2164, %v2512
    %v2571 = vsub.f32 %v2165, %v2512
    %v2572 = vsub.f32 %v2166, %v2512
    %v2573 = vsub.f32 %v2167, %v2512
    %v2574 = vsub.f32 %v2168, %v2512
    %v2575 = vsub.f32 %v2169, %v2512
    %v2576 = vsub.f32 %v2170, %v2512
    %v2577 = vsub.f32 %v2171, %v2512
    %v2578 = vsub.f32 %v2172, %v2512
    %v2579 = vsub.f32 %v2173, %v2512
    %v2580 = vsub.f32 %v2174, %v2512
    %v2581 = vsub.f32 %v2175, %v2512
    %v2582 = vsub.f32 %v2176, %v2512
    %v2583 = vsub.f32 %v2177, %v2512
    %v2584 = vsub.f32 %v2178, %v2512
    %v2585 = vsub.f32 %v2179, %v2512
    %v2586 = vsub.f32 %v2180, %v2512
    %v2587 = vsub.f32 %v2181, %v2512
    %v2588 = vsub.f32 %v2182, %v2512
    %v2589 = vsub.f32 %v2183, %v2512
    %v2590 = vsub.f32 %v2184, %v2512
    %v2591 = vsub.f32 %v2185, %v2512
    %v2592 = vsub.f32 %v2186, %v2512
    %v2593 = vsub.f32 %v2187, %v2512
    %v2594 = vsub.f32 %v2188, %v2512
    %v2595 = vsub.f32 %v2189, %v2512
    %v2596 = vsub.f32 %v2190, %v2512
    %v2597 = vsub.f32 %v2191, %v2512
    %v2598 = vsub.f32 %v2192, %v2512
    %v2599 = vsub.f32 %v2193, %v2512
    %v2600 = vsub.f32 %v2194, %v2512
    %v2601 = vsub.f32 %v2195, %v2512
    %v2602 = vsub.f32 %v2196, %v2512
    %v2603 = vsub.f32 %v2197, %v2512
    %v2604 = vsub.f32 %v2198, %v2512
    %v2605 = vsub.f32 %v2199, %v2512
    %v2606 = vsub.f32 %v2200, %v2512
    %v2607 = vsub.f32 %v2201, %v2512
    %v2608 = vsub.f32 %v2202, %v2512
    %v2609 = vsub.f32 %v2203, %v2512
    %v2610 = vsub.f32 %v2204, %v2512
    %v2611 = vsub.f32 %v2205, %v2512
    %v2612 = vsub.f32 %v2206, %v2512
    %v2613 = vsub.f32 %v2207, %v2512
    %v2614 = vsub.f32 %v2208, %v2512
    %v2615 = vsub.f32 %v2209, %v2512
    %v2616 = vsub.f32 %v2210, %v2512
    %v2617 = vsub.f32 %v2211, %v2512
    %v2618 = vsub.f32 %v2212, %v2512
    %v2619 = vsub.f32 %v2213, %v2512
    %v2620 = vsub.f32 %v2214, %v2512
    %v2621 = vsub.f32 %v2215, %v2512
    %v2622 = vsub.f32 %v2216, %v2512
    %v2623 = vsub.f32 %v2217, %v2512
    %v2624 = vsub.f32 %v2218, %v2512
    %v2625 = vsub.f32 %v2219, %v2512
    %v2626 = vsub.f32 %v2220, %v2512
    %v2627 = vsub.f32 %v2221, %v2512
    %v2628 = vsub.f32 %v2222, %v2512
    %v2629 = vsub.f32 %v2223, %v2512
    %v2630 = vsub.f32 %v2224, %v2512
    %v2631 = vsub.f32 %v2225, %v2512
    %v2632 = vsub.f32 %v2226, %v2512
    %v2633 = vsub.f32 %v2227, %v2512
    %v2634 = vsub.f32 %v2228, %v2512
    %v2635 = vsub.f32 %v2229, %v2512
    %v2636 = vsub.f32 %v2230, %v2512
    %v2637 = vsub.f32 %v2231, %v2512
    %v2638 = vsub.f32 %v2232, %v2512
    %v2639 = vsub.f32 %v2233, %v2512
    %v2640 = vsub.f32 %v2234, %v2512
    %v2641 = vsub.f32 %v2235, %v2512
    %v2642 = vsub.f32 %v2236, %v2512
    %v2643 = vsub.f32 %v2237, %v2512
    %v2644 = vsub.f32 %v2238, %v2512
    %v2645 = vsub.f32 %v2239, %v2512
    %v2646 = vmul.f32 %v2513, %v2513
    %v2647 = vmul.f32 %v2514, %v2514
    %v2648 = vmul.f32 %v2515, %v2515
    %v2649 = vmul.f32 %v2516, %v2516
    %v2650 = vmul.f32 %v2517, %v2517
    %v2651 = vmul.f32 %v2518, %v2518
    %v2652 = vmul.f32 %v2519, %v2519
    %v2653 = vmul.f32 %v2520, %v2520
    %v2654 = vmul.f32 %v2521, %v2521
    %v2655 = vmul.f32 %v2522, %v2522
    %v2656 = vmul.f32 %v2523, %v2523
    %v2657 = vmul.f32 %v2524, %v2524
    %v2658 = vmul.f32 %v2525, %v2525
    %v2659 = vmul.f32 %v2526, %v2526
    %v2660 = vmul.f32 %v2527, %v2527
    %v2661 = vmul.f32 %v2528, %v2528
    %v2662 = vmul.f32 %v2529, %v2529
    %v2663 = vmul.f32 %v2530, %v2530
    %v2664 = vmul.f32 %v2531, %v2531
    %v2665 = vmul.f32 %v2532, %v2532
    %v2666 = vmul.f32 %v2533, %v2533
    %v2667 = vmul.f32 %v2534, %v2534
    %v2668 = vmul.f32 %v2535, %v2535
    %v2669 = vmul.f32 %v2536, %v2536
    %v2670 = vmul.f32 %v2537, %v2537
    %v2671 = vmul.f32 %v2538, %v2538
    %v2672 = vmul.f32 %v2539, %v2539
    %v2673 = vmul.f32 %v2540, %v2540
    %v2674 = vmul.f32 %v2541, %v2541
    %v2675 = vmul.f32 %v2542, %v2542
    %v2676 = vmul.f32 %v2543, %v2543
    %v2677 = vmul.f32 %v2544, %v2544
    %v2678 = vmul.f32 %v2545, %v2545
    %v2679 = vmul.f32 %v2546, %v2546
    %v2680 = vmul.f32 %v2547, %v2547
    %v2681 = vmul.f32 %v2548, %v2548
    %v2682 = vmul.f32 %v2549, %v2549
    %v2683 = vmul.f32 %v2550, %v2550
    %v2684 = vmul.f32 %v2551, %v2551
    %v2685 = vmul.f32 %v2552, %v2552
    %v2686 = vmul.f32 %v2553, %v2553
    %v2687 = vmul.f32 %v2554, %v2554
    %v2688 = vmul.f32 %v2555, %v2555
    %v2689 = vmul.f32 %v2556, %v2556
    %v2690 = vmul.f32 %v2557, %v2557
    %v2691 = vmul.f32 %v2558, %v2558
    %v2692 = vmul.f32 %v2559, %v2559
    %v2693 = vmul.f32 %v2560, %v2560
    %v2694 = vmul.f32 %v2561, %v2561
    %v2695 = vmul.f32 %v2562, %v2562
    %v2696 = vmul.f32 %v2563, %v2563
    %v2697 = vmul.f32 %v2564, %v2564
    %v2698 = vmul.f32 %v2565, %v2565
    %v2699 = vmul.f32 %v2566, %v2566
    %v2700 = vmul.f32 %v2567, %v2567
    %v2701 = vmul.f32 %v2568, %v2568
    %v2702 = vmul.f32 %v2569, %v2569
    %v2703 = vmul.f32 %v2570, %v2570
    %v2704 = vmul.f32 %v2571, %v2571
    %v2705 = vmul.f32 %v2572, %v2572
    %v2706 = vmul.f32 %v2573, %v2573
    %v2707 = vmul.f32 %v2574, %v2574
    %v2708 = vmul.f32 %v2575, %v2575
    %v2709 = vmul.f32 %v2576, %v2576
    %v2710 = vmul.f32 %v2577, %v2577
    %v2711 = vmul.f32 %v2578, %v2578
    %v2712 = vmul.f32 %v2579, %v2579
    %v2713 = vmul.f32 %v2580, %v2580
    %v2714 = vmul.f32 %v2581, %v2581
    %v2715 = vmul.f32 %v2582, %v2582
    %v2716 = vmul.f32 %v2583, %v2583
    %v2717 = vmul.f32 %v2584, %v2584
    %v2718 = vmul.f32 %v2585, %v2585
    %v2719 = vmul.f32 %v2586, %v2586
    %v2720 = vmul.f32 %v2587, %v2587
    %v2721 = vmul.f32 %v2588, %v2588
    %v2722 = vmul.f32 %v2589, %v2589
    %v2723 = vmul.f32 %v2590, %v2590
    %v2724 = vmul.f32 %v2591, %v2591
    %v2725 = vmul.f32 %v2592, %v2592
    %v2726 = vmul.f32 %v2593, %v2593
    %v2727 = vmul.f32 %v2594, %v2594
    %v2728 = vmul.f32 %v2595, %v2595
    %v2729 = vmul.f32 %v2596, %v2596
    %v2730 = vmul.f32 %v2597, %v2597
    %v2731 = vmul.f32 %v2598, %v2598
    %v2732 = vmul.f32 %v2599, %v2599
    %v2733 = vmul.f32 %v2600, %v2600
    %v2734 = vmul.f32 %v2601, %v2601
    %v2735 = vmul.f32 %v2602, %v2602
    %v2736 = vmul.f32 %v2603, %v2603
    %v2737 = vmul.f32 %v2604, %v2604
    %v2738 = vmul.f32 %v2605, %v2605
    %v2739 = vmul.f32 %v2606, %v2606
    %v2740 = vmul.f32 %v2607, %v2607
    %v2741 = vmul.f32 %v2608, %v2608
    %v2742 = vmul.f32 %v2609, %v2609
    %v2743 = vmul.f32 %v2610, %v2610
    %v2744 = vmul.f32 %v2611, %v2611
    %v2745 = vmul.f32 %v2612, %v2612
    %v2746 = vmul.f32 %v2613, %v2613
    %v2747 = vmul.f32 %v2614, %v2614
    %v2748 = vmul.f32 %v2615, %v2615
    %v2749 = vmul.f32 %v2616, %v2616
    %v2750 = vmul.f32 %v2617, %v2617
    %v2751 = vmul.f32 %v2618, %v2618
    %v2752 = vmul.f32 %v2619, %v2619
    %v2753 = vmul.f32 %v2620, %v2620
    %v2754 = vmul.f32 %v2621, %v2621
    %v2755 = vmul.f32 %v2622, %v2622
    %v2756 = vmul.f32 %v2623, %v2623
    %v2757 = vmul.f32 %v2624, %v2624
    %v2758 = vmul.f32 %v2625, %v2625
    %v2759 = vmul.f32 %v2626, %v2626
    %v2760 = vmul.f32 %v2627, %v2627
    %v2761 = vmul.f32 %v2628, %v2628
    %v2762 = vmul.f32 %v2629, %v2629
    %v2763 = vmul.f32 %v2630, %v2630
    %v2764 = vmul.f32 %v2631, %v2631
    %v2765 = vmul.f32 %v2632, %v2632
    %v2766 = vmul.f32 %v2633, %v2633
    %v2767 = vmul.f32 %v2634, %v2634
    %v2768 = vmul.f32 %v2635, %v2635
    %v2769 = vmul.f32 %v2636, %v2636
    %v2770 = vmul.f32 %v2637, %v2637
    %v2771 = vmul.f32 %v2638, %v2638
    %v2772 = vmul.f32 %v2639, %v2639
    %v2773 = vmul.f32 %v2640, %v2640
    %v2774 = vmul.f32 %v2641, %v2641
    %v2775 = vmul.f32 %v2642, %v2642
    %v2776 = vmul.f32 %v2643, %v2643
    %v2777 = vmul.f32 %v2644, %v2644
    %v2778 = vmul.f32 %v2645, %v2645
    %v2779 = vsel %vm1696, %v2646, 0.0
    %v2780 = vsel %vm1696, %v2647, 0.0
    %v2781 = vadd.f32 %v2779, %v2780
    %v2782 = vsel %vm1696, %v2648, 0.0
    %v2783 = vadd.f32 %v2781, %v2782
    %v2784 = vsel %vm1696, %v2649, 0.0
    %v2785 = vadd.f32 %v2783, %v2784
    %v2786 = vsel %vm1696, %v2650, 0.0
    %v2787 = vadd.f32 %v2785, %v2786
    %v2788 = vsel %vm1696, %v2651, 0.0
    %v2789 = vadd.f32 %v2787, %v2788
    %v2790 = vsel %vm1696, %v2652, 0.0
    %v2791 = vadd.f32 %v2789, %v2790
    %v2792 = vsel %vm1696, %v2653, 0.0
    %v2793 = vadd.f32 %v2791, %v2792
    %v2794 = vsel %vm1696, %v2654, 0.0
    %v2795 = vadd.f32 %v2793, %v2794
    %v2796 = vsel %vm1696, %v2655, 0.0
    %v2797 = vadd.f32 %v2795, %v2796
    %v2798 = vsel %vm1696, %v2656, 0.0
    %v2799 = vadd.f32 %v2797, %v2798
    %v2800 = vsel %vm1696, %v2657, 0.0
    %v2801 = vadd.f32 %v2799, %v2800
    %v2802 = vsel %vm1696, %v2658, 0.0
    %v2803 = vadd.f32 %v2801, %v2802
    %v2804 = vsel %vm1696, %v2659, 0.0
    %v2805 = vadd.f32 %v2803, %v2804
    %v2806 = vsel %vm1696, %v2660, 0.0
    %v2807 = vadd.f32 %v2805, %v2806
    %v2808 = vsel %vm1696, %v2661, 0.0
    %v2809 = vadd.f32 %v2807, %v2808
    %v2810 = vsel %vm1696, %v2662, 0.0
    %v2811 = vadd.f32 %v2809, %v2810
    %v2812 = vsel %vm1696, %v2663, 0.0
    %v2813 = vadd.f32 %v2811, %v2812
    %v2814 = vsel %vm1696, %v2664, 0.0
    %v2815 = vadd.f32 %v2813, %v2814
    %v2816 = vsel %vm1696, %v2665, 0.0
    %v2817 = vadd.f32 %v2815, %v2816
    %v2818 = vsel %vm1696, %v2666, 0.0
    %v2819 = vadd.f32 %v2817, %v2818
    %v2820 = vsel %vm1696, %v2667, 0.0
    %v2821 = vadd.f32 %v2819, %v2820
    %v2822 = vsel %vm1696, %v2668, 0.0
    %v2823 = vadd.f32 %v2821, %v2822
    %v2824 = vsel %vm1696, %v2669, 0.0
    %v2825 = vadd.f32 %v2823, %v2824
    %v2826 = vsel %vm1696, %v2670, 0.0
    %v2827 = vadd.f32 %v2825, %v2826
    %v2828 = vsel %vm1696, %v2671, 0.0
    %v2829 = vadd.f32 %v2827, %v2828
    %v2830 = vsel %vm1696, %v2672, 0.0
    %v2831 = vadd.f32 %v2829, %v2830
    %v2832 = vsel %vm1696, %v2673, 0.0
    %v2833 = vadd.f32 %v2831, %v2832
    %v2834 = vsel %vm1696, %v2674, 0.0
    %v2835 = vadd.f32 %v2833, %v2834
    %v2836 = vsel %vm1696, %v2675, 0.0
    %v2837 = vadd.f32 %v2835, %v2836
    %v2838 = vsel %vm1696, %v2676, 0.0
    %v2839 = vadd.f32 %v2837, %v2838
    %v2840 = vsel %vm1696, %v2677, 0.0
    %v2841 = vadd.f32 %v2839, %v2840
    %v2842 = vsel %vm1696, %v2678, 0.0
    %v2843 = vadd.f32 %v2841, %v2842
    %v2844 = vsel %vm1696, %v2679, 0.0
    %v2845 = vadd.f32 %v2843, %v2844
    %v2846 = vsel %vm1696, %v2680, 0.0
    %v2847 = vadd.f32 %v2845, %v2846
    %v2848 = vsel %vm1696, %v2681, 0.0
    %v2849 = vadd.f32 %v2847, %v2848
    %v2850 = vsel %vm1696, %v2682, 0.0
    %v2851 = vadd.f32 %v2849, %v2850
    %v2852 = vsel %vm1696, %v2683, 0.0
    %v2853 = vadd.f32 %v2851, %v2852
    %v2854 = vsel %vm1696, %v2684, 0.0
    %v2855 = vadd.f32 %v2853, %v2854
    %v2856 = vsel %vm1696, %v2685, 0.0
    %v2857 = vadd.f32 %v2855, %v2856
    %v2858 = vsel %vm1696, %v2686, 0.0
    %v2859 = vadd.f32 %v2857, %v2858
    %v2860 = vsel %vm1696, %v2687, 0.0
    %v2861 = vadd.f32 %v2859, %v2860
    %v2862 = vsel %vm1696, %v2688, 0.0
    %v2863 = vadd.f32 %v2861, %v2862
    %v2864 = vsel %vm1696, %v2689, 0.0
    %v2865 = vadd.f32 %v2863, %v2864
    %v2866 = vsel %vm1696, %v2690, 0.0
    %v2867 = vadd.f32 %v2865, %v2866
    %v2868 = vsel %vm1696, %v2691, 0.0
    %v2869 = vadd.f32 %v2867, %v2868
    %v2870 = vsel %vm1696, %v2692, 0.0
    %v2871 = vadd.f32 %v2869, %v2870
    %v2872 = vsel %vm1696, %v2693, 0.0
    %v2873 = vadd.f32 %v2871, %v2872
    %v2874 = vsel %vm1696, %v2694, 0.0
    %v2875 = vadd.f32 %v2873, %v2874
    %v2876 = vsel %vm1696, %v2695, 0.0
    %v2877 = vadd.f32 %v2875, %v2876
    %v2878 = vsel %vm1696, %v2696, 0.0
    %v2879 = vadd.f32 %v2877, %v2878
    %v2880 = vsel %vm1696, %v2697, 0.0
    %v2881 = vadd.f32 %v2879, %v2880
    %v2882 = vsel %vm1696, %v2698, 0.0
    %v2883 = vadd.f32 %v2881, %v2882
    %v2884 = vsel %vm1696, %v2699, 0.0
    %v2885 = vadd.f32 %v2883, %v2884
    %v2886 = vsel %vm1696, %v2700, 0.0
    %v2887 = vadd.f32 %v2885, %v2886
    %v2888 = vsel %vm1696, %v2701, 0.0
    %v2889 = vadd.f32 %v2887, %v2888
    %v2890 = vsel %vm1696, %v2702, 0.0
    %v2891 = vadd.f32 %v2889, %v2890
    %v2892 = vsel %vm1696, %v2703, 0.0
    %v2893 = vadd.f32 %v2891, %v2892
    %v2894 = vsel %vm1696, %v2704, 0.0
    %v2895 = vadd.f32 %v2893, %v2894
    %v2896 = vsel %vm1696, %v2705, 0.0
    %v2897 = vadd.f32 %v2895, %v2896
    %v2898 = vsel %vm1696, %v2706, 0.0
    %v2899 = vadd.f32 %v2897, %v2898
    %v2900 = vsel %vm1696, %v2707, 0.0
    %v2901 = vadd.f32 %v2899, %v2900
    %v2902 = vsel %vm1696, %v2708, 0.0
    %v2903 = vadd.f32 %v2901, %v2902
    %v2904 = vsel %vm1696, %v2709, 0.0
    %v2905 = vadd.f32 %v2903, %v2904
    %v2906 = vsel %vm1696, %v2710, 0.0
    %v2907 = vadd.f32 %v2905, %v2906
    %v2908 = vsel %vm1696, %v2711, 0.0
    %v2909 = vadd.f32 %v2907, %v2908
    %v2910 = vsel %vm1696, %v2712, 0.0
    %v2911 = vadd.f32 %v2909, %v2910
    %v2912 = vsel %vm1696, %v2713, 0.0
    %v2913 = vadd.f32 %v2911, %v2912
    %v2914 = vsel %vm1696, %v2714, 0.0
    %v2915 = vadd.f32 %v2913, %v2914
    %v2916 = vsel %vm1696, %v2715, 0.0
    %v2917 = vadd.f32 %v2915, %v2916
    %v2918 = vsel %vm1696, %v2716, 0.0
    %v2919 = vadd.f32 %v2917, %v2918
    %v2920 = vsel %vm1696, %v2717, 0.0
    %v2921 = vadd.f32 %v2919, %v2920
    %v2922 = vsel %vm1696, %v2718, 0.0
    %v2923 = vadd.f32 %v2921, %v2922
    %v2924 = vsel %vm1696, %v2719, 0.0
    %v2925 = vadd.f32 %v2923, %v2924
    %v2926 = vsel %vm1696, %v2720, 0.0
    %v2927 = vadd.f32 %v2925, %v2926
    %v2928 = vsel %vm1696, %v2721, 0.0
    %v2929 = vadd.f32 %v2927, %v2928
    %v2930 = vsel %vm1696, %v2722, 0.0
    %v2931 = vadd.f32 %v2929, %v2930
    %v2932 = vsel %vm1696, %v2723, 0.0
    %v2933 = vadd.f32 %v2931, %v2932
    %v2934 = vsel %vm1696, %v2724, 0.0
    %v2935 = vadd.f32 %v2933, %v2934
    %v2936 = vsel %vm1696, %v2725, 0.0
    %v2937 = vadd.f32 %v2935, %v2936
    %v2938 = vsel %vm1696, %v2726, 0.0
    %v2939 = vadd.f32 %v2937, %v2938
    %v2940 = vsel %vm1696, %v2727, 0.0
    %v2941 = vadd.f32 %v2939, %v2940
    %v2942 = vsel %vm1696, %v2728, 0.0
    %v2943 = vadd.f32 %v2941, %v2942
    %v2944 = vsel %vm1696, %v2729, 0.0
    %v2945 = vadd.f32 %v2943, %v2944
    %v2946 = vsel %vm1696, %v2730, 0.0
    %v2947 = vadd.f32 %v2945, %v2946
    %v2948 = vsel %vm1696, %v2731, 0.0
    %v2949 = vadd.f32 %v2947, %v2948
    %v2950 = vsel %vm1696, %v2732, 0.0
    %v2951 = vadd.f32 %v2949, %v2950
    %v2952 = vsel %vm1696, %v2733, 0.0
    %v2953 = vadd.f32 %v2951, %v2952
    %v2954 = vsel %vm1696, %v2734, 0.0
    %v2955 = vadd.f32 %v2953, %v2954
    %v2956 = vsel %vm1696, %v2735, 0.0
    %v2957 = vadd.f32 %v2955, %v2956
    %v2958 = vsel %vm1696, %v2736, 0.0
    %v2959 = vadd.f32 %v2957, %v2958
    %v2960 = vsel %vm1696, %v2737, 0.0
    %v2961 = vadd.f32 %v2959, %v2960
    %v2962 = vsel %vm1696, %v2738, 0.0
    %v2963 = vadd.f32 %v2961, %v2962
    %v2964 = vsel %vm1696, %v2739, 0.0
    %v2965 = vadd.f32 %v2963, %v2964
    %v2966 = vsel %vm1696, %v2740, 0.0
    %v2967 = vadd.f32 %v2965, %v2966
    %v2968 = vsel %vm1696, %v2741, 0.0
    %v2969 = vadd.f32 %v2967, %v2968
    %v2970 = vsel %vm1696, %v2742, 0.0
    %v2971 = vadd.f32 %v2969, %v2970
    %v2972 = vsel %vm1696, %v2743, 0.0
    %v2973 = vadd.f32 %v2971, %v2972
    %v2974 = vsel %vm1696, %v2744, 0.0
    %v2975 = vadd.f32 %v2973, %v2974
    %v2976 = vsel %vm1696, %v2745, 0.0
    %v2977 = vadd.f32 %v2975, %v2976
    %v2978 = vsel %vm1696, %v2746, 0.0
    %v2979 = vadd.f32 %v2977, %v2978
    %v2980 = vsel %vm1696, %v2747, 0.0
    %v2981 = vadd.f32 %v2979, %v2980
    %v2982 = vsel %vm1696, %v2748, 0.0
    %v2983 = vadd.f32 %v2981, %v2982
    %v2984 = vsel %vm1696, %v2749, 0.0
    %v2985 = vadd.f32 %v2983, %v2984
    %v2986 = vsel %vm1696, %v2750, 0.0
    %v2987 = vadd.f32 %v2985, %v2986
    %v2988 = vsel %vm1696, %v2751, 0.0
    %v2989 = vadd.f32 %v2987, %v2988
    %v2990 = vsel %vm1696, %v2752, 0.0
    %v2991 = vadd.f32 %v2989, %v2990
    %v2992 = vsel %vm1696, %v2753, 0.0
    %v2993 = vadd.f32 %v2991, %v2992
    %v2994 = vsel %vm1696, %v2754, 0.0
    %v2995 = vadd.f32 %v2993, %v2994
    %v2996 = vsel %vm1696, %v2755, 0.0
    %v2997 = vadd.f32 %v2995, %v2996
    %v2998 = vsel %vm1696, %v2756, 0.0
    %v2999 = vadd.f32 %v2997, %v2998
    %v3000 = vsel %vm1696, %v2757, 0.0
    %v3001 = vadd.f32 %v2999, %v3000
    %v3002 = vsel %vm1696, %v2758, 0.0
    %v3003 = vadd.f32 %v3001, %v3002
    %v3004 = vsel %vm1696, %v2759, 0.0
    %v3005 = vadd.f32 %v3003, %v3004
    %v3006 = vsel %vm1696, %v2760, 0.0
    %v3007 = vadd.f32 %v3005, %v3006
    %v3008 = vsel %vm1696, %v2761, 0.0
    %v3009 = vadd.f32 %v3007, %v3008
    %v3010 = vsel %vm1696, %v2762, 0.0
    %v3011 = vadd.f32 %v3009, %v3010
    %v3012 = vsel %vm1696, %v2763, 0.0
    %v3013 = vadd.f32 %v3011, %v3012
    %v3014 = vsel %vm1696, %v2764, 0.0
    %v3015 = vadd.f32 %v3013, %v3014
    %v3016 = vsel %vm1696, %v2765, 0.0
    %v3017 = vadd.f32 %v3015, %v3016
    %v3018 = vsel %vm1696, %v2766, 0.0
    %v3019 = vadd.f32 %v3017, %v3018
    %v3020 = vsel %vm1696, %v2767, 0.0
    %v3021 = vadd.f32 %v3019, %v3020
    %v3022 = vsel %vm1696, %v2768, 0.0
    %v3023 = vadd.f32 %v3021, %v3022
    %v3024 = vsel %vm1696, %v2769, 0.0
    %v3025 = vadd.f32 %v3023, %v3024
    %v3026 = vsel %vm1696, %v2770, 0.0
    %v3027 = vadd.f32 %v3025, %v3026
    %v3028 = vsel %vm1696, %v2771, 0.0
    %v3029 = vadd.f32 %v3027, %v3028
    %v3030 = vsel %vm1696, %v2772, 0.0
    %v3031 = vadd.f32 %v3029, %v3030
    %v3032 = vsel %vm1696, %v2773, 0.0
    %v3033 = vadd.f32 %v3031, %v3032
    %v3034 = vsel %vm1696, %v2774, 0.0
    %v3035 = vadd.f32 %v3033, %v3034
    %v3036 = vsel %vm1696, %v2775, 0.0
    %v3037 = vadd.f32 %v3035, %v3036
    %v3038 = vsel %vm1696, %v2776, 0.0
    %v3039 = vadd.f32 %v3037, %v3038
    %v3040 = vsel %vm1696, %v2777, 0.0
    %v3041 = vadd.f32 %v3039, %v3040
    %v3042 = vsel %vm1829, %v2778, 0.0
    %v3043 = vadd.f32 %v3041, %v3042
    %v3044 = vrot.slane %v3043, 4
    %v3045 = vadd.f32 %v3043, %v3044
    %v3046 = vrot.slane %v3045, 2
    %v3047 = vadd.f32 %v3045, %v3046
    %v3048 = vrot.slane %v3047, 1
    %v3049 = vadd.f32 %v3047, %v3048
    %v3050 = vmul.f32 %v3049, %v2511
    %v3051 = vadd.f32 %v3050, 1e-05
    %v3052 = vrsqrt.pop %v3051
    %v3053 = vmul.f32 %v2513, %v3052
    %v3054 = vmul.f32 %v2514, %v3052
    %v3055 = vmul.f32 %v2515, %v3052
    %v3056 = vmul.f32 %v2516, %v3052
    %v3057 = vmul.f32 %v2517, %v3052
    %v3058 = vmul.f32 %v2518, %v3052
    %v3059 = vmul.f32 %v2519, %v3052
    %v3060 = vmul.f32 %v2520, %v3052
    %v3061 = vmul.f32 %v2521, %v3052
    %v3062 = vmul.f32 %v2522, %v3052
    %v3063 = vmul.f32 %v2523, %v3052
    %v3064 = vmul.f32 %v2524, %v3052
    %v3065 = vmul.f32 %v2525, %v3052
    %v3066 = vmul.f32 %v2526, %v3052
    %v3067 = vmul.f32 %v2527, %v3052
    %v3068 = vmul.f32 %v2528, %v3052
    %v3069 = vmul.f32 %v2529, %v3052
    %v3070 = vmul.f32 %v2530, %v3052
    %v3071 = vmul.f32 %v2531, %v3052
    %v3072 = vmul.f32 %v2532, %v3052
    %v3073 = vmul.f32 %v2533, %v3052
    %v3074 = vmul.f32 %v2534, %v3052
    %v3075 = vmul.f32 %v2535, %v3052
    %v3076 = vmul.f32 %v2536, %v3052
    %v3077 = vmul.f32 %v2537, %v3052
    %v3078 = vmul.f32 %v2538, %v3052
    %v3079 = vmul.f32 %v2539, %v3052
    %v3080 = vmul.f32 %v2540, %v3052
    %v3081 = vmul.f32 %v2541, %v3052
    %v3082 = vmul.f32 %v2542, %v3052
    %v3083 = vmul.f32 %v2543, %v3052
    %v3084 = vmul.f32 %v2544, %v3052
    %v3085 = vmul.f32 %v2545, %v3052
    %v3086 = vmul.f32 %v2546, %v3052
    %v3087 = vmul.f32 %v2547, %v3052
    %v3088 = vmul.f32 %v2548, %v3052
    %v3089 = vmul.f32 %v2549, %v3052
    %v3090 = vmul.f32 %v2550, %v3052
    %v3091 = vmul.f32 %v2551, %v3052
    %v3092 = vmul.f32 %v2552, %v3052
    %v3093 = vmul.f32 %v2553, %v3052
    %v3094 = vmul.f32 %v2554, %v3052
    %v3095 = vmul.f32 %v2555, %v3052
    %v3096 = vmul.f32 %v2556, %v3052
    %v3097 = vmul.f32 %v2557, %v3052
    %v3098 = vmul.f32 %v2558, %v3052
    %v3099 = vmul.f32 %v2559, %v3052
    %v3100 = vmul.f32 %v2560, %v3052
    %v3101 = vmul.f32 %v2561, %v3052
    %v3102 = vmul.f32 %v2562, %v3052
    %v3103 = vmul.f32 %v2563, %v3052
    %v3104 = vmul.f32 %v2564, %v3052
    %v3105 = vmul.f32 %v2565, %v3052
    %v3106 = vmul.f32 %v2566, %v3052
    %v3107 = vmul.f32 %v2567, %v3052
    %v3108 = vmul.f32 %v2568, %v3052
    %v3109 = vmul.f32 %v2569, %v3052
    %v3110 = vmul.f32 %v2570, %v3052
    %v3111 = vmul.f32 %v2571, %v3052
    %v3112 = vmul.f32 %v2572, %v3052
    %v3113 = vmul.f32 %v2573, %v3052
    %v3114 = vmul.f32 %v2574, %v3052
    %v3115 = vmul.f32 %v2575, %v3052
    %v3116 = vmul.f32 %v2576, %v3052
    %v3117 = vmul.f32 %v2577, %v3052
    %v3118 = vmul.f32 %v2578, %v3052
    %v3119 = vmul.f32 %v2579, %v3052
    %v3120 = vmul.f32 %v2580, %v3052
    %v3121 = vmul.f32 %v2581, %v3052
    %v3122 = vmul.f32 %v2582, %v3052
    %v3123 = vmul.f32 %v2583, %v3052
    %v3124 = vmul.f32 %v2584, %v3052
    %v3125 = vmul.f32 %v2585, %v3052
    %v3126 = vmul.f32 %v2586, %v3052
    %v3127 = vmul.f32 %v2587, %v3052
    %v3128 = vmul.f32 %v2588, %v3052
    %v3129 = vmul.f32 %v2589, %v3052
    %v3130 = vmul.f32 %v2590, %v3052
    %v3131 = vmul.f32 %v2591, %v3052
    %v3132 = vmul.f32 %v2592, %v3052
    %v3133 = vmul.f32 %v2593, %v3052
    %v3134 = vmul.f32 %v2594, %v3052
    %v3135 = vmul.f32 %v2595, %v3052
    %v3136 = vmul.f32 %v2596, %v3052
    %v3137 = vmul.f32 %v2597, %v3052
    %v3138 = vmul.f32 %v2598, %v3052
    %v3139 = vmul.f32 %v2599, %v3052
    %v3140 = vmul.f32 %v2600, %v3052
    %v3141 = vmul.f32 %v2601, %v3052
    %v3142 = vmul.f32 %v2602, %v3052
    %v3143 = vmul.f32 %v2603, %v3052
    %v3144 = vmul.f32 %v2604, %v3052
    %v3145 = vmul.f32 %v2605, %v3052
    %v3146 = vmul.f32 %v2606, %v3052
    %v3147 = vmul.f32 %v2607, %v3052
    %v3148 = vmul.f32 %v2608, %v3052
    %v3149 = vmul.f32 %v2609, %v3052
    %v3150 = vmul.f32 %v2610, %v3052
    %v3151 = vmul.f32 %v2611, %v3052
    %v3152 = vmul.f32 %v2612, %v3052
    %v3153 = vmul.f32 %v2613, %v3052
    %v3154 = vmul.f32 %v2614, %v3052
    %v3155 = vmul.f32 %v2615, %v3052
    %v3156 = vmul.f32 %v2616, %v3052
    %v3157 = vmul.f32 %v2617, %v3052
    %v3158 = vmul.f32 %v2618, %v3052
    %v3159 = vmul.f32 %v2619, %v3052
    %v3160 = vmul.f32 %v2620, %v3052
    %v3161 = vmul.f32 %v2621, %v3052
    %v3162 = vmul.f32 %v2622, %v3052
    %v3163 = vmul.f32 %v2623, %v3052
    %v3164 = vmul.f32 %v2624, %v3052
    %v3165 = vmul.f32 %v2625, %v3052
    %v3166 = vmul.f32 %v2626, %v3052
    %v3167 = vmul.f32 %v2627, %v3052
    %v3168 = vmul.f32 %v2628, %v3052
    %v3169 = vmul.f32 %v2629, %v3052
    %v3170 = vmul.f32 %v2630, %v3052
    %v3171 = vmul.f32 %v2631, %v3052
    %v3172 = vmul.f32 %v2632, %v3052
    %v3173 = vmul.f32 %v2633, %v3052
    %v3174 = vmul.f32 %v2634, %v3052
    %v3175 = vmul.f32 %v2635, %v3052
    %v3176 = vmul.f32 %v2636, %v3052
    %v3177 = vmul.f32 %v2637, %v3052
    %v3178 = vmul.f32 %v2638, %v3052
    %v3179 = vmul.f32 %v2639, %v3052
    %v3180 = vmul.f32 %v2640, %v3052
    %v3181 = vmul.f32 %v2641, %v3052
    %v3182 = vmul.f32 %v2642, %v3052
    %v3183 = vmul.f32 %v2643, %v3052
    %v3184 = vmul.f32 %v2644, %v3052
    %v3185 = vmul.f32 %v2645, %v3052
    %v3186 = vld [vmem:[%s3] sm:$0x1]
    %v3188 = vlaneseq
    %v3189 = vshrl.u32 %v3188, 7
    %v3190 = vsub.s32 0, %v3189
    %v3191 = vrot.slane %v3186, %v3190
    %v3193 = vmul.f32 %v3053, %v3191
    %v3194 = vmul.f32 %v3054, %v3191
    %v3195 = vmul.f32 %v3055, %v3191
    %v3196 = vmul.f32 %v3056, %v3191
    %v3197 = vmul.f32 %v3057, %v3191
    %v3198 = vmul.f32 %v3058, %v3191
    %v3199 = vmul.f32 %v3059, %v3191
    %v3200 = vmul.f32 %v3060, %v3191
    %v3201 = vmul.f32 %v3061, %v3191
    %v3202 = vmul.f32 %v3062, %v3191
    %v3203 = vmul.f32 %v3063, %v3191
    %v3204 = vmul.f32 %v3064, %v3191
    %v3205 = vmul.f32 %v3065, %v3191
    %v3206 = vmul.f32 %v3066, %v3191
    %v3207 = vmul.f32 %v3067, %v3191
    %v3208 = vmul.f32 %v3068, %v3191
    %v3209 = vmul.f32 %v3069, %v3191
    %v3210 = vmul.f32 %v3070, %v3191
    %v3211 = vmul.f32 %v3071, %v3191
    %v3212 = vmul.f32 %v3072, %v3191
    %v3213 = vmul.f32 %v3073, %v3191
    %v3214 = vmul.f32 %v3074, %v3191
    %v3215 = vmul.f32 %v3075, %v3191
    %v3216 = vmul.f32 %v3076, %v3191
    %v3217 = vmul.f32 %v3077, %v3191
    %v3218 = vmul.f32 %v3078, %v3191
    %v3219 = vmul.f32 %v3079, %v3191
    %v3220 = vmul.f32 %v3080, %v3191
    %v3221 = vmul.f32 %v3081, %v3191
    %v3222 = vmul.f32 %v3082, %v3191
    %v3223 = vmul.f32 %v3083, %v3191
    %v3224 = vmul.f32 %v3084, %v3191
    %v3225 = vmul.f32 %v3085, %v3191
    %v3226 = vmul.f32 %v3086, %v3191
    %v3227 = vmul.f32 %v3087, %v3191
    %v3228 = vmul.f32 %v3088, %v3191
    %v3229 = vmul.f32 %v3089, %v3191
    %v3230 = vmul.f32 %v3090, %v3191
    %v3231 = vmul.f32 %v3091, %v3191
    %v3232 = vmul.f32 %v3092, %v3191
    %v3233 = vmul.f32 %v3093, %v3191
    %v3234 = vmul.f32 %v3094, %v3191
    %v3235 = vmul.f32 %v3095, %v3191
    %v3236 = vmul.f32 %v3096, %v3191
    %v3237 = vmul.f32 %v3097, %v3191
    %v3238 = vmul.f32 %v3098, %v3191
    %v3239 = vmul.f32 %v3099, %v3191
    %v3240 = vmul.f32 %v3100, %v3191
    %v3241 = vmul.f32 %v3101, %v3191
    %v3242 = vmul.f32 %v3102, %v3191
    %v3243 = vmul.f32 %v3103, %v3191
    %v3244 = vmul.f32 %v3104, %v3191
    %v3245 = vmul.f32 %v3105, %v3191
    %v3246 = vmul.f32 %v3106, %v3191
    %v3247 = vmul.f32 %v3107, %v3191
    %v3248 = vmul.f32 %v3108, %v3191
    %v3249 = vmul.f32 %v3109, %v3191
    %v3250 = vmul.f32 %v3110, %v3191
    %v3251 = vmul.f32 %v3111, %v3191
    %v3252 = vmul.f32 %v3112, %v3191
    %v3253 = vmul.f32 %v3113, %v3191
    %v3254 = vmul.f32 %v3114, %v3191
    %v3255 = vmul.f32 %v3115, %v3191
    %v3256 = vmul.f32 %v3116, %v3191
    %v3257 = vmul.f32 %v3117, %v3191
    %v3258 = vmul.f32 %v3118, %v3191
    %v3259 = vmul.f32 %v3119, %v3191
    %v3260 = vmul.f32 %v3120, %v3191
    %v3261 = vmul.f32 %v3121, %v3191
    %v3262 = vmul.f32 %v3122, %v3191
    %v3263 = vmul.f32 %v3123, %v3191
    %v3264 = vmul.f32 %v3124, %v3191
    %v3265 = vmul.f32 %v3125, %v3191
    %v3266 = vmul.f32 %v3126, %v3191
    %v3267 = vmul.f32 %v3127, %v3191
    %v3268 = vmul.f32 %v3128, %v3191
    %v3269 = vmul.f32 %v3129, %v3191
    %v3270 = vmul.f32 %v3130, %v3191
    %v3271 = vmul.f32 %v3131, %v3191
    %v3272 = vmul.f32 %v3132, %v3191
    %v3273 = vmul.f32 %v3133, %v3191
    %v3274 = vmul.f32 %v3134, %v3191
    %v3275 = vmul.f32 %v3135, %v3191
    %v3276 = vmul.f32 %v3136, %v3191
    %v3277 = vmul.f32 %v3137, %v3191
    %v3278 = vmul.f32 %v3138, %v3191
    %v3279 = vmul.f32 %v3139, %v3191
    %v3280 = vmul.f32 %v3140, %v3191
    %v3281 = vmul.f32 %v3141, %v3191
    %v3282 = vmul.f32 %v3142, %v3191
    %v3283 = vmul.f32 %v3143, %v3191
    %v3284 = vmul.f32 %v3144, %v3191
    %v3285 = vmul.f32 %v3145, %v3191
    %v3286 = vmul.f32 %v3146, %v3191
    %v3287 = vmul.f32 %v3147, %v3191
    %v3288 = vmul.f32 %v3148, %v3191
    %v3289 = vmul.f32 %v3149, %v3191
    %v3290 = vmul.f32 %v3150, %v3191
    %v3291 = vmul.f32 %v3151, %v3191
    %v3292 = vmul.f32 %v3152, %v3191
    %v3293 = vmul.f32 %v3153, %v3191
    %v3294 = vmul.f32 %v3154, %v3191
    %v3295 = vmul.f32 %v3155, %v3191
    %v3296 = vmul.f32 %v3156, %v3191
    %v3297 = vmul.f32 %v3157, %v3191
    %v3298 = vmul.f32 %v3158, %v3191
    %v3299 = vmul.f32 %v3159, %v3191
    %v3300 = vmul.f32 %v3160, %v3191
    %v3301 = vmul.f32 %v3161, %v3191
    %v3302 = vmul.f32 %v3162, %v3191
    %v3303 = vmul.f32 %v3163, %v3191
    %v3304 = vmul.f32 %v3164, %v3191
    %v3305 = vmul.f32 %v3165, %v3191
    %v3306 = vmul.f32 %v3166, %v3191
    %v3307 = vmul.f32 %v3167, %v3191
    %v3308 = vmul.f32 %v3168, %v3191
    %v3309 = vmul.f32 %v3169, %v3191
    %v3310 = vmul.f32 %v3170, %v3191
    %v3311 = vmul.f32 %v3171, %v3191
    %v3312 = vmul.f32 %v3172, %v3191
    %v3313 = vmul.f32 %v3173, %v3191
    %v3314 = vmul.f32 %v3174, %v3191
    %v3315 = vmul.f32 %v3175, %v3191
    %v3316 = vmul.f32 %v3176, %v3191
    %v3317 = vmul.f32 %v3177, %v3191
    %v3318 = vmul.f32 %v3178, %v3191
    %v3319 = vmul.f32 %v3179, %v3191
    %v3320 = vmul.f32 %v3180, %v3191
    %v3321 = vmul.f32 %v3181, %v3191
    %v3322 = vmul.f32 %v3182, %v3191
    %v3323 = vmul.f32 %v3183, %v3191
    %v3324 = vmul.f32 %v3184, %v3191
    %v3325 = vmul.f32 %v3185, %v3191
    %v3326 = vld [vmem:[%s4] sm:$0x1]
    %v3328 = vlaneseq
    %v3329 = vshrl.u32 %v3328, 7
    %v3330 = vsub.s32 0, %v3329
    %v3331 = vrot.slane %v3326, %v3330
    %v3333 = vadd.f32 %v3193, %v3331
    %v3334 = vadd.f32 %v3194, %v3331
    %v3335 = vadd.f32 %v3195, %v3331
    %v3336 = vadd.f32 %v3196, %v3331
    %v3337 = vadd.f32 %v3197, %v3331
    %v3338 = vadd.f32 %v3198, %v3331
    %v3339 = vadd.f32 %v3199, %v3331
    %v3340 = vadd.f32 %v3200, %v3331
    %v3341 = vadd.f32 %v3201, %v3331
    %v3342 = vadd.f32 %v3202, %v3331
    %v3343 = vadd.f32 %v3203, %v3331
    %v3344 = vadd.f32 %v3204, %v3331
    %v3345 = vadd.f32 %v3205, %v3331
    %v3346 = vadd.f32 %v3206, %v3331
    %v3347 = vadd.f32 %v3207, %v3331
    %v3348 = vadd.f32 %v3208, %v3331
    %v3349 = vadd.f32 %v3209, %v3331
    %v3350 = vadd.f32 %v3210, %v3331
    %v3351 = vadd.f32 %v3211, %v3331
    %v3352 = vadd.f32 %v3212, %v3331
    %v3353 = vadd.f32 %v3213, %v3331
    %v3354 = vadd.f32 %v3214, %v3331
    %v3355 = vadd.f32 %v3215, %v3331
    %v3356 = vadd.f32 %v3216, %v3331
    %v3357 = vadd.f32 %v3217, %v3331
    %v3358 = vadd.f32 %v3218, %v3331
    %v3359 = vadd.f32 %v3219, %v3331
    %v3360 = vadd.f32 %v3220, %v3331
    %v3361 = vadd.f32 %v3221, %v3331
    %v3362 = vadd.f32 %v3222, %v3331
    %v3363 = vadd.f32 %v3223, %v3331
    %v3364 = vadd.f32 %v3224, %v3331
    %v3365 = vadd.f32 %v3225, %v3331
    %v3366 = vadd.f32 %v3226, %v3331
    %v3367 = vadd.f32 %v3227, %v3331
    %v3368 = vadd.f32 %v3228, %v3331
    %v3369 = vadd.f32 %v3229, %v3331
    %v3370 = vadd.f32 %v3230, %v3331
    %v3371 = vadd.f32 %v3231, %v3331
    %v3372 = vadd.f32 %v3232, %v3331
    %v3373 = vadd.f32 %v3233, %v3331
    %v3374 = vadd.f32 %v3234, %v3331
    %v3375 = vadd.f32 %v3235, %v3331
    %v3376 = vadd.f32 %v3236, %v3331
    %v3377 = vadd.f32 %v3237, %v3331
    %v3378 = vadd.f32 %v3238, %v3331
    %v3379 = vadd.f32 %v3239, %v3331
    %v3380 = vadd.f32 %v3240, %v3331
    %v3381 = vadd.f32 %v3241, %v3331
    %v3382 = vadd.f32 %v3242, %v3331
    %v3383 = vadd.f32 %v3243, %v3331
    %v3384 = vadd.f32 %v3244, %v3331
    %v3385 = vadd.f32 %v3245, %v3331
    %v3386 = vadd.f32 %v3246, %v3331
    %v3387 = vadd.f32 %v3247, %v3331
    %v3388 = vadd.f32 %v3248, %v3331
    %v3389 = vadd.f32 %v3249, %v3331
    %v3390 = vadd.f32 %v3250, %v3331
    %v3391 = vadd.f32 %v3251, %v3331
    %v3392 = vadd.f32 %v3252, %v3331
    %v3393 = vadd.f32 %v3253, %v3331
    %v3394 = vadd.f32 %v3254, %v3331
    %v3395 = vadd.f32 %v3255, %v3331
    %v3396 = vadd.f32 %v3256, %v3331
    %v3397 = vadd.f32 %v3257, %v3331
    %v3398 = vadd.f32 %v3258, %v3331
    %v3399 = vadd.f32 %v3259, %v3331
    %v3400 = vadd.f32 %v3260, %v3331
    %v3401 = vadd.f32 %v3261, %v3331
    %v3402 = vadd.f32 %v3262, %v3331
    %v3403 = vadd.f32 %v3263, %v3331
    %v3404 = vadd.f32 %v3264, %v3331
    %v3405 = vadd.f32 %v3265, %v3331
    %v3406 = vadd.f32 %v3266, %v3331
    %v3407 = vadd.f32 %v3267, %v3331
    %v3408 = vadd.f32 %v3268, %v3331
    %v3409 = vadd.f32 %v3269, %v3331
    %v3410 = vadd.f32 %v3270, %v3331
    %v3411 = vadd.f32 %v3271, %v3331
    %v3412 = vadd.f32 %v3272, %v3331
    %v3413 = vadd.f32 %v3273, %v3331
    %v3414 = vadd.f32 %v3274, %v3331
    %v3415 = vadd.f32 %v3275, %v3331
    %v3416 = vadd.f32 %v3276, %v3331
    %v3417 = vadd.f32 %v3277, %v3331
    %v3418 = vadd.f32 %v3278, %v3331
    %v3419 = vadd.f32 %v3279, %v3331
    %v3420 = vadd.f32 %v3280, %v3331
    %v3421 = vadd.f32 %v3281, %v3331
    %v3422 = vadd.f32 %v3282, %v3331
    %v3423 = vadd.f32 %v3283, %v3331
    %v3424 = vadd.f32 %v3284, %v3331
    %v3425 = vadd.f32 %v3285, %v3331
    %v3426 = vadd.f32 %v3286, %v3331
    %v3427 = vadd.f32 %v3287, %v3331
    %v3428 = vadd.f32 %v3288, %v3331
    %v3429 = vadd.f32 %v3289, %v3331
    %v3430 = vadd.f32 %v3290, %v3331
    %v3431 = vadd.f32 %v3291, %v3331
    %v3432 = vadd.f32 %v3292, %v3331
    %v3433 = vadd.f32 %v3293, %v3331
    %v3434 = vadd.f32 %v3294, %v3331
    %v3435 = vadd.f32 %v3295, %v3331
    %v3436 = vadd.f32 %v3296, %v3331
    %v3437 = vadd.f32 %v3297, %v3331
    %v3438 = vadd.f32 %v3298, %v3331
    %v3439 = vadd.f32 %v3299, %v3331
    %v3440 = vadd.f32 %v3300, %v3331
    %v3441 = vadd.f32 %v3301, %v3331
    %v3442 = vadd.f32 %v3302, %v3331
    %v3443 = vadd.f32 %v3303, %v3331
    %v3444 = vadd.f32 %v3304, %v3331
    %v3445 = vadd.f32 %v3305, %v3331
    %v3446 = vadd.f32 %v3306, %v3331
    %v3447 = vadd.f32 %v3307, %v3331
    %v3448 = vadd.f32 %v3308, %v3331
    %v3449 = vadd.f32 %v3309, %v3331
    %v3450 = vadd.f32 %v3310, %v3331
    %v3451 = vadd.f32 %v3311, %v3331
    %v3452 = vadd.f32 %v3312, %v3331
    %v3453 = vadd.f32 %v3313, %v3331
    %v3454 = vadd.f32 %v3314, %v3331
    %v3455 = vadd.f32 %v3315, %v3331
    %v3456 = vadd.f32 %v3316, %v3331
    %v3457 = vadd.f32 %v3317, %v3331
    %v3458 = vadd.f32 %v3318, %v3331
    %v3459 = vadd.f32 %v3319, %v3331
    %v3460 = vadd.f32 %v3320, %v3331
    %v3461 = vadd.f32 %v3321, %v3331
    %v3462 = vadd.f32 %v3322, %v3331
    %v3463 = vadd.f32 %v3323, %v3331
    %v3464 = vadd.f32 %v3324, %v3331
    %v3465 = vadd.f32 %v3325, %v3331
    %3466 = vst.msk [vmem:[%s5] sm:$0xff] %vm1696, %v3333
    %3467 = vst.msk [vmem:[%s5 + $0x8] sm:$0xff] %vm1696, %v3334
    %3468 = vst.msk [vmem:[%s5 + $0x10] sm:$0xff] %vm1696, %v3335
    %3469 = vst.msk [vmem:[%s5 + $0x18] sm:$0xff] %vm1696, %v3336
    %3470 = vst.msk [vmem:[%s5 + $0x20] sm:$0xff] %vm1696, %v3337
    %3471 = vst.msk [vmem:[%s5 + $0x28] sm:$0xff] %vm1696, %v3338
    %3472 = vst.msk [vmem:[%s5 + $0x30] sm:$0xff] %vm1696, %v3339
    %3473 = vst.msk [vmem:[%s5 + $0x38] sm:$0xff] %vm1696, %v3340
    %3474 = vst.msk [vmem:[%s5 + $0x40] sm:$0xff] %vm1696, %v3341
    %3475 = vst.msk [vmem:[%s5 + $0x48] sm:$0xff] %vm1696, %v3342
    %3476 = vst.msk [vmem:[%s5 + $0x50] sm:$0xff] %vm1696, %v3343
    %3477 = vst.msk [vmem:[%s5 + $0x58] sm:$0xff] %vm1696, %v3344
    %3478 = vst.msk [vmem:[%s5 + $0x60] sm:$0xff] %vm1696, %v3345
    %3479 = vst.msk [vmem:[%s5 + $0x68] sm:$0xff] %vm1696, %v3346
    %3480 = vst.msk [vmem:[%s5 + $0x70] sm:$0xff] %vm1696, %v3347
    %3481 = vst.msk [vmem:[%s5 + $0x78] sm:$0xff] %vm1696, %v3348
    %3482 = vst.msk [vmem:[%s5 + $0x80] sm:$0xff] %vm1696, %v3349
    %3483 = vst.msk [vmem:[%s5 + $0x88] sm:$0xff] %vm1696, %v3350
    %3484 = vst.msk [vmem:[%s5 + $0x90] sm:$0xff] %vm1696, %v3351
    %3485 = vst.msk [vmem:[%s5 + $0x98] sm:$0xff] %vm1696, %v3352
    %3486 = vst.msk [vmem:[%s5 + $0xa0] sm:$0xff] %vm1696, %v3353
    %3487 = vst.msk [vmem:[%s5 + $0xa8] sm:$0xff] %vm1696, %v3354
    %3488 = vst.msk [vmem:[%s5 + $0xb0] sm:$0xff] %vm1696, %v3355
    %3489 = vst.msk [vmem:[%s5 + $0xb8] sm:$0xff] %vm1696, %v3356
    %3490 = vst.msk [vmem:[%s5 + $0xc0] sm:$0xff] %vm1696, %v3357
    %3491 = vst.msk [vmem:[%s5 + $0xc8] sm:$0xff] %vm1696, %v3358
    %3492 = vst.msk [vmem:[%s5 + $0xd0] sm:$0xff] %vm1696, %v3359
    %3493 = vst.msk [vmem:[%s5 + $0xd8] sm:$0xff] %vm1696, %v3360
    %3494 = vst.msk [vmem:[%s5 + $0xe0] sm:$0xff] %vm1696, %v3361
    %3495 = vst.msk [vmem:[%s5 + $0xe8] sm:$0xff] %vm1696, %v3362
    %3496 = vst.msk [vmem:[%s5 + $0xf0] sm:$0xff] %vm1696, %v3363
    %3497 = vst.msk [vmem:[%s5 + $0xf8] sm:$0xff] %vm1696, %v3364
    %3498 = vst.msk [vmem:[%s5 + $0x100] sm:$0xff] %vm1696, %v3365
    %3499 = vst.msk [vmem:[%s5 + $0x108] sm:$0xff] %vm1696, %v3366
    %3500 = vst.msk [vmem:[%s5 + $0x110] sm:$0xff] %vm1696, %v3367
    %3501 = vst.msk [vmem:[%s5 + $0x118] sm:$0xff] %vm1696, %v3368
    %3502 = vst.msk [vmem:[%s5 + $0x120] sm:$0xff] %vm1696, %v3369
    %3503 = vst.msk [vmem:[%s5 + $0x128] sm:$0xff] %vm1696, %v3370
    %3504 = vst.msk [vmem:[%s5 + $0x130] sm:$0xff] %vm1696, %v3371
    %3505 = vst.msk [vmem:[%s5 + $0x138] sm:$0xff] %vm1696, %v3372
    %3506 = vst.msk [vmem:[%s5 + $0x140] sm:$0xff] %vm1696, %v3373
    %3507 = vst.msk [vmem:[%s5 + $0x148] sm:$0xff] %vm1696, %v3374
    %3508 = vst.msk [vmem:[%s5 + $0x150] sm:$0xff] %vm1696, %v3375
    %3509 = vst.msk [vmem:[%s5 + $0x158] sm:$0xff] %vm1696, %v3376
    %3510 = vst.msk [vmem:[%s5 + $0x160] sm:$0xff] %vm1696, %v3377
    %3511 = vst.msk [vmem:[%s5 + $0x168] sm:$0xff] %vm1696, %v3378
    %3512 = vst.msk [vmem:[%s5 + $0x170] sm:$0xff] %vm1696, %v3379
    %3513 = vst.msk [vmem:[%s5 + $0x178] sm:$0xff] %vm1696, %v3380
    %3514 = vst.msk [vmem:[%s5 + $0x180] sm:$0xff] %vm1696, %v3381
    %3515 = vst.msk [vmem:[%s5 + $0x188] sm:$0xff] %vm1696, %v3382
    %3516 = vst.msk [vmem:[%s5 + $0x190] sm:$0xff] %vm1696, %v3383
    %3517 = vst.msk [vmem:[%s5 + $0x198] sm:$0xff] %vm1696, %v3384
    %3518 = vst.msk [vmem:[%s5 + $0x1a0] sm:$0xff] %vm1696, %v3385
    %3519 = vst.msk [vmem:[%s5 + $0x1a8] sm:$0xff] %vm1696, %v3386
    %3520 = vst.msk [vmem:[%s5 + $0x1b0] sm:$0xff] %vm1696, %v3387
    %3521 = vst.msk [vmem:[%s5 + $0x1b8] sm:$0xff] %vm1696, %v3388
    %3522 = vst.msk [vmem:[%s5 + $0x1c0] sm:$0xff] %vm1696, %v3389
    %3523 = vst.msk [vmem:[%s5 + $0x1c8] sm:$0xff] %vm1696, %v3390
    %3524 = vst.msk [vmem:[%s5 + $0x1d0] sm:$0xff] %vm1696, %v3391
    %3525 = vst.msk [vmem:[%s5 + $0x1d8] sm:$0xff] %vm1696, %v3392
    %3526 = vst.msk [vmem:[%s5 + $0x1e0] sm:$0xff] %vm1696, %v3393
    %3527 = vst.msk [vmem:[%s5 + $0x1e8] sm:$0xff] %vm1696, %v3394
    %3528 = vst.msk [vmem:[%s5 + $0x1f0] sm:$0xff] %vm1696, %v3395
    %3529 = vst.msk [vmem:[%s5 + $0x1f8] sm:$0xff] %vm1696, %v3396
    %3530 = vst.msk [vmem:[%s5 + $0x200] sm:$0xff] %vm1696, %v3397
    %3531 = vst.msk [vmem:[%s5 + $0x208] sm:$0xff] %vm1696, %v3398
    %3532 = vst.msk [vmem:[%s5 + $0x210] sm:$0xff] %vm1696, %v3399
    %3533 = vst.msk [vmem:[%s5 + $0x218] sm:$0xff] %vm1696, %v3400
    %3534 = vst.msk [vmem:[%s5 + $0x220] sm:$0xff] %vm1696, %v3401
    %3535 = vst.msk [vmem:[%s5 + $0x228] sm:$0xff] %vm1696, %v3402
    %3536 = vst.msk [vmem:[%s5 + $0x230] sm:$0xff] %vm1696, %v3403
    %3537 = vst.msk [vmem:[%s5 + $0x238] sm:$0xff] %vm1696, %v3404
    %3538 = vst.msk [vmem:[%s5 + $0x240] sm:$0xff] %vm1696, %v3405
    %3539 = vst.msk [vmem:[%s5 + $0x248] sm:$0xff] %vm1696, %v3406
    %3540 = vst.msk [vmem:[%s5 + $0x250] sm:$0xff] %vm1696, %v3407
    %3541 = vst.msk [vmem:[%s5 + $0x258] sm:$0xff] %vm1696, %v3408
    %3542 = vst.msk [vmem:[%s5 + $0x260] sm:$0xff] %vm1696, %v3409
    %3543 = vst.msk [vmem:[%s5 + $0x268] sm:$0xff] %vm1696, %v3410
    %3544 = vst.msk [vmem:[%s5 + $0x270] sm:$0xff] %vm1696, %v3411
    %3545 = vst.msk [vmem:[%s5 + $0x278] sm:$0xff] %vm1696, %v3412
    %3546 = vst.msk [vmem:[%s5 + $0x280] sm:$0xff] %vm1696, %v3413
    %3547 = vst.msk [vmem:[%s5 + $0x288] sm:$0xff] %vm1696, %v3414
    %3548 = vst.msk [vmem:[%s5 + $0x290] sm:$0xff] %vm1696, %v3415
    %3549 = vst.msk [vmem:[%s5 + $0x298] sm:$0xff] %vm1696, %v3416
    %3550 = vst.msk [vmem:[%s5 + $0x2a0] sm:$0xff] %vm1696, %v3417
    %3551 = vst.msk [vmem:[%s5 + $0x2a8] sm:$0xff] %vm1696, %v3418
    %3552 = vst.msk [vmem:[%s5 + $0x2b0] sm:$0xff] %vm1696, %v3419
    %3553 = vst.msk [vmem:[%s5 + $0x2b8] sm:$0xff] %vm1696, %v3420
    %3554 = vst.msk [vmem:[%s5 + $0x2c0] sm:$0xff] %vm1696, %v3421
    %3555 = vst.msk [vmem:[%s5 + $0x2c8] sm:$0xff] %vm1696, %v3422
    %3556 = vst.msk [vmem:[%s5 + $0x2d0] sm:$0xff] %vm1696, %v3423
    %3557 = vst.msk [vmem:[%s5 + $0x2d8] sm:$0xff] %vm1696, %v3424
    %3558 = vst.msk [vmem:[%s5 + $0x2e0] sm:$0xff] %vm1696, %v3425
    %3559 = vst.msk [vmem:[%s5 + $0x2e8] sm:$0xff] %vm1696, %v3426
    %3560 = vst.msk [vmem:[%s5 + $0x2f0] sm:$0xff] %vm1696, %v3427
    %3561 = vst.msk [vmem:[%s5 + $0x2f8] sm:$0xff] %vm1696, %v3428
    %3562 = vst.msk [vmem:[%s5 + $0x300] sm:$0xff] %vm1696, %v3429
    %3563 = vst.msk [vmem:[%s5 + $0x308] sm:$0xff] %vm1696, %v3430
    %3564 = vst.msk [vmem:[%s5 + $0x310] sm:$0xff] %vm1696, %v3431
    %3565 = vst.msk [vmem:[%s5 + $0x318] sm:$0xff] %vm1696, %v3432
    %3566 = vst.msk [vmem:[%s5 + $0x320] sm:$0xff] %vm1696, %v3433
    %3567 = vst.msk [vmem:[%s5 + $0x328] sm:$0xff] %vm1696, %v3434
    %3568 = vst.msk [vmem:[%s5 + $0x330] sm:$0xff] %vm1696, %v3435
    %3569 = vst.msk [vmem:[%s5 + $0x338] sm:$0xff] %vm1696, %v3436
    %3570 = vst.msk [vmem:[%s5 + $0x340] sm:$0xff] %vm1696, %v3437
    %3571 = vst.msk [vmem:[%s5 + $0x348] sm:$0xff] %vm1696, %v3438
    %3572 = vst.msk [vmem:[%s5 + $0x350] sm:$0xff] %vm1696, %v3439
    %3573 = vst.msk [vmem:[%s5 + $0x358] sm:$0xff] %vm1696, %v3440
    %3574 = vst.msk [vmem:[%s5 + $0x360] sm:$0xff] %vm1696, %v3441
    %3575 = vst.msk [vmem:[%s5 + $0x368] sm:$0xff] %vm1696, %v3442
    %3576 = vst.msk [vmem:[%s5 + $0x370] sm:$0xff] %vm1696, %v3443
    %3577 = vst.msk [vmem:[%s5 + $0x378] sm:$0xff] %vm1696, %v3444
    %3578 = vst.msk [vmem:[%s5 + $0x380] sm:$0xff] %vm1696, %v3445
    %3579 = vst.msk [vmem:[%s5 + $0x388] sm:$0xff] %vm1696, %v3446
    %3580 = vst.msk [vmem:[%s5 + $0x390] sm:$0xff] %vm1696, %v3447
    %3581 = vst.msk [vmem:[%s5 + $0x398] sm:$0xff] %vm1696, %v3448
    %3582 = vst.msk [vmem:[%s5 + $0x3a0] sm:$0xff] %vm1696, %v3449
    %3583 = vst.msk [vmem:[%s5 + $0x3a8] sm:$0xff] %vm1696, %v3450
    %3584 = vst.msk [vmem:[%s5 + $0x3b0] sm:$0xff] %vm1696, %v3451
    %3585 = vst.msk [vmem:[%s5 + $0x3b8] sm:$0xff] %vm1696, %v3452
    %3586 = vst.msk [vmem:[%s5 + $0x3c0] sm:$0xff] %vm1696, %v3453
    %3587 = vst.msk [vmem:[%s5 + $0x3c8] sm:$0xff] %vm1696, %v3454
    %3588 = vst.msk [vmem:[%s5 + $0x3d0] sm:$0xff] %vm1696, %v3455
    %3589 = vst.msk [vmem:[%s5 + $0x3d8] sm:$0xff] %vm1696, %v3456
    %3590 = vst.msk [vmem:[%s5 + $0x3e0] sm:$0xff] %vm1696, %v3457
    %3591 = vst.msk [vmem:[%s5 + $0x3e8] sm:$0xff] %vm1696, %v3458
    %3592 = vst.msk [vmem:[%s5 + $0x3f0] sm:$0xff] %vm1696, %v3459
    %3593 = vst.msk [vmem:[%s5 + $0x3f8] sm:$0xff] %vm1696, %v3460
    %3594 = vst.msk [vmem:[%s5 + $0x400] sm:$0xff] %vm1696, %v3461
    %3595 = vst.msk [vmem:[%s5 + $0x408] sm:$0xff] %vm1696, %v3462
    %3596 = vst.msk [vmem:[%s5 + $0x410] sm:$0xff] %vm1696, %v3463
    %3597 = vst.msk [vmem:[%s5 + $0x418] sm:$0xff] %vm1696, %v3464
    %3598 = vst.msk [vmem:[%s5 + $0x420] sm:$0x3] %vm1829, %v3465
  $region29: #{tpu_custom_call.1} parent=0 // pred_fallthru
    _
  // Predicated region
  $region30: #{tpu_custom_call.1} parent=0 // pred_check
    _
  $region31: #{tpu_custom_call.1} parent=0 // pred_check_branch
    %3600 = sbr.rel (0) target = $region33
  $region32: #{tpu_custom_call.1} parent=0 // pred_region
    _
  $region33: #{tpu_custom_call.1} parent=0 // pred_fallthru
    _
  // Predicated region
  $region34: #{tpu_custom_call.1} parent=0 // pred_check
    _
  $region35: #{tpu_custom_call.1} parent=0 // pred_check_branch
    %3602 = sbr.rel (0) target = $region37
  $region36: #{tpu_custom_call.1} parent=0 // pred_region
    _
  $region37: #{tpu_custom_call.1} parent=0 // pred_fallthru
    _

</llo_original>
